<compile_context>
chip_gen: v7x
topology: tpu7x:2x2x1
jax: 0.10.0
libtpu: 0.0.40
codegen_flags: <defaults>
</compile_context>

<pallas_src>
import jax
import jax.numpy as jnp
from jax.experimental import pallas as pl
from jax.experimental.pallas import tpu as pltpu

# ---------------- configuration (consistent with the module) ---------------
IN_FEATURES = 16
HIDDEN_DIM = 32
NUM_MPNNS = 2            # len(self.convs)
NUM_CONVS = 2            # inner repeats of the same GINConv inside do_conv
NUM_HIDDEN_LAYERS = 1    # hidden layers of the GIN MLP
NUM_MLP_LAYERS = NUM_HIDDEN_LAYERS + 2     # in->h, (h->h)*hidden, h->out
NOTES_DIM = 8
GIN_EPS = 0.0            # pyg GINConv default eps
BN_EPS = 1e-5
OUT_PAD = 128            # lane-dense fused output width ([embed | logits | 0])
NUM_W_MATS = 1 + NUM_MPNNS * NUM_MLP_LAYERS       # proj + all MLP layers = 7
NUM_BIAS_ROWS = 1 + NUM_MPNNS * NUM_MLP_LAYERS + 1  # 8
NOTES_B_ROW = 1 + NUM_MPNNS * NUM_MLP_LAYERS      # row of readout bias = 7


# ---------------- Pallas kernel: one graph-group per grid step --------------
def gcn_kernel(x_ref, adj_ref, pool_ref, wmat_ref, rout_ref, bias_ref, out_ref):
    f32 = jnp.float32
    bf16 = jnp.bfloat16
    rows = x_ref.shape[0]
    H = HIDDEN_DIM

    # project_node_feats: Linear -> ReLU -> Dropout(identity in eval).
    # feature_norm (BatchNorm1d inference affine) folded into wmat[0]/bias[0].
    proj_b = jnp.broadcast_to(bias_ref[0:1, :H], (rows, H))
    x = jnp.dot(x_ref[...], wmat_ref[0], preferred_element_type=f32) + proj_b
    x = jnp.maximum(x, 0.0)
    residual = x

    adj = adj_ref[...]                     # (rows, rows) bf16, no self loops

    for m in range(NUM_MPNNS):
        # Hoist weights; pre-broadcast biases once per block (no CSE of
        # broadcast_in_dim across the unrolled NUM_CONVS repeats).
        ws = [wmat_ref[1 + m * NUM_MLP_LAYERS + l] for l in range(NUM_MLP_LAYERS)]
        bs = [jnp.broadcast_to(
                  bias_ref[1 + m * NUM_MLP_LAYERS + l:
                           2 + m * NUM_MLP_LAYERS + l, :H], (rows, H))
              for l in range(NUM_MLP_LAYERS)]
        for _ in range(NUM_CONVS):
            # GINConv: MLP((1+eps)*x + sum_{j in N(i)} x_j); the f32 self term
            # is a VPU FMA that hides under the adjacency vmatmul.
            xb = x.astype(bf16)
            h = (jnp.dot(adj, xb, preferred_element_type=f32)
                 + (1.0 + GIN_EPS) * x)
            for l in range(NUM_MLP_LAYERS):
                h = jnp.dot(h.astype(bf16), ws[l],
                            preferred_element_type=f32) + bs[l]
                if l < NUM_MLP_LAYERS - 1:
                    h = jnp.maximum(h, 0.0)
            # BatchNorm1d affine folded into the last MLP layer above;
            # ReLU; Dropout is identity in eval.
            x = jnp.maximum(h, 0.0)
        x = x + residual
        residual = x

    # readout: per-graph mean pool implemented as a pooling matmul.
    # TODO(synk): BlendAggregator (set-attention readout) source not provided;
    # replaced with mean pooling.
    pooled = jnp.dot(pool_ref[...], x.astype(bf16), preferred_element_type=f32)

    # Fused lane-dense epilogue: pooled @ [I_32 | notes_w | 0] + bias-row
    # -> [embed | logits | 0] in one 128-wide unmasked store (no concat).
    out = (jnp.dot(pooled.astype(bf16), rout_ref[...],
                   preferred_element_type=f32)
           + bias_ref[NOTES_B_ROW:NOTES_B_ROW + 1, :])
    out_ref[...] = out.astype(out_ref.dtype)


# ---------------- wrapper ---------------------------------------------------
def gcn_forward(x, adj, pool, packed):
    """x: (num_groups*rows, IN_FEATURES); adj: (num_groups, rows, rows) bf16
    (block-diagonal per group, NO self loops); pool: (num_groups, gpg, rows)."""
    bf16 = jnp.bfloat16
    num_groups, rows, _ = adj.shape
    gpg = pool.shape[1]

    # Pad node features 16 -> 32 lanes so the projection weight stacks with
    # the MLP weights (tiny pad; no 256x256 wrapper pass any more).
    x_p = jnp.zeros((x.shape[0], HIDDEN_DIM), jnp.float32)
    x_p = x_p.at[:, :IN_FEATURES].set(x).astype(bf16)

    adj_b = adj if adj.dtype == bf16 else adj.astype(bf16)
    pool_b = pool if pool.dtype == bf16 else pool.astype(bf16)

    out = pl.pallas_call(
        gcn_kernel,
        out_shape=jax.ShapeDtypeStruct((num_groups * gpg, OUT_PAD), jnp.float32),
        grid=(num_groups,),
        in_specs=[
            pl.BlockSpec((rows, HIDDEN_DIM), lambda g: (g, 0)),
            pl.BlockSpec((None, rows, rows), lambda g: (g, 0, 0)),
            pl.BlockSpec((None, gpg, rows), lambda g: (g, 0, 0)),
            pl.BlockSpec((NUM_W_MATS, HIDDEN_DIM, HIDDEN_DIM),
                         lambda g: (0, 0, 0)),
            pl.BlockSpec((HIDDEN_DIM, OUT_PAD), lambda g: (0, 0)),
            pl.BlockSpec((NUM_BIAS_ROWS, OUT_PAD), lambda g: (0, 0)),
        ],
        out_specs=pl.BlockSpec((gpg, OUT_PAD), lambda g: (g, 0)),
        compiler_params=pltpu.CompilerParams(
            dimension_semantics=("parallel",)),   # v7x: 2 TCs, one group each
    )(x_p, adj_b, pool_b, packed["wmat"], packed["rout"], packed["bias"])

    return {"embed": out[:, :HIDDEN_DIM],
            "logits": out[:, HIDDEN_DIM:HIDDEN_DIM + NOTES_DIM]}


# ---------------- deterministic parameter init (synthetic) ------------------
def init_params(key):
    ks = list(jax.random.split(key, 12))

    def lin_w(k, fan_in, shape):
        return (jax.random.uniform(k, shape, jnp.float32, -1.0, 1.0)
                / jnp.sqrt(jnp.asarray(fan_in, jnp.float32)))

    # feature_norm BatchNorm1d (inference) -> affine
    gamma = jax.random.uniform(ks[0], (1, IN_FEATURES), jnp.float32, 0.5, 1.5)
    beta = 0.1 * jax.random.normal(ks[1], (1, IN_FEATURES), jnp.float32)
    r_mean = 0.1 * jax.random.normal(ks[2], (1, IN_FEATURES), jnp.float32)
    r_var = jax.random.uniform(ks[3], (1, IN_FEATURES), jnp.float32, 0.5, 1.5)
    fn_scale = gamma / jnp.sqrt(r_var + BN_EPS)
    fn_shift = beta - r_mean * fn_scale

    proj_w = lin_w(ks[4], IN_FEATURES, (IN_FEATURES, HIDDEN_DIM))
    proj_b = lin_w(ks[5], IN_FEATURES, (1, HIDDEN_DIM))

    ml = NUM_MPNNS * NUM_MLP_LAYERS
    mlp_w = lin_w(ks[6], HIDDEN_DIM, (ml, HIDDEN_DIM, HIDDEN_DIM))
    mlp_b = lin_w(ks[7], HIDDEN_DIM, (ml, 1, HIDDEN_DIM))

    bn_gamma = jax.random.uniform(ks[8], (NUM_MPNNS, 1, HIDDEN_DIM),
                                  jnp.float32, 0.5, 1.5)
    bn_beta = 0.1 * jax.random.normal(ks[9], (NUM_MPNNS, 1, HIDDEN_DIM),
                                      jnp.float32)
    # synthetic running stats: mean 0, var 1
    bn_scale = bn_gamma / jnp.sqrt(1.0 + BN_EPS)
    bn_shift = bn_beta

    notes_w = lin_w(ks[10], HIDDEN_DIM, (HIDDEN_DIM, NOTES_DIM))
    notes_b = lin_w(ks[11], HIDDEN_DIM, (1, NOTES_DIM))

    return dict(fn_scale=fn_scale, fn_shift=fn_shift,
                proj_w=proj_w, proj_b=proj_b,
                mlp_w=mlp_w, mlp_b=mlp_b,
                bn_scale=bn_scale, bn_shift=bn_shift,
                notes_w=notes_w, notes_b=notes_b)


# ---------------- affine folding + packing (host-side, once) ----------------
def pack_params(params):
    f32 = jnp.float32
    bf16 = jnp.bfloat16

    # (a) fold feature_norm scale/shift into the projection Linear
    proj_w = params["proj_w"] * params["fn_scale"][0][:, None]          # (F,H)
    proj_b = params["proj_b"] + params["fn_shift"] @ params["proj_w"]   # (1,H)

    # (b) fold each block's BatchNorm affine into its last MLP layer
    mlp_w = list(params["mlp_w"])
    mlp_b = list(params["mlp_b"])
    for m in range(NUM_MPNNS):
        last = m * NUM_MLP_LAYERS + (NUM_MLP_LAYERS - 1)
        scale = params["bn_scale"][m]           # (1, H)
        shift = params["bn_shift"][m]           # (1, H)
        mlp_w[last] = mlp_w[last] * scale       # column scale
        mlp_b[last] = mlp_b[last] * scale + shift

    # (c) single bf16 weight slab (NUM_W_MATS, H, H): row 0 = feature-padded
    #     projection weight, rows 1.. = MLP layers.
    proj_pad = jnp.zeros((HIDDEN_DIM, HIDDEN_DIM), f32)
    proj_pad = proj_pad.at[:IN_FEATURES, :].set(proj_w)
    wmat = jnp.stack([proj_pad] + mlp_w)                          # (7, H, H)

    # (d) lane-dense readout RHS: [I_H | notes_w | 0]  (H, 128)
    rout = jnp.zeros((HIDDEN_DIM, OUT_PAD), f32)
    rout = rout.at[:, :HIDDEN_DIM].set(jnp.eye(HIDDEN_DIM, dtype=f32))
    rout = rout.at[:, HIDDEN_DIM:HIDDEN_DIM + NOTES_DIM].set(params["notes_w"])

    # (e) one f32 bias slab (8, 128): row 0 proj, rows 1..6 MLP, row 7 readout
    bias = jnp.zeros((NUM_BIAS_ROWS, OUT_PAD), f32)
    bias = bias.at[0, :HIDDEN_DIM].set(proj_b[0])
    for i in range(NUM_MPNNS * NUM_MLP_LAYERS):
        bias = bias.at[1 + i, :HIDDEN_DIM].set(mlp_b[i][0])
    bias = bias.at[NOTES_B_ROW,
                   HIDDEN_DIM:HIDDEN_DIM + NOTES_DIM].set(params["notes_b"][0])

    return dict(wmat=wmat.astype(bf16), rout=rout.astype(bf16), bias=bias)


# ---------------- synthetic graphs (per-group block-diagonal) ---------------
def build_graphs(num_groups, graphs_per_group, nodes_per_graph):
    f32 = jnp.float32
    # bidirectional ring within each graph (NO self loops)
    idx = jnp.arange(nodes_per_graph)
    ring = jnp.zeros((nodes_per_graph, nodes_per_graph), f32)
    ring = ring.at[idx, jnp.roll(idx, 1)].set(1.0)
    ring = ring.at[jnp.roll(idx, 1), idx].set(1.0)
    adj_g = jnp.kron(jnp.eye(graphs_per_group, dtype=f32), ring)
    pool_g = jnp.kron(jnp.eye(graphs_per_group, dtype=f32),
                      jnp.full((1, nodes_per_graph), 1.0 / nodes_per_graph, f32))
    adj = jnp.broadcast_to(adj_g, (num_groups,) + adj_g.shape)
    pool = jnp.broadcast_to(pool_g, (num_groups,) + pool_g.shape)
    return adj, pool


# ---------------- pure-JAX f32 reference of the unfolded module math --------
def reference_forward(x, adj, pool, params):
    h = x * params["fn_scale"] + params["fn_shift"]
    h = jnp.maximum(h @ params["proj_w"] + params["proj_b"], 0.0)
    residual = h
    for m in range(NUM_MPNNS):
        for _ in range(NUM_CONVS):
            z = adj @ h + (1.0 + GIN_EPS) * h
            for l in range(NUM_MLP_LAYERS):
                i = m * NUM_MLP_LAYERS + l
                z = z @ params["mlp_w"][i] + params["mlp_b"][i]
                if l < NUM_MLP_LAYERS - 1:
                    z = jnp.maximum(z, 0.0)
            z = z * params["bn_scale"][m] + params["bn_shift"][m]
            h = jnp.maximum(z, 0.0)
        h = h + residual
        residual = h
    pooled = pool @ h
    logits = pooled @ params["notes_w"] + params["notes_b"]
    return pooled, logits


if __name__ == "__main__":
    key = jax.random.PRNGKey(0)
    k_x, k_p = jax.random.split(key)

    NUM_GROUPS = 2            # leading "parallel" grid axis (both v7x TCs busy)
    GRAPHS_PER_GROUP = 8
    NODES_PER_GRAPH = 16
    rows = GRAPHS_PER_GROUP * NODES_PER_GRAPH       # 128 node rows per group
    num_nodes = NUM_GROUPS * rows                   # 256
    num_graphs = NUM_GROUPS * GRAPHS_PER_GROUP      # 16

    adj, pool = build_graphs(NUM_GROUPS, GRAPHS_PER_GROUP, NODES_PER_GRAPH)
    x = jax.random.normal(k_x, (num_nodes, IN_FEATURES), jnp.float32)
    params = init_params(k_p)
    packed = pack_params(params)

    # one-time host-side cast (adjacency/pool values are exact in bf16)
    out = gcn_forward(x, adj.astype(jnp.bfloat16), pool.astype(jnp.bfloat16),
                      packed)
    jax.block_until_ready(out)

    assert out["embed"].shape == (num_graphs, HIDDEN_DIM)
    assert out["logits"].shape == (num_graphs, NOTES_DIM)
    assert bool(jnp.all(jnp.isfinite(out["embed"])))
    assert bool(jnp.all(jnp.isfinite(out["logits"])))

    # tolerance check vs f32 reference (bf16 MXU rounding expected)
    ref_e, ref_l = [], []
    for g in range(NUM_GROUPS):
        e, lg = reference_forward(x[g * rows:(g + 1) * rows], adj[g], pool[g],
                                  params)
        ref_e.append(e)
        ref_l.append(lg)
    ref_e = jnp.concatenate(ref_e)
    ref_l = jnp.concatenate(ref_l)

    def check(name, got, ref):
        err = float(jnp.max(jnp.abs(got - ref)))
        scale = float(jnp.max(jnp.abs(ref))) + 1e-6
        assert err <= 0.05 * scale + 0.05, f"{name}: err={err} scale={scale}"

    check("embed", out["embed"], ref_e)
    check("logits", out["logits"], ref_l)
    print("KERNEL_OK")
</pallas_src>

<mosaic_0001>
module attributes {stable_mosaic.version = 11 : i64} {
  func.func @gcn_kernel(%arg0: i32, %arg1: memref<128x32xbf16, #tpu.memory_space<vmem>>, %arg2: memref<1x128x128xbf16, #tpu.memory_space<vmem>>, %arg3: memref<1x8x128xbf16, #tpu.memory_space<vmem>>, %arg4: memref<7x32x32xbf16, #tpu.memory_space<vmem>>, %arg5: memref<32x128xbf16, #tpu.memory_space<vmem>>, %arg6: memref<8x128xf32, #tpu.memory_space<vmem>>, %arg7: memref<8x128xf32, #tpu.memory_space<vmem>>) attributes {dimension_semantics = [#tpu.dimension_semantics<parallel>], iteration_bounds = array<i64: 2>, scalar_prefetch = 0 : i64, scratch_operands = 0 : i64, tpu.core_type = #tpu.core_type<tc>, window_params = [{transform_indices = @transform_0, window_bounds = array<i64: 128, 32>}, {transform_indices = @transform_1, window_bounds = array<i64: 1, 128, 128>}, {transform_indices = @transform_2, window_bounds = array<i64: 1, 8, 128>}, {pipeline_mode = #tpu.pipeline_mode<synchronous>, transform_indices = @transform_3, window_bounds = array<i64: 7, 32, 32>}, {pipeline_mode = #tpu.pipeline_mode<synchronous>, transform_indices = @transform_4, window_bounds = array<i64: 32, 128>}, {pipeline_mode = #tpu.pipeline_mode<synchronous>, transform_indices = @transform_5, window_bounds = array<i64: 8, 128>}, {transform_indices = @transform_6, window_bounds = array<i64: 8, 128>}]} {
    %c0 = arith.constant 0 : index
    %c0_0 = arith.constant 0 : index
    %0 = vector.load %arg6[%c0, %c0_0] : memref<8x128xf32, #tpu.memory_space<vmem>>, vector<1x32xf32>
    %1 = vector.shape_cast %0 : vector<1x32xf32> to vector<1x32xf32>
    %2 = vector.broadcast %1 : vector<1x32xf32> to vector<128x32xf32>
    %c0_1 = arith.constant 0 : index
    %c0_2 = arith.constant 0 : index
    %3 = vector.load %arg1[%c0_1, %c0_2] : memref<128x32xbf16, #tpu.memory_space<vmem>>, vector<128x32xbf16>
    %c0_3 = arith.constant 0 : index
    %c0_4 = arith.constant 0 : index
    %c0_5 = arith.constant 0 : index
    %4 = vector.load %arg4[%c0_3, %c0_4, %c0_5] : memref<7x32x32xbf16, #tpu.memory_space<vmem>>, vector<1x32x32xbf16>
    %5 = vector.shape_cast %4 : vector<1x32x32xbf16> to vector<32x32xbf16>
    %cst = arith.constant dense<0.000000e+00> : vector<128x32xf32>
    %6 = tpu.matmul %3, %5, %cst {dimension_numbers = #tpu.dot_dimension_numbers<[1], [0], [0], [1], [0, 0, 1, 1], [], []>} : vector<128x32xbf16>, vector<32x32xbf16>, vector<128x32xf32> -> vector<128x32xf32>
    %7 = arith.addf %6, %2 : vector<128x32xf32>
    %cst_6 = arith.constant 0.000000e+00 : f32
    %8 = vector.broadcast %cst_6 : f32 to vector<128x32xf32>
    %9 = arith.maximumf %7, %8 : vector<128x32xf32>
    %c0_7 = arith.constant 0 : index
    %c0_8 = arith.constant 0 : index
    %c0_9 = arith.constant 0 : index
    %10 = vector.load %arg2[%c0_7, %c0_8, %c0_9] : memref<1x128x128xbf16, #tpu.memory_space<vmem>>, vector<1x128x128xbf16>
    %11 = vector.shape_cast %10 : vector<1x128x128xbf16> to vector<128x128xbf16>
    %c1 = arith.constant 1 : index
    %c0_10 = arith.constant 0 : index
    %c0_11 = arith.constant 0 : index
    %12 = vector.load %arg4[%c1, %c0_10, %c0_11] : memref<7x32x32xbf16, #tpu.memory_space<vmem>>, vector<1x32x32xbf16>
    %13 = vector.shape_cast %12 : vector<1x32x32xbf16> to vector<32x32xbf16>
    %c2 = arith.constant 2 : index
    %c0_12 = arith.constant 0 : index
    %c0_13 = arith.constant 0 : index
    %14 = vector.load %arg4[%c2, %c0_12, %c0_13] : memref<7x32x32xbf16, #tpu.memory_space<vmem>>, vector<1x32x32xbf16>
    %15 = vector.shape_cast %14 : vector<1x32x32xbf16> to vector<32x32xbf16>
    %c3 = arith.constant 3 : index
    %c0_14 = arith.constant 0 : index
    %c0_15 = arith.constant 0 : index
    %16 = vector.load %arg4[%c3, %c0_14, %c0_15] : memref<7x32x32xbf16, #tpu.memory_space<vmem>>, vector<1x32x32xbf16>
    %17 = vector.shape_cast %16 : vector<1x32x32xbf16> to vector<32x32xbf16>
    %c1_16 = arith.constant 1 : index
    %c0_17 = arith.constant 0 : index
    %18 = vector.load %arg6[%c1_16, %c0_17] : memref<8x128xf32, #tpu.memory_space<vmem>>, vector<1x32xf32>
    %19 = vector.shape_cast %18 : vector<1x32xf32> to vector<1x32xf32>
    %20 = vector.broadcast %19 : vector<1x32xf32> to vector<128x32xf32>
    %c2_18 = arith.constant 2 : index
    %c0_19 = arith.constant 0 : index
    %21 = vector.load %arg6[%c2_18, %c0_19] : memref<8x128xf32, #tpu.memory_space<vmem>>, vector<1x32xf32>
    %22 = vector.shape_cast %21 : vector<1x32xf32> to vector<1x32xf32>
    %23 = vector.broadcast %22 : vector<1x32xf32> to vector<128x32xf32>
    %c3_20 = arith.constant 3 : index
    %c0_21 = arith.constant 0 : index
    %24 = vector.load %arg6[%c3_20, %c0_21] : memref<8x128xf32, #tpu.memory_space<vmem>>, vector<1x32xf32>
    %25 = vector.shape_cast %24 : vector<1x32xf32> to vector<1x32xf32>
    %26 = vector.broadcast %25 : vector<1x32xf32> to vector<128x32xf32>
    %27 = arith.truncf %9 : vector<128x32xf32> to vector<128x32xbf16>
    %cst_22 = arith.constant dense<0.000000e+00> : vector<128x32xf32>
    %28 = tpu.matmul %11, %27, %cst_22 {dimension_numbers = #tpu.dot_dimension_numbers<[1], [0], [0], [1], [0, 0, 1, 1], [], []>} : vector<128x128xbf16>, vector<128x32xbf16>, vector<128x32xf32> -> vector<128x32xf32>
    %cst_23 = arith.constant 1.000000e+00 : f32
    %29 = vector.broadcast %cst_23 : f32 to vector<128x32xf32>
    %30 = arith.mulf %29, %9 : vector<128x32xf32>
    %31 = arith.addf %28, %30 : vector<128x32xf32>
    %32 = arith.truncf %31 : vector<128x32xf32> to vector<128x32xbf16>
    %cst_24 = arith.constant dense<0.000000e+00> : vector<128x32xf32>
    %33 = tpu.matmul %32, %13, %cst_24 {dimension_numbers = #tpu.dot_dimension_numbers<[1], [0], [0], [1], [0, 0, 1, 1], [], []>} : vector<128x32xbf16>, vector<32x32xbf16>, vector<128x32xf32> -> vector<128x32xf32>
    %34 = arith.addf %33, %20 : vector<128x32xf32>
    %cst_25 = arith.constant 0.000000e+00 : f32
    %35 = vector.broadcast %cst_25 : f32 to vector<128x32xf32>
    %36 = arith.maximumf %34, %35 : vector<128x32xf32>
    %37 = arith.truncf %36 : vector<128x32xf32> to vector<128x32xbf16>
    %cst_26 = arith.constant dense<0.000000e+00> : vector<128x32xf32>
    %38 = tpu.matmul %37, %15, %cst_26 {dimension_numbers = #tpu.dot_dimension_numbers<[1], [0], [0], [1], [0, 0, 1, 1], [], []>} : vector<128x32xbf16>, vector<32x32xbf16>, vector<128x32xf32> -> vector<128x32xf32>
    %39 = arith.addf %38, %23 : vector<128x32xf32>
    %cst_27 = arith.constant 0.000000e+00 : f32
    %40 = vector.broadcast %cst_27 : f32 to vector<128x32xf32>
    %41 = arith.maximumf %39, %40 : vector<128x32xf32>
    %42 = arith.truncf %41 : vector<128x32xf32> to vector<128x32xbf16>
    %cst_28 = arith.constant dense<0.000000e+00> : vector<128x32xf32>
    %43 = tpu.matmul %42, %17, %cst_28 {dimension_numbers = #tpu.dot_dimension_numbers<[1], [0], [0], [1], [0, 0, 1, 1], [], []>} : vector<128x32xbf16>, vector<32x32xbf16>, vector<128x32xf32> -> vector<128x32xf32>
    %44 = arith.addf %43, %26 : vector<128x32xf32>
    %cst_29 = arith.constant 0.000000e+00 : f32
    %45 = vector.broadcast %cst_29 : f32 to vector<128x32xf32>
    %46 = arith.maximumf %44, %45 : vector<128x32xf32>
    %47 = arith.truncf %46 : vector<128x32xf32> to vector<128x32xbf16>
    %cst_30 = arith.constant dense<0.000000e+00> : vector<128x32xf32>
    %48 = tpu.matmul %11, %47, %cst_30 {dimension_numbers = #tpu.dot_dimension_numbers<[1], [0], [0], [1], [0, 0, 1, 1], [], []>} : vector<128x128xbf16>, vector<128x32xbf16>, vector<128x32xf32> -> vector<128x32xf32>
    %cst_31 = arith.constant 1.000000e+00 : f32
    %49 = vector.broadcast %cst_31 : f32 to vector<128x32xf32>
    %50 = arith.mulf %49, %46 : vector<128x32xf32>
    %51 = arith.addf %48, %50 : vector<128x32xf32>
    %52 = arith.truncf %51 : vector<128x32xf32> to vector<128x32xbf16>
    %cst_32 = arith.constant dense<0.000000e+00> : vector<128x32xf32>
    %53 = tpu.matmul %52, %13, %cst_32 {dimension_numbers = #tpu.dot_dimension_numbers<[1], [0], [0], [1], [0, 0, 1, 1], [], []>} : vector<128x32xbf16>, vector<32x32xbf16>, vector<128x32xf32> -> vector<128x32xf32>
    %54 = arith.addf %53, %20 : vector<128x32xf32>
    %cst_33 = arith.constant 0.000000e+00 : f32
    %55 = vector.broadcast %cst_33 : f32 to vector<128x32xf32>
    %56 = arith.maximumf %54, %55 : vector<128x32xf32>
    %57 = arith.truncf %56 : vector<128x32xf32> to vector<128x32xbf16>
    %cst_34 = arith.constant dense<0.000000e+00> : vector<128x32xf32>
    %58 = tpu.matmul %57, %15, %cst_34 {dimension_numbers = #tpu.dot_dimension_numbers<[1], [0], [0], [1], [0, 0, 1, 1], [], []>} : vector<128x32xbf16>, vector<32x32xbf16>, vector<128x32xf32> -> vector<128x32xf32>
    %59 = arith.addf %58, %23 : vector<128x32xf32>
    %cst_35 = arith.constant 0.000000e+00 : f32
    %60 = vector.broadcast %cst_35 : f32 to vector<128x32xf32>
    %61 = arith.maximumf %59, %60 : vector<128x32xf32>
    %62 = arith.truncf %61 : vector<128x32xf32> to vector<128x32xbf16>
    %cst_36 = arith.constant dense<0.000000e+00> : vector<128x32xf32>
    %63 = tpu.matmul %62, %17, %cst_36 {dimension_numbers = #tpu.dot_dimension_numbers<[1], [0], [0], [1], [0, 0, 1, 1], [], []>} : vector<128x32xbf16>, vector<32x32xbf16>, vector<128x32xf32> -> vector<128x32xf32>
    %64 = arith.addf %63, %26 : vector<128x32xf32>
    %cst_37 = arith.constant 0.000000e+00 : f32
    %65 = vector.broadcast %cst_37 : f32 to vector<128x32xf32>
    %66 = arith.maximumf %64, %65 : vector<128x32xf32>
    %67 = arith.addf %66, %9 : vector<128x32xf32>
    %c4 = arith.constant 4 : index
    %c0_38 = arith.constant 0 : index
    %c0_39 = arith.constant 0 : index
    %68 = vector.load %arg4[%c4, %c0_38, %c0_39] : memref<7x32x32xbf16, #tpu.memory_space<vmem>>, vector<1x32x32xbf16>
    %69 = vector.shape_cast %68 : vector<1x32x32xbf16> to vector<32x32xbf16>
    %c5 = arith.constant 5 : index
    %c0_40 = arith.constant 0 : index
    %c0_41 = arith.constant 0 : index
    %70 = vector.load %arg4[%c5, %c0_40, %c0_41] : memref<7x32x32xbf16, #tpu.memory_space<vmem>>, vector<1x32x32xbf16>
    %71 = vector.shape_cast %70 : vector<1x32x32xbf16> to vector<32x32xbf16>
    %c6 = arith.constant 6 : index
    %c0_42 = arith.constant 0 : index
    %c0_43 = arith.constant 0 : index
    %72 = vector.load %arg4[%c6, %c0_42, %c0_43] : memref<7x32x32xbf16, #tpu.memory_space<vmem>>, vector<1x32x32xbf16>
    %73 = vector.shape_cast %72 : vector<1x32x32xbf16> to vector<32x32xbf16>
    %c4_44 = arith.constant 4 : index
    %c0_45 = arith.constant 0 : index
    %74 = vector.load %arg6[%c4_44, %c0_45] : memref<8x128xf32, #tpu.memory_space<vmem>>, vector<1x32xf32>
    %75 = vector.shape_cast %74 : vector<1x32xf32> to vector<1x32xf32>
    %76 = vector.broadcast %75 : vector<1x32xf32> to vector<128x32xf32>
    %c5_46 = arith.constant 5 : index
    %c0_47 = arith.constant 0 : index
    %77 = vector.load %arg6[%c5_46, %c0_47] : memref<8x128xf32, #tpu.memory_space<vmem>>, vector<1x32xf32>
    %78 = vector.shape_cast %77 : vector<1x32xf32> to vector<1x32xf32>
    %79 = vector.broadcast %78 : vector<1x32xf32> to vector<128x32xf32>
    %c6_48 = arith.constant 6 : index
    %c0_49 = arith.constant 0 : index
    %80 = vector.load %arg6[%c6_48, %c0_49] : memref<8x128xf32, #tpu.memory_space<vmem>>, vector<1x32xf32>
    %81 = vector.shape_cast %80 : vector<1x32xf32> to vector<1x32xf32>
    %82 = vector.broadcast %81 : vector<1x32xf32> to vector<128x32xf32>
    %83 = arith.truncf %67 : vector<128x32xf32> to vector<128x32xbf16>
    %cst_50 = arith.constant dense<0.000000e+00> : vector<128x32xf32>
    %84 = tpu.matmul %11, %83, %cst_50 {dimension_numbers = #tpu.dot_dimension_numbers<[1], [0], [0], [1], [0, 0, 1, 1], [], []>} : vector<128x128xbf16>, vector<128x32xbf16>, vector<128x32xf32> -> vector<128x32xf32>
    %cst_51 = arith.constant 1.000000e+00 : f32
    %85 = vector.broadcast %cst_51 : f32 to vector<128x32xf32>
    %86 = arith.mulf %85, %67 : vector<128x32xf32>
    %87 = arith.addf %84, %86 : vector<128x32xf32>
    %88 = arith.truncf %87 : vector<128x32xf32> to vector<128x32xbf16>
    %cst_52 = arith.constant dense<0.000000e+00> : vector<128x32xf32>
    %89 = tpu.matmul %88, %69, %cst_52 {dimension_numbers = #tpu.dot_dimension_numbers<[1], [0], [0], [1], [0, 0, 1, 1], [], []>} : vector<128x32xbf16>, vector<32x32xbf16>, vector<128x32xf32> -> vector<128x32xf32>
    %90 = arith.addf %89, %76 : vector<128x32xf32>
    %cst_53 = arith.constant 0.000000e+00 : f32
    %91 = vector.broadcast %cst_53 : f32 to vector<128x32xf32>
    %92 = arith.maximumf %90, %91 : vector<128x32xf32>
    %93 = arith.truncf %92 : vector<128x32xf32> to vector<128x32xbf16>
    %cst_54 = arith.constant dense<0.000000e+00> : vector<128x32xf32>
    %94 = tpu.matmul %93, %71, %cst_54 {dimension_numbers = #tpu.dot_dimension_numbers<[1], [0], [0], [1], [0, 0, 1, 1], [], []>} : vector<128x32xbf16>, vector<32x32xbf16>, vector<128x32xf32> -> vector<128x32xf32>
    %95 = arith.addf %94, %79 : vector<128x32xf32>
    %cst_55 = arith.constant 0.000000e+00 : f32
    %96 = vector.broadcast %cst_55 : f32 to vector<128x32xf32>
    %97 = arith.maximumf %95, %96 : vector<128x32xf32>
    %98 = arith.truncf %97 : vector<128x32xf32> to vector<128x32xbf16>
    %cst_56 = arith.constant dense<0.000000e+00> : vector<128x32xf32>
    %99 = tpu.matmul %98, %73, %cst_56 {dimension_numbers = #tpu.dot_dimension_numbers<[1], [0], [0], [1], [0, 0, 1, 1], [], []>} : vector<128x32xbf16>, vector<32x32xbf16>, vector<128x32xf32> -> vector<128x32xf32>
    %100 = arith.addf %99, %82 : vector<128x32xf32>
    %cst_57 = arith.constant 0.000000e+00 : f32
    %101 = vector.broadcast %cst_57 : f32 to vector<128x32xf32>
    %102 = arith.maximumf %100, %101 : vector<128x32xf32>
    %103 = arith.truncf %102 : vector<128x32xf32> to vector<128x32xbf16>
    %cst_58 = arith.constant dense<0.000000e+00> : vector<128x32xf32>
    %104 = tpu.matmul %11, %103, %cst_58 {dimension_numbers = #tpu.dot_dimension_numbers<[1], [0], [0], [1], [0, 0, 1, 1], [], []>} : vector<128x128xbf16>, vector<128x32xbf16>, vector<128x32xf32> -> vector<128x32xf32>
    %cst_59 = arith.constant 1.000000e+00 : f32
    %105 = vector.broadcast %cst_59 : f32 to vector<128x32xf32>
    %106 = arith.mulf %105, %102 : vector<128x32xf32>
    %107 = arith.addf %104, %106 : vector<128x32xf32>
    %108 = arith.truncf %107 : vector<128x32xf32> to vector<128x32xbf16>
    %cst_60 = arith.constant dense<0.000000e+00> : vector<128x32xf32>
    %109 = tpu.matmul %108, %69, %cst_60 {dimension_numbers = #tpu.dot_dimension_numbers<[1], [0], [0], [1], [0, 0, 1, 1], [], []>} : vector<128x32xbf16>, vector<32x32xbf16>, vector<128x32xf32> -> vector<128x32xf32>
    %110 = arith.addf %109, %76 : vector<128x32xf32>
    %cst_61 = arith.constant 0.000000e+00 : f32
    %111 = vector.broadcast %cst_61 : f32 to vector<128x32xf32>
    %112 = arith.maximumf %110, %111 : vector<128x32xf32>
    %113 = arith.truncf %112 : vector<128x32xf32> to vector<128x32xbf16>
    %cst_62 = arith.constant dense<0.000000e+00> : vector<128x32xf32>
    %114 = tpu.matmul %113, %71, %cst_62 {dimension_numbers = #tpu.dot_dimension_numbers<[1], [0], [0], [1], [0, 0, 1, 1], [], []>} : vector<128x32xbf16>, vector<32x32xbf16>, vector<128x32xf32> -> vector<128x32xf32>
    %115 = arith.addf %114, %79 : vector<128x32xf32>
    %cst_63 = arith.constant 0.000000e+00 : f32
    %116 = vector.broadcast %cst_63 : f32 to vector<128x32xf32>
    %117 = arith.maximumf %115, %116 : vector<128x32xf32>
    %118 = arith.truncf %117 : vector<128x32xf32> to vector<128x32xbf16>
    %cst_64 = arith.constant dense<0.000000e+00> : vector<128x32xf32>
    %119 = tpu.matmul %118, %73, %cst_64 {dimension_numbers = #tpu.dot_dimension_numbers<[1], [0], [0], [1], [0, 0, 1, 1], [], []>} : vector<128x32xbf16>, vector<32x32xbf16>, vector<128x32xf32> -> vector<128x32xf32>
    %120 = arith.addf %119, %82 : vector<128x32xf32>
    %cst_65 = arith.constant 0.000000e+00 : f32
    %121 = vector.broadcast %cst_65 : f32 to vector<128x32xf32>
    %122 = arith.maximumf %120, %121 : vector<128x32xf32>
    %123 = arith.addf %122, %67 : vector<128x32xf32>
    %c0_66 = arith.constant 0 : index
    %c0_67 = arith.constant 0 : index
    %c0_68 = arith.constant 0 : index
    %124 = vector.load %arg3[%c0_66, %c0_67, %c0_68] : memref<1x8x128xbf16, #tpu.memory_space<vmem>>, vector<1x8x128xbf16>
    %125 = vector.shape_cast %124 : vector<1x8x128xbf16> to vector<8x128xbf16>
    %126 = arith.truncf %123 : vector<128x32xf32> to vector<128x32xbf16>
    %cst_69 = arith.constant dense<0.000000e+00> : vector<8x32xf32>
    %127 = tpu.matmul %125, %126, %cst_69 {dimension_numbers = #tpu.dot_dimension_numbers<[1], [0], [0], [1], [0, 0, 1, 1], [], []>} : vector<8x128xbf16>, vector<128x32xbf16>, vector<8x32xf32> -> vector<8x32xf32>
    %128 = arith.truncf %127 : vector<8x32xf32> to vector<8x32xbf16>
    %c0_70 = arith.constant 0 : index
    %c0_71 = arith.constant 0 : index
    %129 = vector.load %arg5[%c0_70, %c0_71] : memref<32x128xbf16, #tpu.memory_space<vmem>>, vector<32x128xbf16>
    %cst_72 = arith.constant dense<0.000000e+00> : vector<8x128xf32>
    %130 = tpu.matmul %128, %129, %cst_72 {dimension_numbers = #tpu.dot_dimension_numbers<[1], [0], [0], [1], [0, 0, 1, 1], [], []>} : vector<8x32xbf16>, vector<32x128xbf16>, vector<8x128xf32> -> vector<8x128xf32>
    %c7 = arith.constant 7 : index
    %c0_73 = arith.constant 0 : index
    %131 = vector.load %arg6[%c7, %c0_73] : memref<8x128xf32, #tpu.memory_space<vmem>>, vector<1x128xf32>
    %132 = vector.broadcast %131 : vector<1x128xf32> to vector<8x128xf32>
    %133 = arith.addf %130, %132 : vector<8x128xf32>
    %c0_74 = arith.constant 0 : index
    %c0_75 = arith.constant 0 : index
    %134 = vector.load %arg7[%c0_74, %c0_75] : memref<8x128xf32, #tpu.memory_space<vmem>>, vector<8x128xf32>
    tpu.vector_store %arg7[%c0_74, %c0_75], %133 {strides = array<i32>} : memref<8x128xf32, #tpu.memory_space<vmem>>, vector<8x128xf32>,
    return
  }
  func.func @transform_0(%arg0: i32) -> (i32, i32) {
    %c0_i32 = arith.constant 0 : i32
    %c0_i32_0 = arith.constant 0 : i32
    return %arg0, %c0_i32 : i32, i32
  }
  func.func @transform_1(%arg0: i32) -> (i32, i32, i32) {
    %c0_i32 = arith.constant 0 : i32
    %c0_i32_0 = arith.constant 0 : i32
    %c0_i32_1 = arith.constant 0 : i32
    return %arg0, %c0_i32, %c0_i32_0 : i32, i32, i32
  }
  func.func @transform_2(%arg0: i32) -> (i32, i32, i32) {
    %c0_i32 = arith.constant 0 : i32
    %c0_i32_0 = arith.constant 0 : i32
    %c0_i32_1 = arith.constant 0 : i32
    return %arg0, %c0_i32, %c0_i32_0 : i32, i32, i32
  }
  func.func @transform_3(%arg0: i32) -> (i32, i32, i32) {
    %c0_i32 = arith.constant 0 : i32
    %c0_i32_0 = arith.constant 0 : i32
    %c0_i32_1 = arith.constant 0 : i32
    %c0_i32_2 = arith.constant 0 : i32
    return %c0_i32, %c0_i32_0, %c0_i32_1 : i32, i32, i32
  }
  func.func @transform_4(%arg0: i32) -> (i32, i32) {
    %c0_i32 = arith.constant 0 : i32
    %c0_i32_0 = arith.constant 0 : i32
    %c0_i32_1 = arith.constant 0 : i32
    return %c0_i32, %c0_i32_0 : i32, i32
  }
  func.func @transform_5(%arg0: i32) -> (i32, i32) {
    %c0_i32 = arith.constant 0 : i32
    %c0_i32_0 = arith.constant 0 : i32
    %c0_i32_1 = arith.constant 0 : i32
    return %c0_i32, %c0_i32_0 : i32, i32
  }
  func.func @transform_6(%arg0: i32) -> (i32, i32) {
    %c0_i32 = arith.constant 0 : i32
    %c0_i32_0 = arith.constant 0 : i32
    return %arg0, %c0_i32 : i32, i32
  }
}

</mosaic_0001>

<llo_original>
// kernel: tpu_custom_call.1
$region0: #{tpu_custom_call.1}
  #allocation0 [shape = 'u32[]', space=smem, size = 0x4, offset = 0x4, fixed_abs, tag = 'smem constant byte address 0x4 - core index']
  #allocation1 [shape = 'u32[144,128]{1,0:T(1,128)}', space=vmem, size = 0x12000, scoped, tag = 'internal scratch']
  %s0 = inlined_call_operand.vmem [shape: bf16[256,32], index: 0, kind: input, shape index: {}]
  %s1 = inlined_call_operand.vmem [shape: bf16[2,128,128], index: 1, kind: input, shape index: {}]
  %s2 = inlined_call_operand.vmem [shape: bf16[2,8,128], index: 2, kind: input, shape index: {}]
  %s3 = inlined_call_operand.hbm [shape: bf16[7,32,32], index: 3, kind: input, shape index: {}]
  %s4 = inlined_call_operand.vmem [shape: bf16[32,128], index: 4, kind: input, shape index: {}]
  %s5 = inlined_call_operand.vmem [shape: f32[8,128], index: 5, kind: input, shape index: {}]
  %s6 = inlined_call_operand.hbm [shape: f32[16,128], index: 6, kind: output, shape index: {}]
  %s7 = sld [smem:[#allocation0]]
  $region61: #{tpu_custom_call.1} parent=0
    _
  %s9 = ssub.s32 1, %s7
  %s10 = scalar_select 0, %s9, %s7
  $region1: #{tpu_custom_call.1} parent=0
    #allocation2 [shape = 'u8[57344]{0}', space=vmem, size = 0xe000, scoped, tag = 'input window, operand 3, single buffered']
    #allocation3 [shape = 's32[2]{0}', space=sflag, size = 0x8, scoped, tag = 'scoped memory for tpu_custom_call.1']
    #allocation4 [shape = 's32[2]{0}', space=sflag, size = 0x8, scoped, tag = 'scoped memory for tpu_custom_call.1']
    #allocation5 [shape = 'u8[8192]{0}', space=vmem, size = 0x2000, scoped, tag = 'output window, operand 0']
    %11 = vsyncpa [#allocation3], 0
    %12 = vsyncpa [#allocation4], 0
    %s13 = scalar_lea.sflag [#allocation4], 1
    %14 = vsyncpa %s13, 0
    loop: start=0, step=1, limit=4
    $region2: #{tpu_custom_call.1} parent=1 // loop_pre_header
      _
    $region3: #{tpu_custom_call.1} parent=1 // loop_header
      %s16 = sphi 0, %s20
      %p17 = scmp.ge.s32.totalorder %s16, 4
      %s26 = sphi 0, %s28
      %s29 = sphi 0, %s26
      %s30 = sphi 0, %s29
      %s46 = sphi 0, %s30
      %s52 = sphi 0, %s54
      %s55 = sphi 0, %s52
      %s56 = sphi 0, %s55
      %s72 = sphi 0, %s56
      %s78 = sphi 0, %s80
      %s81 = sphi 0, %s78
      %s82 = sphi 0, %s81
      %s98 = sphi 0, %s82
      %s102 = sphi 0, %s102
      %s104 = sphi 0, %s102
      %s105 = sphi 0, %s104
      %s119 = sphi 0, %s105
      %s123 = sphi 0, %s123
      %s125 = sphi 0, %s123
      %s126 = sphi 0, %s125
      %s140 = sphi 0, %s126
      %s144 = sphi 0, %s144
      %s146 = sphi 0, %s144
      %s147 = sphi 0, %s146
      %s161 = sphi 0, %s147
      %s167 = sphi 0, %s169
      %s170 = sphi 0, %s167
      %s171 = sphi 0, %s170
      %s187 = sphi 0, %s171
    $region4: #{tpu_custom_call.1} parent=1 // loop_header_branch
      %19 = sbr.rel (%p17) target = $region8
    $region5: #{tpu_custom_call.1} parent=1 // loop_body
      %s21 = ssub.s32 %s16, 1
      %s22 = ssub.s32 %s16, 2
      %s23 = sadd.s32 %s16, 1
      %s24 = ssub.s32 %s16, %s23
      %p25 = scmp.eq.s32.totalorder %s24, 0
      %s27 = sadd.s32 %s26, 1
      %s28 = scalar_select %p25, %s26, %s27
      %p31 = pneg %p25
      %p32 = scmp.eq.s32.totalorder %s16, 1
      %p33 = por %p31, %p32
      %p34 = scmp.ne.s32.totalorder %s26, %s29
      %p35 = scmp.eq.s32.totalorder %s16, 0
      %p36 = por %p34, %p35
      %p37 = scmp.ne.s32.totalorder %s26, %s29
      %p38 = scmp.eq.s32.totalorder %s21, 1
      %p39 = por %p37, %p38
      %p40 = scmp.ne.s32.totalorder %s29, %s30
      %p41 = scmp.eq.s32.totalorder %s21, 0
      %p42 = por %p40, %p41
      %p43 = scmp.ne.s32.totalorder %s29, %s30
      %p44 = scmp.eq.s32.totalorder %s22, 1
      %p45 = por %p43, %p44
      %p47 = scmp.ne.s32.totalorder %s30, %s46
      %p48 = scmp.eq.s32.totalorder %s22, 0
      %p49 = por %p47, %p48
      %s50 = ssub.s32 %s16, %s23
      %p51 = scmp.eq.s32.totalorder %s50, 0
      %s53 = sadd.s32 %s52, 1
      %s54 = scalar_select %p51, %s52, %s53
      %p57 = pneg %p51
      %p58 = scmp.eq.s32.totalorder %s16, 1
      %p59 = por %p57, %p58
      %p60 = scmp.ne.s32.totalorder %s52, %s55
      %p61 = scmp.eq.s32.totalorder %s16, 0
      %p62 = por %p60, %p61
      %p63 = scmp.ne.s32.totalorder %s52, %s55
      %p64 = scmp.eq.s32.totalorder %s21, 1
      %p65 = por %p63, %p64
      %p66 = scmp.ne.s32.totalorder %s55, %s56
      %p67 = scmp.eq.s32.totalorder %s21, 0
      %p68 = por %p66, %p67
      %p69 = scmp.ne.s32.totalorder %s55, %s56
      %p70 = scmp.eq.s32.totalorder %s22, 1
      %p71 = por %p69, %p70
      %p73 = scmp.ne.s32.totalorder %s56, %s72
      %p74 = scmp.eq.s32.totalorder %s22, 0
      %p75 = por %p73, %p74
      %s76 = ssub.s32 %s16, %s23
      %p77 = scmp.eq.s32.totalorder %s76, 0
      %s79 = sadd.s32 %s78, 1
      %s80 = scalar_select %p77, %s78, %s79
      %p83 = pneg %p77
      %p84 = scmp.eq.s32.totalorder %s16, 1
      %p85 = por %p83, %p84
      %p86 = scmp.ne.s32.totalorder %s78, %s81
      %p87 = scmp.eq.s32.totalorder %s16, 0
      %p88 = por %p86, %p87
      %p89 = scmp.ne.s32.totalorder %s78, %s81
      %p90 = scmp.eq.s32.totalorder %s21, 1
      %p91 = por %p89, %p90
      %p92 = scmp.ne.s32.totalorder %s81, %s82
      %p93 = scmp.eq.s32.totalorder %s21, 0
      %p94 = por %p92, %p93
      %p95 = scmp.ne.s32.totalorder %s81, %s82
      %p96 = scmp.eq.s32.totalorder %s22, 1
      %p97 = por %p95, %p96
      %p99 = scmp.ne.s32.totalorder %s82, %s98
      %p100 = scmp.eq.s32.totalorder %s22, 0
      %p101 = por %p99, %p100
      %s103 = sadd.s32 %s102, 1
      %p106 = scmp.eq.s32.totalorder %s16, 1
      %p107 = scmp.ne.s32.totalorder %s102, %s104
      %p108 = scmp.eq.s32.totalorder %s16, 0
      %p109 = por %p107, %p108
      %p110 = scmp.ne.s32.totalorder %s102, %s104
      %p111 = scmp.eq.s32.totalorder %s21, 1
      %p112 = por %p110, %p111
      %p113 = scmp.ne.s32.totalorder %s104, %s105
      %p114 = scmp.eq.s32.totalorder %s21, 0
      %p115 = por %p113, %p114
      %p116 = scmp.ne.s32.totalorder %s104, %s105
      %p117 = scmp.eq.s32.totalorder %s22, 1
      %p118 = por %p116, %p117
      %p120 = scmp.ne.s32.totalorder %s105, %s119
      %p121 = scmp.eq.s32.totalorder %s22, 0
      %p122 = por %p120, %p121
      %s124 = sadd.s32 %s123, 1
      %p127 = scmp.eq.s32.totalorder %s16, 1
      %p128 = scmp.ne.s32.totalorder %s123, %s125
      %p129 = scmp.eq.s32.totalorder %s16, 0
      %p130 = por %p128, %p129
      %p131 = scmp.ne.s32.totalorder %s123, %s125
      %p132 = scmp.eq.s32.totalorder %s21, 1
      %p133 = por %p131, %p132
      %p134 = scmp.ne.s32.totalorder %s125, %s126
      %p135 = scmp.eq.s32.totalorder %s21, 0
      %p136 = por %p134, %p135
      %p137 = scmp.ne.s32.totalorder %s125, %s126
      %p138 = scmp.eq.s32.totalorder %s22, 1
      %p139 = por %p137, %p138
      %p141 = scmp.ne.s32.totalorder %s126, %s140
      %p142 = scmp.eq.s32.totalorder %s22, 0
      %p143 = por %p141, %p142
      %s145 = sadd.s32 %s144, 1
      %p148 = scmp.eq.s32.totalorder %s16, 1
      %p149 = scmp.ne.s32.totalorder %s144, %s146
      %p150 = scmp.eq.s32.totalorder %s16, 0
      %p151 = por %p149, %p150
      %p152 = scmp.ne.s32.totalorder %s144, %s146
      %p153 = scmp.eq.s32.totalorder %s21, 1
      %p154 = por %p152, %p153
      %p155 = scmp.ne.s32.totalorder %s146, %s147
      %p156 = scmp.eq.s32.totalorder %s21, 0
      %p157 = por %p155, %p156
      %p158 = scmp.ne.s32.totalorder %s146, %s147
      %p159 = scmp.eq.s32.totalorder %s22, 1
      %p160 = por %p158, %p159
      %p162 = scmp.ne.s32.totalorder %s147, %s161
      %p163 = scmp.eq.s32.totalorder %s22, 0
      %p164 = por %p162, %p163
      %s165 = ssub.s32 %s16, %s23
      %p166 = scmp.eq.s32.totalorder %s165, 0
      %s168 = sadd.s32 %s167, 1
      %s169 = scalar_select %p166, %s167, %s168
      %p172 = pneg %p166
      %p173 = scmp.eq.s32.totalorder %s16, 1
      %p174 = por %p172, %p173
      %p175 = scmp.ne.s32.totalorder %s167, %s170
      %p176 = scmp.eq.s32.totalorder %s16, 0
      %p177 = por %p175, %p176
      %p178 = scmp.ne.s32.totalorder %s167, %s170
      %p179 = scmp.eq.s32.totalorder %s21, 1
      %p180 = por %p178, %p179
      %p181 = scmp.ne.s32.totalorder %s170, %s171
      %p182 = scmp.eq.s32.totalorder %s21, 0
      %p183 = por %p181, %p182
      %p184 = scmp.ne.s32.totalorder %s170, %s171
      %p185 = scmp.eq.s32.totalorder %s22, 1
      %p186 = por %p184, %p185
      %p188 = scmp.ne.s32.totalorder %s171, %s187
      %p189 = scmp.eq.s32.totalorder %s22, 0
      %p190 = por %p188, %p189
      %p191 = scmp.le.s32.totalorder 1, %s16
      %p192 = scmp.lt.s32.totalorder %s16, 3
      %p193 = pnand %p191, %p192
      %p194 = pneg %p193
      // Predicated region
      $region9: #{tpu_custom_call.1} parent=5 // pred_check
        _
      $region10: #{tpu_custom_call.1} parent=5 // pred_check_branch
        %196 = sbr.rel (%p193) target = $region12
      $region11: #{tpu_custom_call.1} parent=5 // pred_region
        %s197 = ssub.s32 %s16, 1
        // Predicated region
        $region13: #{tpu_custom_call.1} parent=11 // pred_check
          %p198 = pneg %p115
        $region14: #{tpu_custom_call.1} parent=11 // pred_check_branch
          %200 = sbr.rel (%p198) target = $region16
        $region15: #{tpu_custom_call.1} parent=11 // pred_region
          %s202 = ssub.s32 1792, 1792
          %203 = vsyncadd [#allocation3], %s202
          %s204 = sshll.u32 [#allocation2], 4
          %s205 = int_to_ptr.vmem [resolvable:$true] %s204
          %210 = dma.hbm_to_vmem [thread:$0]  %s3, 1792, %s205, [#allocation3], 64, 64, 4
        $region16: #{tpu_custom_call.1} parent=11 // pred_fallthru
          _
        // Predicated region
        $region17: #{tpu_custom_call.1} parent=11 // pred_check
          %p211 = pneg %p136
        $region18: #{tpu_custom_call.1} parent=11 // pred_check_branch
          %213 = sbr.rel (%p211) target = $region20
        $region19: #{tpu_custom_call.1} parent=11 // pred_region
          _
        $region20: #{tpu_custom_call.1} parent=11 // pred_fallthru
          _
        // Predicated region
        $region21: #{tpu_custom_call.1} parent=11 // pred_check
          %p214 = pneg %p157
        $region22: #{tpu_custom_call.1} parent=11 // pred_check_branch
          %216 = sbr.rel (%p214) target = $region24
        $region23: #{tpu_custom_call.1} parent=11 // pred_region
          _
        $region24: #{tpu_custom_call.1} parent=11 // pred_fallthru
          _
      $region12: #{tpu_custom_call.1} parent=5 // pred_fallthru
        _
      %p217 = scmp.lt.s32.totalorder %s16, 2
      // Predicated region
      $region25: #{tpu_custom_call.1} parent=5 // pred_check
        %p218 = pneg %p217
      $region26: #{tpu_custom_call.1} parent=5 // pred_check_branch
        %220 = sbr.rel (%p218) target = $region28
      $region27: #{tpu_custom_call.1} parent=5 // pred_region
        // Predicated region
        $region29: #{tpu_custom_call.1} parent=27 // pred_check
          %p221 = pneg %p36
        $region30: #{tpu_custom_call.1} parent=27 // pred_check_branch
          %223 = sbr.rel (%p221) target = $region32
        $region31: #{tpu_custom_call.1} parent=27 // pred_region
          %s224 = smul.u32 16, %s16
          %p225 = scmp.lt.s32.totalorder %s224, 31
          %s226 = scalar_select %p225, %s224, 31
          %s227 = smul.addr %s226, 4
          %s228 = scalar_lea.vmem %s0, %s227
          %s229 = smul.u32 16, %s16
        $region32: #{tpu_custom_call.1} parent=27 // pred_fallthru
          _
        // Predicated region
        $region33: #{tpu_custom_call.1} parent=27 // pred_check
          %p230 = pneg %p62
        $region34: #{tpu_custom_call.1} parent=27 // pred_check_branch
          %232 = sbr.rel (%p230) target = $region36
        $region35: #{tpu_custom_call.1} parent=27 // pred_region
          %p233 = scmp.lt.s32.totalorder %s16, 1
          %s234 = scalar_select %p233, %s16, 1
          %s235 = smul.addr %s234, 16
          %s236 = smul.addr %s235, 4
          %s237 = scalar_lea.vmem %s1, %s236
        $region36: #{tpu_custom_call.1} parent=27 // pred_fallthru
          _
        // Predicated region
        $region37: #{tpu_custom_call.1} parent=27 // pred_check
          %p238 = pneg %p88
        $region38: #{tpu_custom_call.1} parent=27 // pred_check_branch
          %240 = sbr.rel (%p238) target = $region40
        $region39: #{tpu_custom_call.1} parent=27 // pred_region
          %p241 = scmp.lt.s32.totalorder %s16, 1
          %s242 = scalar_select %p241, %s16, 1
          %s243 = smul.addr %s242, 4
          %s244 = scalar_lea.vmem %s2, %s243
        $region40: #{tpu_custom_call.1} parent=27 // pred_fallthru
          _
      $region28: #{tpu_custom_call.1} parent=5 // pred_fallthru
        _
      %p245 = scmp.le.s32.totalorder 1, %s16
      %p246 = scmp.lt.s32.totalorder %s16, 3
      %p247 = pnand %p245, %p246
      %p248 = pneg %p247
      // Predicated region
      $region41: #{tpu_custom_call.1} parent=5 // pred_check
        _
      $region42: #{tpu_custom_call.1} parent=5 // pred_check_branch
        %250 = sbr.rel (%p247) target = $region44
      $region43: #{tpu_custom_call.1} parent=5 // pred_region
        %s251 = ssub.s32 %s16, 1
        // Predicated region
        $region45: #{tpu_custom_call.1} parent=43 // pred_check
          %p252 = pneg %p115
        $region46: #{tpu_custom_call.1} parent=43 // pred_check_branch
          %254 = sbr.rel (%p252) target = $region48
        $region47: #{tpu_custom_call.1} parent=43 // pred_region
          %255 = dma.done [#allocation3], 1792
        $region48: #{tpu_custom_call.1} parent=43 // pred_fallthru
          _
        %s256 = smul.u32 16, %s21
        %p257 = scmp.lt.s32.totalorder %s256, 31
        %s258 = scalar_select %p257, %s256, 31
        %s259 = smul.addr %s258, 4
        %s260 = scalar_lea.vmem %s0, %s259
        %p261 = pneg %p42
        %p262 = pneg %p39
        %p263 = scmp.lt.s32.totalorder %s21, 1
        %s264 = scalar_select %p263, %s21, 1
        %s265 = smul.addr %s264, 16
        %s266 = smul.addr %s265, 4
        %s267 = scalar_lea.vmem %s1, %s266
        %p268 = pneg %p68
        %p269 = pneg %p65
        %p270 = scmp.lt.s32.totalorder %s21, 1
        %s271 = scalar_select %p270, %s21, 1
        %s272 = smul.addr %s271, 4
        %s273 = scalar_lea.vmem %s2, %s272
        %p274 = pneg %p94
        %p275 = pneg %p91
        %p276 = pneg %p115
        %p277 = pneg %p112
        %p278 = pneg %p136
        %p279 = pneg %p133
        %p280 = pneg %p157
        %p281 = pneg %p154
        %p282 = pneg %p183
        %p283 = pneg %p180
        %s284 = sand.u32 %s170, 1
        %s285 = scalar_lea.sflag [#allocation4], %s284
        %s286 = sand.u32 %s170, 1
        %s287 = smul.addr %s286, 8
        %s288 = scalar_lea.vmem [#allocation5], %s287
        %s289 = smul.u32 16, %s21
        %p290 = scmp.lt.s32.totalorder %s289, 31
        %s291 = scalar_select %p290, %s289, 31
        %s292 = smul.addr %s291, 4
        %s293 = scalar_lea.vmem %s0, %s292
        %s294 = smul.u32 16, %s21
        %p295 = scmp.lt.s32.totalorder %s21, 1
        %s296 = scalar_select %p295, %s21, 1
        %s297 = smul.addr %s296, 16
        %s298 = smul.addr %s297, 4
        %s299 = scalar_lea.vmem %s1, %s298
        %p300 = scmp.lt.s32.totalorder %s21, 1
        %s301 = scalar_select %p300, %s21, 1
        %s302 = smul.addr %s301, 4
        %s303 = scalar_lea.vmem %s2, %s302
        %v305 = vld [vmem:[%s5] sm:$0x1]
        %v306 = vlaneseq
        %v307 = vshrl.u32 %v306, 7
        %v308 = vsub.s32 0, %v307
        %v309 = vrot.slane %v305, %v308
        %v310 = vld [vmem:[%s293] sm:$0xf]
        %v311 = vld [vmem:[%s293 + $0x4] sm:$0xf]
        %v312 = vld [vmem:[%s293 + $0x8] sm:$0xf]
        %v313 = vld [vmem:[%s293 + $0xc] sm:$0xf]
        %v314 = vld [vmem:[%s293 + $0x10] sm:$0xf]
        %v315 = vld [vmem:[%s293 + $0x14] sm:$0xf]
        %v316 = vld [vmem:[%s293 + $0x18] sm:$0xf]
        %v317 = vld [vmem:[%s293 + $0x1c] sm:$0xf]
        %v318 = vld [vmem:[%s293 + $0x20] sm:$0xf]
        %v319 = vld [vmem:[%s293 + $0x24] sm:$0xf]
        %v320 = vld [vmem:[%s293 + $0x28] sm:$0xf]
        %v321 = vld [vmem:[%s293 + $0x2c] sm:$0xf]
        %v322 = vld [vmem:[%s293 + $0x30] sm:$0xf]
        %v323 = vld [vmem:[%s293 + $0x34] sm:$0xf]
        %v324 = vld [vmem:[%s293 + $0x38] sm:$0xf]
        %v325 = vld [vmem:[%s293 + $0x3c] sm:$0xf]
        %v326 = vld [vmem:[#allocation2] sm:$0xf]
        %v327 = vld [vmem:[#allocation2 + $0x4] sm:$0xf]
        %v328 = vld [vmem:[#allocation2 + $0x8] sm:$0xf]
        %v329 = vld [vmem:[#allocation2 + $0xc] sm:$0xf]
        %v346 = vunpack.c.l.b16 %v310
        %v347 = vunpack.c.l.b16 %v311
        %v348 = vunpack.c.l.b16 %v312
        %v349 = vunpack.c.l.b16 %v313
        %v350 = vunpack.c.l.b16 %v314
        %v351 = vunpack.c.l.b16 %v315
        %v352 = vunpack.c.l.b16 %v316
        %v353 = vunpack.c.l.b16 %v317
        %v354 = vunpack.c.l.b16 %v318
        %v355 = vunpack.c.l.b16 %v319
        %v356 = vunpack.c.l.b16 %v320
        %v357 = vunpack.c.l.b16 %v321
        %v358 = vunpack.c.l.b16 %v322
        %v359 = vunpack.c.l.b16 %v323
        %v360 = vunpack.c.l.b16 %v324
        %v361 = vunpack.c.l.b16 %v325
        %v362 = vpack.c.b16 %v347, %v346
        %v363 = vpack.c.b16 %v349, %v348
        %v364 = vpack.c.b16 %v351, %v350
        %v365 = vpack.c.b16 %v353, %v352
        %v366 = vpack.c.b16 %v355, %v354
        %v367 = vpack.c.b16 %v357, %v356
        %v368 = vpack.c.b16 %v359, %v358
        %v369 = vpack.c.b16 %v361, %v360
        %v374 = vunpack.c.l.b16 %v326
        %v375 = vunpack.c.l.b16 %v327
        %v376 = vunpack.c.l.b16 %v328
        %v377 = vunpack.c.l.b16 %v329
        %v378 = vpack.c.b16 %v375, %v374
        %v379 = vpack.c.b16 %v377, %v376
        %vm382 = vcmask 261120
        %v384 = vsel %vm382, %v362, 0
        %v387 = vsel %vm382, %v363, 0
        %v390 = vsel %vm382, %v364, 0
        %v393 = vsel %vm382, %v365, 0
        %v396 = vsel %vm382, %v366, 0
        %v399 = vsel %vm382, %v367, 0
        %v402 = vsel %vm382, %v368, 0
        %v405 = vsel %vm382, %v369, 0
        %407 = vmatprep.subr.bf16.mxu0 0
        %408 = vmatpush1.bf16.msra.mxu0 %v378
        %409 = vmatprep.subr.bf16.mxu0 0
        %410 = vmatpush1.bf16.msra.mxu0 %v379
        %411 = vmatprep.subr.bf16.mxu0 0
        %412 = vmatpush1.bf16.msra.mxu0 0
        %413 = vmatprep.subr.bf16.mxu0 0
        %414 = vmatpush1.bf16.msra.mxu0 0
        %415 = vmatprep.subr.bf16.mxu0 0
        %416 = vmatpush1.bf16.msra.mxu0 0
        %417 = vmatprep.subr.bf16.mxu0 0
        %418 = vmatpush1.bf16.msra.mxu0 0
        %419 = vmatprep.subr.bf16.mxu0 0
        %420 = vmatpush1.bf16.msra.mxu0 0
        %421 = vmatprep.subr.bf16.mxu0 0
        %422 = vmatpush1.bf16.msra.mxu0 0
        %423 = vmatprep.subr.bf16.mxu0 0
        %424 = vmatpush1.bf16.msra.mxu0 0
        %425 = vmatprep.subr.bf16.mxu0 0
        %426 = vmatpush1.bf16.msra.mxu0 0
        %427 = vmatprep.subr.bf16.mxu0 0
        %428 = vmatpush1.bf16.msra.mxu0 0
        %429 = vmatprep.subr.bf16.mxu0 0
        %430 = vmatpush1.bf16.msra.mxu0 0
        %431 = vmatprep.subr.bf16.mxu0 0
        %432 = vmatpush1.bf16.msra.mxu0 0
        %433 = vmatprep.subr.bf16.mxu0 0
        %434 = vmatpush1.bf16.msra.mxu0 0
        %435 = vmatprep.subr.bf16.mxu0 0
        %436 = vmatpush1.bf16.msra.mxu0 0
        %437 = vmatprep.subr.bf16.mxu0 0
        %438 = vmatpush1.bf16.msra.mxu0 0
        %439 = vmatprep.mubr.bf16.mxu0 0
        %440 = vmatmul.mubr.bf16.gmra.mrb[0].mxu0 %v384
        %v441 = vpop.f32.mrb[0].mxu0
        %v442 = vadd.f32 %v309, %v441
        %v443 = vpop.f32.mrb[0].mxu0
        %v444 = vpop.f32.mrb[0].mxu0
        %v445 = vadd.f32 %v309, %v444
        %v446 = vpop.f32.mrb[0].mxu0
        %447 = vmatprep.mubr.bf16.mxu0 0
        %448 = vmatmul.mubr.bf16.gmra.mrb[0].mxu0 %v387
        %v449 = vpop.f32.mrb[0].mxu0
        %v450 = vadd.f32 %v309, %v449
        %v451 = vpop.f32.mrb[0].mxu0
        %v452 = vpop.f32.mrb[0].mxu0
        %v453 = vadd.f32 %v309, %v452
        %v454 = vpop.f32.mrb[0].mxu0
        %455 = vmatprep.mubr.bf16.mxu0 0
        %456 = vmatmul.mubr.bf16.gmra.mrb[0].mxu0 %v390
        %v457 = vpop.f32.mrb[0].mxu0
        %v458 = vadd.f32 %v309, %v457
        %v459 = vpop.f32.mrb[0].mxu0
        %v460 = vpop.f32.mrb[0].mxu0
        %v461 = vadd.f32 %v309, %v460
        %v462 = vpop.f32.mrb[0].mxu0
        %463 = vmatprep.mubr.bf16.mxu0 0
        %464 = vmatmul.mubr.bf16.gmra.mrb[0].mxu0 %v393
        %v465 = vpop.f32.mrb[0].mxu0
        %v466 = vadd.f32 %v309, %v465
        %v467 = vpop.f32.mrb[0].mxu0
        %v468 = vpop.f32.mrb[0].mxu0
        %v469 = vadd.f32 %v309, %v468
        %v470 = vpop.f32.mrb[0].mxu0
        %471 = vmatprep.mubr.bf16.mxu0 0
        %472 = vmatmul.mubr.bf16.gmra.mrb[0].mxu0 %v396
        %v473 = vpop.f32.mrb[0].mxu0
        %v474 = vadd.f32 %v309, %v473
        %v475 = vpop.f32.mrb[0].mxu0
        %v476 = vpop.f32.mrb[0].mxu0
        %v477 = vadd.f32 %v309, %v476
        %v478 = vpop.f32.mrb[0].mxu0
        %479 = vmatprep.mubr.bf16.mxu0 0
        %480 = vmatmul.mubr.bf16.gmra.mrb[0].mxu0 %v399
        %v481 = vpop.f32.mrb[0].mxu0
        %v482 = vadd.f32 %v309, %v481
        %v483 = vpop.f32.mrb[0].mxu0
        %v484 = vpop.f32.mrb[0].mxu0
        %v485 = vadd.f32 %v309, %v484
        %v486 = vpop.f32.mrb[0].mxu0
        %487 = vmatprep.mubr.bf16.mxu0 0
        %488 = vmatmul.mubr.bf16.gmra.mrb[0].mxu0 %v402
        %v489 = vpop.f32.mrb[0].mxu0
        %v490 = vadd.f32 %v309, %v489
        %v491 = vpop.f32.mrb[0].mxu0
        %v492 = vpop.f32.mrb[0].mxu0
        %v493 = vadd.f32 %v309, %v492
        %v494 = vpop.f32.mrb[0].mxu0
        %495 = vmatprep.mubr.bf16.mxu0 0
        %496 = vmatmul.mubr.bf16.gmra.mrb[0].mxu0 %v405
        %v497 = vpop.f32.mrb[0].mxu0
        %v498 = vadd.f32 %v309, %v497
        %v499 = vpop.f32.mrb[0].mxu0
        %v500 = vpop.f32.mrb[0].mxu0
        %v501 = vadd.f32 %v309, %v500
        %v502 = vpop.f32.mrb[0].mxu0
        %503 = vdwg.mxu0
        %v504 = vmax.f32 %v442, 0.0
        %v505 = vmax.f32 %v445, 0.0
        %v506 = vmax.f32 %v450, 0.0
        %v507 = vmax.f32 %v453, 0.0
        %v508 = vmax.f32 %v458, 0.0
        %v509 = vmax.f32 %v461, 0.0
        %v510 = vmax.f32 %v466, 0.0
        %v511 = vmax.f32 %v469, 0.0
        %v512 = vmax.f32 %v474, 0.0
        %v513 = vmax.f32 %v477, 0.0
        %v514 = vmax.f32 %v482, 0.0
        %v515 = vmax.f32 %v485, 0.0
        %v516 = vmax.f32 %v490, 0.0
        %v517 = vmax.f32 %v493, 0.0
        %v518 = vmax.f32 %v498, 0.0
        %v519 = vmax.f32 %v501, 0.0
        %v520 = vld [vmem:[%s299] sm:$0xf]
        %v521 = vld [vmem:[%s299 + $0x4] sm:$0xf]
        %v522 = vld [vmem:[%s299 + $0x8] sm:$0xf]
        %v523 = vld [vmem:[%s299 + $0xc] sm:$0xf]
        %v524 = vld [vmem:[%s299 + $0x10] sm:$0xf]
        %v525 = vld [vmem:[%s299 + $0x14] sm:$0xf]
        %v526 = vld [vmem:[%s299 + $0x18] sm:$0xf]
        %v527 = vld [vmem:[%s299 + $0x1c] sm:$0xf]
        %v528 = vld [vmem:[%s299 + $0x20] sm:$0xf]
        %v529 = vld [vmem:[%s299 + $0x24] sm:$0xf]
        %v530 = vld [vmem:[%s299 + $0x28] sm:$0xf]
        %v531 = vld [vmem:[%s299 + $0x2c] sm:$0xf]
        %v532 = vld [vmem:[%s299 + $0x30] sm:$0xf]
        %v533 = vld [vmem:[%s299 + $0x34] sm:$0xf]
        %v534 = vld [vmem:[%s299 + $0x38] sm:$0xf]
        %v535 = vld [vmem:[%s299 + $0x3c] sm:$0xf]
        %s536 = scalar_lea.vmem [#allocation2], 16
        %v537 = vld [vmem:[%s536] sm:$0xf]
        %v538 = vld [vmem:[%s536 + $0x4] sm:$0xf]
        %v539 = vld [vmem:[%s536 + $0x8] sm:$0xf]
        %v540 = vld [vmem:[%s536 + $0xc] sm:$0xf]
        %s541 = scalar_lea.vmem [#allocation2], 32
        %v542 = vld [vmem:[%s541] sm:$0xf]
        %v543 = vld [vmem:[%s541 + $0x4] sm:$0xf]
        %v544 = vld [vmem:[%s541 + $0x8] sm:$0xf]
        %v545 = vld [vmem:[%s541 + $0xc] sm:$0xf]
        %s546 = scalar_lea.vmem [#allocation2], 48
        %v547 = vld [vmem:[%s546] sm:$0xf]
        %v548 = vld [vmem:[%s546 + $0x4] sm:$0xf]
        %v549 = vld [vmem:[%s546 + $0x8] sm:$0xf]
        %v550 = vld [vmem:[%s546 + $0xc] sm:$0xf]
        %v551 = vld [vmem:[%s5 + $0x1] sm:$0x1]
        %v552 = vlaneseq
        %v553 = vshrl.u32 %v552, 7
        %v554 = vsub.s32 0, %v553
        %v555 = vrot.slane %v551, %v554
        %v556 = vld [vmem:[%s5 + $0x2] sm:$0x1]
        %v557 = vlaneseq
        %v558 = vshrl.u32 %v557, 7
        %v559 = vsub.s32 0, %v558
        %v560 = vrot.slane %v556, %v559
        %v561 = vld [vmem:[%s5 + $0x3] sm:$0x1]
        %v562 = vlaneseq
        %v563 = vshrl.u32 %v562, 7
        %v564 = vsub.s32 0, %v563
        %v565 = vrot.slane %v561, %v564
        %v566 = vpack.c.bf16 %v505, %v504
        %v567 = vpack.c.bf16 %v507, %v506
        %v568 = vpack.c.bf16 %v509, %v508
        %v569 = vpack.c.bf16 %v511, %v510
        %v570 = vpack.c.bf16 %v513, %v512
        %v571 = vpack.c.bf16 %v515, %v514
        %v572 = vpack.c.bf16 %v517, %v516
        %v573 = vpack.c.bf16 %v519, %v518
        %v590 = vunpack.c.l.b16 %v520
        %v591 = vunpack.c.l.b16 %v521
        %v592 = vunpack.c.l.b16 %v522
        %v593 = vunpack.c.l.b16 %v523
        %v594 = vunpack.c.l.b16 %v524
        %v595 = vunpack.c.l.b16 %v525
        %v596 = vunpack.c.l.b16 %v526
        %v597 = vunpack.c.l.b16 %v527
        %v598 = vunpack.c.l.b16 %v528
        %v599 = vunpack.c.l.b16 %v529
        %v600 = vunpack.c.l.b16 %v530
        %v601 = vunpack.c.l.b16 %v531
        %v602 = vunpack.c.l.b16 %v532
        %v603 = vunpack.c.l.b16 %v533
        %v604 = vunpack.c.l.b16 %v534
        %v605 = vunpack.c.l.b16 %v535
        %v606 = vpack.c.b16 %v591, %v590
        %v607 = vpack.c.b16 %v593, %v592
        %v608 = vpack.c.b16 %v595, %v594
        %v609 = vpack.c.b16 %v597, %v596
        %v610 = vpack.c.b16 %v599, %v598
        %v611 = vpack.c.b16 %v601, %v600
        %v612 = vpack.c.b16 %v603, %v602
        %v613 = vpack.c.b16 %v605, %v604
        %622 = vmatprep.subr.bf16.mxu0 0
        %623 = vmatpush1.bf16.msra.mxu0 %v566
        %624 = vmatprep.subr.bf16.mxu0 0
        %625 = vmatpush1.bf16.msra.mxu0 %v567
        %626 = vmatprep.subr.bf16.mxu0 0
        %627 = vmatpush1.bf16.msra.mxu0 %v568
        %628 = vmatprep.subr.bf16.mxu0 0
        %629 = vmatpush1.bf16.msra.mxu0 %v569
        %630 = vmatprep.subr.bf16.mxu0 0
        %631 = vmatpush1.bf16.msra.mxu0 %v570
        %632 = vmatprep.subr.bf16.mxu0 0
        %633 = vmatpush1.bf16.msra.mxu0 %v571
        %634 = vmatprep.subr.bf16.mxu0 0
        %635 = vmatpush1.bf16.msra.mxu0 %v572
        %636 = vmatprep.subr.bf16.mxu0 0
        %637 = vmatpush1.bf16.msra.mxu0 %v573
        %638 = vmatprep.subr.bf16.mxu0 0
        %639 = vmatpush1.bf16.msra.mxu0 0
        %640 = vmatprep.subr.bf16.mxu0 0
        %641 = vmatpush1.bf16.msra.mxu0 0
        %642 = vmatprep.subr.bf16.mxu0 0
        %643 = vmatpush1.bf16.msra.mxu0 0
        %644 = vmatprep.subr.bf16.mxu0 0
        %645 = vmatpush1.bf16.msra.mxu0 0
        %646 = vmatprep.subr.bf16.mxu0 0
        %647 = vmatpush1.bf16.msra.mxu0 0
        %648 = vmatprep.subr.bf16.mxu0 0
        %649 = vmatpush1.bf16.msra.mxu0 0
        %650 = vmatprep.subr.bf16.mxu0 0
        %651 = vmatpush1.bf16.msra.mxu0 0
        %652 = vmatprep.subr.bf16.mxu0 0
        %653 = vmatpush1.bf16.msra.mxu0 0
        %654 = vmatprep.mubr.bf16.mxu0 0
        %655 = vmatmul.mubr.bf16.gmra.mrb[0].mxu0 %v606
        %v656 = vpop.f32.mrb[0].mxu0
        %v657 = vadd.f32 %v504, %v656
        %v658 = vpop.f32.mrb[0].mxu0
        %v659 = vpop.f32.mrb[0].mxu0
        %v660 = vadd.f32 %v505, %v659
        %v661 = vpop.f32.mrb[0].mxu0
        %662 = vmatprep.mubr.bf16.mxu0 0
        %663 = vmatmul.mubr.bf16.gmra.mrb[0].mxu0 %v607
        %v664 = vpop.f32.mrb[0].mxu0
        %v665 = vadd.f32 %v506, %v664
        %v666 = vpop.f32.mrb[0].mxu0
        %v667 = vpop.f32.mrb[0].mxu0
        %v668 = vadd.f32 %v507, %v667
        %v669 = vpop.f32.mrb[0].mxu0
        %670 = vmatprep.mubr.bf16.mxu0 0
        %671 = vmatmul.mubr.bf16.gmra.mrb[0].mxu0 %v608
        %v672 = vpop.f32.mrb[0].mxu0
        %v673 = vadd.f32 %v508, %v672
        %v674 = vpop.f32.mrb[0].mxu0
        %v675 = vpop.f32.mrb[0].mxu0
        %v676 = vadd.f32 %v509, %v675
        %v677 = vpop.f32.mrb[0].mxu0
        %678 = vmatprep.mubr.bf16.mxu0 0
        %679 = vmatmul.mubr.bf16.gmra.mrb[0].mxu0 %v609
        %v680 = vpop.f32.mrb[0].mxu0
        %v681 = vadd.f32 %v510, %v680
        %v682 = vpop.f32.mrb[0].mxu0
        %v683 = vpop.f32.mrb[0].mxu0
        %v684 = vadd.f32 %v511, %v683
        %v685 = vpop.f32.mrb[0].mxu0
        %686 = vmatprep.mubr.bf16.mxu0 0
        %687 = vmatmul.mubr.bf16.gmra.mrb[0].mxu0 %v610
        %v688 = vpop.f32.mrb[0].mxu0
        %v689 = vadd.f32 %v512, %v688
        %v690 = vpop.f32.mrb[0].mxu0
        %v691 = vpop.f32.mrb[0].mxu0
        %v692 = vadd.f32 %v513, %v691
        %v693 = vpop.f32.mrb[0].mxu0
        %694 = vmatprep.mubr.bf16.mxu0 0
        %695 = vmatmul.mubr.bf16.gmra.mrb[0].mxu0 %v611
        %v696 = vpop.f32.mrb[0].mxu0
        %v697 = vadd.f32 %v514, %v696
        %v698 = vpop.f32.mrb[0].mxu0
        %v699 = vpop.f32.mrb[0].mxu0
        %v700 = vadd.f32 %v515, %v699
        %v701 = vpop.f32.mrb[0].mxu0
        %702 = vmatprep.mubr.bf16.mxu0 0
        %703 = vmatmul.mubr.bf16.gmra.mrb[0].mxu0 %v612
        %v704 = vpop.f32.mrb[0].mxu0
        %v705 = vadd.f32 %v516, %v704
        %v706 = vpop.f32.mrb[0].mxu0
        %v707 = vpop.f32.mrb[0].mxu0
        %v708 = vadd.f32 %v517, %v707
        %v709 = vpop.f32.mrb[0].mxu0
        %710 = vmatprep.mubr.bf16.mxu0 0
        %711 = vmatmul.mubr.bf16.gmra.mrb[0].mxu0 %v613
        %v712 = vpop.f32.mrb[0].mxu0
        %v713 = vadd.f32 %v518, %v712
        %v714 = vpop.f32.mrb[0].mxu0
        %v715 = vpop.f32.mrb[0].mxu0
        %v716 = vadd.f32 %v519, %v715
        %v717 = vpop.f32.mrb[0].mxu0
        %718 = vdwg.mxu0
        %v719 = vpack.c.bf16 %v660, %v657
        %v720 = vpack.c.bf16 %v668, %v665
        %v721 = vpack.c.bf16 %v676, %v673
        %v722 = vpack.c.bf16 %v684, %v681
        %v723 = vpack.c.bf16 %v692, %v689
        %v724 = vpack.c.bf16 %v700, %v697
        %v725 = vpack.c.bf16 %v708, %v705
        %v726 = vpack.c.bf16 %v716, %v713
        %v731 = vunpack.c.l.b16 %v537
        %v732 = vunpack.c.l.b16 %v538
        %v733 = vunpack.c.l.b16 %v539
        %v734 = vunpack.c.l.b16 %v540
        %v735 = vpack.c.b16 %v732, %v731
        %v736 = vpack.c.b16 %v734, %v733
        %v740 = vsel %vm382, %v719, 0
        %v743 = vsel %vm382, %v720, 0
        %v746 = vsel %vm382, %v721, 0
        %v749 = vsel %vm382, %v722, 0
        %v752 = vsel %vm382, %v723, 0
        %v755 = vsel %vm382, %v724, 0
        %v758 = vsel %vm382, %v725, 0
        %v761 = vsel %vm382, %v726, 0
        %763 = vmatprep.subr.bf16.mxu0 0
        %764 = vmatpush1.bf16.msra.mxu0 %v735
        %765 = vmatprep.subr.bf16.mxu0 0
        %766 = vmatpush1.bf16.msra.mxu0 %v736
        %767 = vmatprep.subr.bf16.mxu0 0
        %768 = vmatpush1.bf16.msra.mxu0 0
        %769 = vmatprep.subr.bf16.mxu0 0
        %770 = vmatpush1.bf16.msra.mxu0 0
        %771 = vmatprep.subr.bf16.mxu0 0
        %772 = vmatpush1.bf16.msra.mxu0 0
        %773 = vmatprep.subr.bf16.mxu0 0
        %774 = vmatpush1.bf16.msra.mxu0 0
        %775 = vmatprep.subr.bf16.mxu0 0
        %776 = vmatpush1.bf16.msra.mxu0 0
        %777 = vmatprep.subr.bf16.mxu0 0
        %778 = vmatpush1.bf16.msra.mxu0 0
        %779 = vmatprep.subr.bf16.mxu0 0
        %780 = vmatpush1.bf16.msra.mxu0 0
        %781 = vmatprep.subr.bf16.mxu0 0
        %782 = vmatpush1.bf16.msra.mxu0 0
        %783 = vmatprep.subr.bf16.mxu0 0
        %784 = vmatpush1.bf16.msra.mxu0 0
        %785 = vmatprep.subr.bf16.mxu0 0
        %786 = vmatpush1.bf16.msra.mxu0 0
        %787 = vmatprep.subr.bf16.mxu0 0
        %788 = vmatpush1.bf16.msra.mxu0 0
        %789 = vmatprep.subr.bf16.mxu0 0
        %790 = vmatpush1.bf16.msra.mxu0 0
        %791 = vmatprep.subr.bf16.mxu0 0
        %792 = vmatpush1.bf16.msra.mxu0 0
        %793 = vmatprep.subr.bf16.mxu0 0
        %794 = vmatpush1.bf16.msra.mxu0 0
        %795 = vmatprep.mubr.bf16.mxu0 0
        %796 = vmatmul.mubr.bf16.gmra.mrb[0].mxu0 %v740
        %v797 = vpop.f32.mrb[0].mxu0
        %v798 = vadd.f32 %v555, %v797
        %v799 = vpop.f32.mrb[0].mxu0
        %v800 = vpop.f32.mrb[0].mxu0
        %v801 = vadd.f32 %v555, %v800
        %v802 = vpop.f32.mrb[0].mxu0
        %803 = vmatprep.mubr.bf16.mxu0 0
        %804 = vmatmul.mubr.bf16.gmra.mrb[0].mxu0 %v743
        %v805 = vpop.f32.mrb[0].mxu0
        %v806 = vadd.f32 %v555, %v805
        %v807 = vpop.f32.mrb[0].mxu0
        %v808 = vpop.f32.mrb[0].mxu0
        %v809 = vadd.f32 %v555, %v808
        %v810 = vpop.f32.mrb[0].mxu0
        %811 = vmatprep.mubr.bf16.mxu0 0
        %812 = vmatmul.mubr.bf16.gmra.mrb[0].mxu0 %v746
        %v813 = vpop.f32.mrb[0].mxu0
        %v814 = vadd.f32 %v555, %v813
        %v815 = vpop.f32.mrb[0].mxu0
        %v816 = vpop.f32.mrb[0].mxu0
        %v817 = vadd.f32 %v555, %v816
        %v818 = vpop.f32.mrb[0].mxu0
        %819 = vmatprep.mubr.bf16.mxu0 0
        %820 = vmatmul.mubr.bf16.gmra.mrb[0].mxu0 %v749
        %v821 = vpop.f32.mrb[0].mxu0
        %v822 = vadd.f32 %v555, %v821
        %v823 = vpop.f32.mrb[0].mxu0
        %v824 = vpop.f32.mrb[0].mxu0
        %v825 = vadd.f32 %v555, %v824
        %v826 = vpop.f32.mrb[0].mxu0
        %827 = vmatprep.mubr.bf16.mxu0 0
        %828 = vmatmul.mubr.bf16.gmra.mrb[0].mxu0 %v752
        %v829 = vpop.f32.mrb[0].mxu0
        %v830 = vadd.f32 %v555, %v829
        %v831 = vpop.f32.mrb[0].mxu0
        %v832 = vpop.f32.mrb[0].mxu0
        %v833 = vadd.f32 %v555, %v832
        %v834 = vpop.f32.mrb[0].mxu0
        %835 = vmatprep.mubr.bf16.mxu0 0
        %836 = vmatmul.mubr.bf16.gmra.mrb[0].mxu0 %v755
        %v837 = vpop.f32.mrb[0].mxu0
        %v838 = vadd.f32 %v555, %v837
        %v839 = vpop.f32.mrb[0].mxu0
        %v840 = vpop.f32.mrb[0].mxu0
        %v841 = vadd.f32 %v555, %v840
        %v842 = vpop.f32.mrb[0].mxu0
        %843 = vmatprep.mubr.bf16.mxu0 0
        %844 = vmatmul.mubr.bf16.gmra.mrb[0].mxu0 %v758
        %v845 = vpop.f32.mrb[0].mxu0
        %v846 = vadd.f32 %v555, %v845
        %v847 = vpop.f32.mrb[0].mxu0
        %v848 = vpop.f32.mrb[0].mxu0
        %v849 = vadd.f32 %v555, %v848
        %v850 = vpop.f32.mrb[0].mxu0
        %851 = vmatprep.mubr.bf16.mxu0 0
        %852 = vmatmul.mubr.bf16.gmra.mrb[0].mxu0 %v761
        %v853 = vpop.f32.mrb[0].mxu0
        %v854 = vadd.f32 %v555, %v853
        %v855 = vpop.f32.mrb[0].mxu0
        %v856 = vpop.f32.mrb[0].mxu0
        %v857 = vadd.f32 %v555, %v856
        %v858 = vpop.f32.mrb[0].mxu0
        %859 = vdwg.mxu0
        %v860 = vmax.f32 %v798, 0.0
        %v861 = vmax.f32 %v801, 0.0
        %v862 = vmax.f32 %v806, 0.0
        %v863 = vmax.f32 %v809, 0.0
        %v864 = vmax.f32 %v814, 0.0
        %v865 = vmax.f32 %v817, 0.0
        %v866 = vmax.f32 %v822, 0.0
        %v867 = vmax.f32 %v825, 0.0
        %v868 = vmax.f32 %v830, 0.0
        %v869 = vmax.f32 %v833, 0.0
        %v870 = vmax.f32 %v838, 0.0
        %v871 = vmax.f32 %v841, 0.0
        %v872 = vmax.f32 %v846, 0.0
        %v873 = vmax.f32 %v849, 0.0
        %v874 = vmax.f32 %v854, 0.0
        %v875 = vmax.f32 %v857, 0.0
        %v876 = vpack.c.bf16 %v861, %v860
        %v877 = vpack.c.bf16 %v863, %v862
        %v878 = vpack.c.bf16 %v865, %v864
        %v879 = vpack.c.bf16 %v867, %v866
        %v880 = vpack.c.bf16 %v869, %v868
        %v881 = vpack.c.bf16 %v871, %v870
        %v882 = vpack.c.bf16 %v873, %v872
        %v883 = vpack.c.bf16 %v875, %v874
        %v888 = vunpack.c.l.b16 %v542
        %v889 = vunpack.c.l.b16 %v543
        %v890 = vunpack.c.l.b16 %v544
        %v891 = vunpack.c.l.b16 %v545
        %v892 = vpack.c.b16 %v889, %v888
        %v893 = vpack.c.b16 %v891, %v890
        %v897 = vsel %vm382, %v876, 0
        %v900 = vsel %vm382, %v877, 0
        %v903 = vsel %vm382, %v878, 0
        %v906 = vsel %vm382, %v879, 0
        %v909 = vsel %vm382, %v880, 0
        %v912 = vsel %vm382, %v881, 0
        %v915 = vsel %vm382, %v882, 0
        %v918 = vsel %vm382, %v883, 0
        %920 = vmatprep.subr.bf16.mxu0 0
        %921 = vmatpush1.bf16.msra.mxu0 %v892
        %922 = vmatprep.subr.bf16.mxu0 0
        %923 = vmatpush1.bf16.msra.mxu0 %v893
        %924 = vmatprep.subr.bf16.mxu0 0
        %925 = vmatpush1.bf16.msra.mxu0 0
        %926 = vmatprep.subr.bf16.mxu0 0
        %927 = vmatpush1.bf16.msra.mxu0 0
        %928 = vmatprep.subr.bf16.mxu0 0
        %929 = vmatpush1.bf16.msra.mxu0 0
        %930 = vmatprep.subr.bf16.mxu0 0
        %931 = vmatpush1.bf16.msra.mxu0 0
        %932 = vmatprep.subr.bf16.mxu0 0
        %933 = vmatpush1.bf16.msra.mxu0 0
        %934 = vmatprep.subr.bf16.mxu0 0
        %935 = vmatpush1.bf16.msra.mxu0 0
        %936 = vmatprep.subr.bf16.mxu0 0
        %937 = vmatpush1.bf16.msra.mxu0 0
        %938 = vmatprep.subr.bf16.mxu0 0
        %939 = vmatpush1.bf16.msra.mxu0 0
        %940 = vmatprep.subr.bf16.mxu0 0
        %941 = vmatpush1.bf16.msra.mxu0 0
        %942 = vmatprep.subr.bf16.mxu0 0
        %943 = vmatpush1.bf16.msra.mxu0 0
        %944 = vmatprep.subr.bf16.mxu0 0
        %945 = vmatpush1.bf16.msra.mxu0 0
        %946 = vmatprep.subr.bf16.mxu0 0
        %947 = vmatpush1.bf16.msra.mxu0 0
        %948 = vmatprep.subr.bf16.mxu0 0
        %949 = vmatpush1.bf16.msra.mxu0 0
        %950 = vmatprep.subr.bf16.mxu0 0
        %951 = vmatpush1.bf16.msra.mxu0 0
        %952 = vmatprep.mubr.bf16.mxu0 0
        %953 = vmatmul.mubr.bf16.gmra.mrb[0].mxu0 %v897
        %v954 = vpop.f32.mrb[0].mxu0
        %v955 = vadd.f32 %v560, %v954
        %v956 = vpop.f32.mrb[0].mxu0
        %v957 = vpop.f32.mrb[0].mxu0
        %v958 = vadd.f32 %v560, %v957
        %v959 = vpop.f32.mrb[0].mxu0
        %960 = vmatprep.mubr.bf16.mxu0 0
        %961 = vmatmul.mubr.bf16.gmra.mrb[0].mxu0 %v900
        %v962 = vpop.f32.mrb[0].mxu0
        %v963 = vadd.f32 %v560, %v962
        %v964 = vpop.f32.mrb[0].mxu0
        %v965 = vpop.f32.mrb[0].mxu0
        %v966 = vadd.f32 %v560, %v965
        %v967 = vpop.f32.mrb[0].mxu0
        %968 = vmatprep.mubr.bf16.mxu0 0
        %969 = vmatmul.mubr.bf16.gmra.mrb[0].mxu0 %v903
        %v970 = vpop.f32.mrb[0].mxu0
        %v971 = vadd.f32 %v560, %v970
        %v972 = vpop.f32.mrb[0].mxu0
        %v973 = vpop.f32.mrb[0].mxu0
        %v974 = vadd.f32 %v560, %v973
        %v975 = vpop.f32.mrb[0].mxu0
        %976 = vmatprep.mubr.bf16.mxu0 0
        %977 = vmatmul.mubr.bf16.gmra.mrb[0].mxu0 %v906
        %v978 = vpop.f32.mrb[0].mxu0
        %v979 = vadd.f32 %v560, %v978
        %v980 = vpop.f32.mrb[0].mxu0
        %v981 = vpop.f32.mrb[0].mxu0
        %v982 = vadd.f32 %v560, %v981
        %v983 = vpop.f32.mrb[0].mxu0
        %984 = vmatprep.mubr.bf16.mxu0 0
        %985 = vmatmul.mubr.bf16.gmra.mrb[0].mxu0 %v909
        %v986 = vpop.f32.mrb[0].mxu0
        %v987 = vadd.f32 %v560, %v986
        %v988 = vpop.f32.mrb[0].mxu0
        %v989 = vpop.f32.mrb[0].mxu0
        %v990 = vadd.f32 %v560, %v989
        %v991 = vpop.f32.mrb[0].mxu0
        %992 = vmatprep.mubr.bf16.mxu0 0
        %993 = vmatmul.mubr.bf16.gmra.mrb[0].mxu0 %v912
        %v994 = vpop.f32.mrb[0].mxu0
        %v995 = vadd.f32 %v560, %v994
        %v996 = vpop.f32.mrb[0].mxu0
        %v997 = vpop.f32.mrb[0].mxu0
        %v998 = vadd.f32 %v560, %v997
        %v999 = vpop.f32.mrb[0].mxu0
        %1000 = vmatprep.mubr.bf16.mxu0 0
        %1001 = vmatmul.mubr.bf16.gmra.mrb[0].mxu0 %v915
        %v1002 = vpop.f32.mrb[0].mxu0
        %v1003 = vadd.f32 %v560, %v1002
        %v1004 = vpop.f32.mrb[0].mxu0
        %v1005 = vpop.f32.mrb[0].mxu0
        %v1006 = vadd.f32 %v560, %v1005
        %v1007 = vpop.f32.mrb[0].mxu0
        %1008 = vmatprep.mubr.bf16.mxu0 0
        %1009 = vmatmul.mubr.bf16.gmra.mrb[0].mxu0 %v918
        %v1010 = vpop.f32.mrb[0].mxu0
        %v1011 = vadd.f32 %v560, %v1010
        %v1012 = vpop.f32.mrb[0].mxu0
        %v1013 = vpop.f32.mrb[0].mxu0
        %v1014 = vadd.f32 %v560, %v1013
        %v1015 = vpop.f32.mrb[0].mxu0
        %1016 = vdwg.mxu0
        %v1017 = vmax.f32 %v955, 0.0
        %v1018 = vmax.f32 %v958, 0.0
        %v1019 = vmax.f32 %v963, 0.0
        %v1020 = vmax.f32 %v966, 0.0
        %v1021 = vmax.f32 %v971, 0.0
        %v1022 = vmax.f32 %v974, 0.0
        %v1023 = vmax.f32 %v979, 0.0
        %v1024 = vmax.f32 %v982, 0.0
        %v1025 = vmax.f32 %v987, 0.0
        %v1026 = vmax.f32 %v990, 0.0
        %v1027 = vmax.f32 %v995, 0.0
        %v1028 = vmax.f32 %v998, 0.0
        %v1029 = vmax.f32 %v1003, 0.0
        %v1030 = vmax.f32 %v1006, 0.0
        %v1031 = vmax.f32 %v1011, 0.0
        %v1032 = vmax.f32 %v1014, 0.0
        %v1033 = vpack.c.bf16 %v1018, %v1017
        %v1034 = vpack.c.bf16 %v1020, %v1019
        %v1035 = vpack.c.bf16 %v1022, %v1021
        %v1036 = vpack.c.bf16 %v1024, %v1023
        %v1037 = vpack.c.bf16 %v1026, %v1025
        %v1038 = vpack.c.bf16 %v1028, %v1027
        %v1039 = vpack.c.bf16 %v1030, %v1029
        %v1040 = vpack.c.bf16 %v1032, %v1031
        %v1045 = vunpack.c.l.b16 %v547
        %v1046 = vunpack.c.l.b16 %v548
        %v1047 = vunpack.c.l.b16 %v549
        %v1048 = vunpack.c.l.b16 %v550
        %v1049 = vpack.c.b16 %v1046, %v1045
        %v1050 = vpack.c.b16 %v1048, %v1047
        %v1054 = vsel %vm382, %v1033, 0
        %v1057 = vsel %vm382, %v1034, 0
        %v1060 = vsel %vm382, %v1035, 0
        %v1063 = vsel %vm382, %v1036, 0
        %v1066 = vsel %vm382, %v1037, 0
        %v1069 = vsel %vm382, %v1038, 0
        %v1072 = vsel %vm382, %v1039, 0
        %v1075 = vsel %vm382, %v1040, 0
        %1077 = vmatprep.subr.bf16.mxu0 0
        %1078 = vmatpush1.bf16.msra.mxu0 %v1049
        %1079 = vmatprep.subr.bf16.mxu0 0
        %1080 = vmatpush1.bf16.msra.mxu0 %v1050
        %1081 = vmatprep.subr.bf16.mxu0 0
        %1082 = vmatpush1.bf16.msra.mxu0 0
        %1083 = vmatprep.subr.bf16.mxu0 0
        %1084 = vmatpush1.bf16.msra.mxu0 0
        %1085 = vmatprep.subr.bf16.mxu0 0
        %1086 = vmatpush1.bf16.msra.mxu0 0
        %1087 = vmatprep.subr.bf16.mxu0 0
        %1088 = vmatpush1.bf16.msra.mxu0 0
        %1089 = vmatprep.subr.bf16.mxu0 0
        %1090 = vmatpush1.bf16.msra.mxu0 0
        %1091 = vmatprep.subr.bf16.mxu0 0
        %1092 = vmatpush1.bf16.msra.mxu0 0
        %1093 = vmatprep.subr.bf16.mxu0 0
        %1094 = vmatpush1.bf16.msra.mxu0 0
        %1095 = vmatprep.subr.bf16.mxu0 0
        %1096 = vmatpush1.bf16.msra.mxu0 0
        %1097 = vmatprep.subr.bf16.mxu0 0
        %1098 = vmatpush1.bf16.msra.mxu0 0
        %1099 = vmatprep.subr.bf16.mxu0 0
        %1100 = vmatpush1.bf16.msra.mxu0 0
        %1101 = vmatprep.subr.bf16.mxu0 0
        %1102 = vmatpush1.bf16.msra.mxu0 0
        %1103 = vmatprep.subr.bf16.mxu0 0
        %1104 = vmatpush1.bf16.msra.mxu0 0
        %1105 = vmatprep.subr.bf16.mxu0 0
        %1106 = vmatpush1.bf16.msra.mxu0 0
        %1107 = vmatprep.subr.bf16.mxu0 0
        %1108 = vmatpush1.bf16.msra.mxu0 0
        %1109 = vmatprep.mubr.bf16.mxu0 0
        %1110 = vmatmul.mubr.bf16.gmra.mrb[0].mxu0 %v1054
        %v1111 = vpop.f32.mrb[0].mxu0
        %v1112 = vadd.f32 %v565, %v1111
        %v1113 = vpop.f32.mrb[0].mxu0
        %v1114 = vpop.f32.mrb[0].mxu0
        %v1115 = vadd.f32 %v565, %v1114
        %v1116 = vpop.f32.mrb[0].mxu0
        %1117 = vmatprep.mubr.bf16.mxu0 0
        %1118 = vmatmul.mubr.bf16.gmra.mrb[0].mxu0 %v1057
        %v1119 = vpop.f32.mrb[0].mxu0
        %v1120 = vadd.f32 %v565, %v1119
        %v1121 = vpop.f32.mrb[0].mxu0
        %v1122 = vpop.f32.mrb[0].mxu0
        %v1123 = vadd.f32 %v565, %v1122
        %v1124 = vpop.f32.mrb[0].mxu0
        %1125 = vmatprep.mubr.bf16.mxu0 0
        %1126 = vmatmul.mubr.bf16.gmra.mrb[0].mxu0 %v1060
        %v1127 = vpop.f32.mrb[0].mxu0
        %v1128 = vadd.f32 %v565, %v1127
        %v1129 = vpop.f32.mrb[0].mxu0
        %v1130 = vpop.f32.mrb[0].mxu0
        %v1131 = vadd.f32 %v565, %v1130
        %v1132 = vpop.f32.mrb[0].mxu0
        %1133 = vmatprep.mubr.bf16.mxu0 0
        %1134 = vmatmul.mubr.bf16.gmra.mrb[0].mxu0 %v1063
        %v1135 = vpop.f32.mrb[0].mxu0
        %v1136 = vadd.f32 %v565, %v1135
        %v1137 = vpop.f32.mrb[0].mxu0
        %v1138 = vpop.f32.mrb[0].mxu0
        %v1139 = vadd.f32 %v565, %v1138
        %v1140 = vpop.f32.mrb[0].mxu0
        %1141 = vmatprep.mubr.bf16.mxu0 0
        %1142 = vmatmul.mubr.bf16.gmra.mrb[0].mxu0 %v1066
        %v1143 = vpop.f32.mrb[0].mxu0
        %v1144 = vadd.f32 %v565, %v1143
        %v1145 = vpop.f32.mrb[0].mxu0
        %v1146 = vpop.f32.mrb[0].mxu0
        %v1147 = vadd.f32 %v565, %v1146
        %v1148 = vpop.f32.mrb[0].mxu0
        %1149 = vmatprep.mubr.bf16.mxu0 0
        %1150 = vmatmul.mubr.bf16.gmra.mrb[0].mxu0 %v1069
        %v1151 = vpop.f32.mrb[0].mxu0
        %v1152 = vadd.f32 %v565, %v1151
        %v1153 = vpop.f32.mrb[0].mxu0
        %v1154 = vpop.f32.mrb[0].mxu0
        %v1155 = vadd.f32 %v565, %v1154
        %v1156 = vpop.f32.mrb[0].mxu0
        %1157 = vmatprep.mubr.bf16.mxu0 0
        %1158 = vmatmul.mubr.bf16.gmra.mrb[0].mxu0 %v1072
        %v1159 = vpop.f32.mrb[0].mxu0
        %v1160 = vadd.f32 %v565, %v1159
        %v1161 = vpop.f32.mrb[0].mxu0
        %v1162 = vpop.f32.mrb[0].mxu0
        %v1163 = vadd.f32 %v565, %v1162
        %v1164 = vpop.f32.mrb[0].mxu0
        %1165 = vmatprep.mubr.bf16.mxu0 0
        %1166 = vmatmul.mubr.bf16.gmra.mrb[0].mxu0 %v1075
        %v1167 = vpop.f32.mrb[0].mxu0
        %v1168 = vadd.f32 %v565, %v1167
        %v1169 = vpop.f32.mrb[0].mxu0
        %v1170 = vpop.f32.mrb[0].mxu0
        %v1171 = vadd.f32 %v565, %v1170
        %v1172 = vpop.f32.mrb[0].mxu0
        %1173 = vdwg.mxu0
        %v1174 = vmax.f32 %v1112, 0.0
        %v1175 = vmax.f32 %v1115, 0.0
        %v1176 = vmax.f32 %v1120, 0.0
        %v1177 = vmax.f32 %v1123, 0.0
        %v1178 = vmax.f32 %v1128, 0.0
        %v1179 = vmax.f32 %v1131, 0.0
        %v1180 = vmax.f32 %v1136, 0.0
        %v1181 = vmax.f32 %v1139, 0.0
        %v1182 = vmax.f32 %v1144, 0.0
        %v1183 = vmax.f32 %v1147, 0.0
        %v1184 = vmax.f32 %v1152, 0.0
        %v1185 = vmax.f32 %v1155, 0.0
        %v1186 = vmax.f32 %v1160, 0.0
        %v1187 = vmax.f32 %v1163, 0.0
        %v1188 = vmax.f32 %v1168, 0.0
        %v1189 = vmax.f32 %v1171, 0.0
        %v1190 = vpack.c.bf16 %v1175, %v1174
        %v1191 = vpack.c.bf16 %v1177, %v1176
        %v1192 = vpack.c.bf16 %v1179, %v1178
        %v1193 = vpack.c.bf16 %v1181, %v1180
        %v1194 = vpack.c.bf16 %v1183, %v1182
        %v1195 = vpack.c.bf16 %v1185, %v1184
        %v1196 = vpack.c.bf16 %v1187, %v1186
        %v1197 = vpack.c.bf16 %v1189, %v1188
        %1198 = vmatprep.subr.bf16.mxu0 0
        %1199 = vmatpush1.bf16.msra.mxu0 %v1190
        %1200 = vmatprep.subr.bf16.mxu0 0
        %1201 = vmatpush1.bf16.msra.mxu0 %v1191
        %1202 = vmatprep.subr.bf16.mxu0 0
        %1203 = vmatpush1.bf16.msra.mxu0 %v1192
        %1204 = vmatprep.subr.bf16.mxu0 0
        %1205 = vmatpush1.bf16.msra.mxu0 %v1193
        %1206 = vmatprep.subr.bf16.mxu0 0
        %1207 = vmatpush1.bf16.msra.mxu0 %v1194
        %1208 = vmatprep.subr.bf16.mxu0 0
        %1209 = vmatpush1.bf16.msra.mxu0 %v1195
        %1210 = vmatprep.subr.bf16.mxu0 0
        %1211 = vmatpush1.bf16.msra.mxu0 %v1196
        %1212 = vmatprep.subr.bf16.mxu0 0
        %1213 = vmatpush1.bf16.msra.mxu0 %v1197
        %1214 = vmatprep.subr.bf16.mxu0 0
        %1215 = vmatpush1.bf16.msra.mxu0 0
        %1216 = vmatprep.subr.bf16.mxu0 0
        %1217 = vmatpush1.bf16.msra.mxu0 0
        %1218 = vmatprep.subr.bf16.mxu0 0
        %1219 = vmatpush1.bf16.msra.mxu0 0
        %1220 = vmatprep.subr.bf16.mxu0 0
        %1221 = vmatpush1.bf16.msra.mxu0 0
        %1222 = vmatprep.subr.bf16.mxu0 0
        %1223 = vmatpush1.bf16.msra.mxu0 0
        %1224 = vmatprep.subr.bf16.mxu0 0
        %1225 = vmatpush1.bf16.msra.mxu0 0
        %1226 = vmatprep.subr.bf16.mxu0 0
        %1227 = vmatpush1.bf16.msra.mxu0 0
        %1228 = vmatprep.subr.bf16.mxu0 0
        %1229 = vmatpush1.bf16.msra.mxu0 0
        %1230 = vmatprep.mubr.bf16.mxu0 0
        %1231 = vmatmul.mubr.bf16.gmra.mrb[0].mxu0 %v606
        %v1232 = vpop.f32.mrb[0].mxu0
        %v1233 = vadd.f32 %v1174, %v1232
        %v1234 = vpop.f32.mrb[0].mxu0
        %v1235 = vpop.f32.mrb[0].mxu0
        %v1236 = vadd.f32 %v1175, %v1235
        %v1237 = vpop.f32.mrb[0].mxu0
        %1238 = vmatprep.mubr.bf16.mxu0 0
        %1239 = vmatmul.mubr.bf16.gmra.mrb[0].mxu0 %v607
        %v1240 = vpop.f32.mrb[0].mxu0
        %v1241 = vadd.f32 %v1176, %v1240
        %v1242 = vpop.f32.mrb[0].mxu0
        %v1243 = vpop.f32.mrb[0].mxu0
        %v1244 = vadd.f32 %v1177, %v1243
        %v1245 = vpop.f32.mrb[0].mxu0
        %1246 = vmatprep.mubr.bf16.mxu0 0
        %1247 = vmatmul.mubr.bf16.gmra.mrb[0].mxu0 %v608
        %v1248 = vpop.f32.mrb[0].mxu0
        %v1249 = vadd.f32 %v1178, %v1248
        %v1250 = vpop.f32.mrb[0].mxu0
        %v1251 = vpop.f32.mrb[0].mxu0
        %v1252 = vadd.f32 %v1179, %v1251
        %v1253 = vpop.f32.mrb[0].mxu0
        %1254 = vmatprep.mubr.bf16.mxu0 0
        %1255 = vmatmul.mubr.bf16.gmra.mrb[0].mxu0 %v609
        %v1256 = vpop.f32.mrb[0].mxu0
        %v1257 = vadd.f32 %v1180, %v1256
        %v1258 = vpop.f32.mrb[0].mxu0
        %v1259 = vpop.f32.mrb[0].mxu0
        %v1260 = vadd.f32 %v1181, %v1259
        %v1261 = vpop.f32.mrb[0].mxu0
        %1262 = vmatprep.mubr.bf16.mxu0 0
        %1263 = vmatmul.mubr.bf16.gmra.mrb[0].mxu0 %v610
        %v1264 = vpop.f32.mrb[0].mxu0
        %v1265 = vadd.f32 %v1182, %v1264
        %v1266 = vpop.f32.mrb[0].mxu0
        %v1267 = vpop.f32.mrb[0].mxu0
        %v1268 = vadd.f32 %v1183, %v1267
        %v1269 = vpop.f32.mrb[0].mxu0
        %1270 = vmatprep.mubr.bf16.mxu0 0
        %1271 = vmatmul.mubr.bf16.gmra.mrb[0].mxu0 %v611
        %v1272 = vpop.f32.mrb[0].mxu0
        %v1273 = vadd.f32 %v1184, %v1272
        %v1274 = vpop.f32.mrb[0].mxu0
        %v1275 = vpop.f32.mrb[0].mxu0
        %v1276 = vadd.f32 %v1185, %v1275
        %v1277 = vpop.f32.mrb[0].mxu0
        %1278 = vmatprep.mubr.bf16.mxu0 0
        %1279 = vmatmul.mubr.bf16.gmra.mrb[0].mxu0 %v612
        %v1280 = vpop.f32.mrb[0].mxu0
        %v1281 = vadd.f32 %v1186, %v1280
        %v1282 = vpop.f32.mrb[0].mxu0
        %v1283 = vpop.f32.mrb[0].mxu0
        %v1284 = vadd.f32 %v1187, %v1283
        %v1285 = vpop.f32.mrb[0].mxu0
        %1286 = vmatprep.mubr.bf16.mxu0 0
        %1287 = vmatmul.mubr.bf16.gmra.mrb[0].mxu0 %v613
        %v1288 = vpop.f32.mrb[0].mxu0
        %v1289 = vadd.f32 %v1188, %v1288
        %v1290 = vpop.f32.mrb[0].mxu0
        %v1291 = vpop.f32.mrb[0].mxu0
        %v1292 = vadd.f32 %v1189, %v1291
        %v1293 = vpop.f32.mrb[0].mxu0
        %1294 = vdwg.mxu0
        %v1295 = vpack.c.bf16 %v1236, %v1233
        %v1296 = vpack.c.bf16 %v1244, %v1241
        %v1297 = vpack.c.bf16 %v1252, %v1249
        %v1298 = vpack.c.bf16 %v1260, %v1257
        %v1299 = vpack.c.bf16 %v1268, %v1265
        %v1300 = vpack.c.bf16 %v1276, %v1273
        %v1301 = vpack.c.bf16 %v1284, %v1281
        %v1302 = vpack.c.bf16 %v1292, %v1289
        %v1304 = vsel %vm382, %v1295, 0
        %v1307 = vsel %vm382, %v1296, 0
        %v1310 = vsel %vm382, %v1297, 0
        %v1313 = vsel %vm382, %v1298, 0
        %v1316 = vsel %vm382, %v1299, 0
        %v1319 = vsel %vm382, %v1300, 0
        %v1322 = vsel %vm382, %v1301, 0
        %v1325 = vsel %vm382, %v1302, 0
        %1327 = vmatprep.subr.bf16.mxu0 0
        %1328 = vmatpush1.bf16.msra.mxu0 %v735
        %1329 = vmatprep.subr.bf16.mxu0 0
        %1330 = vmatpush1.bf16.msra.mxu0 %v736
        %1331 = vmatprep.subr.bf16.mxu0 0
        %1332 = vmatpush1.bf16.msra.mxu0 0
        %1333 = vmatprep.subr.bf16.mxu0 0
        %1334 = vmatpush1.bf16.msra.mxu0 0
        %1335 = vmatprep.subr.bf16.mxu0 0
        %1336 = vmatpush1.bf16.msra.mxu0 0
        %1337 = vmatprep.subr.bf16.mxu0 0
        %1338 = vmatpush1.bf16.msra.mxu0 0
        %1339 = vmatprep.subr.bf16.mxu0 0
        %1340 = vmatpush1.bf16.msra.mxu0 0
        %1341 = vmatprep.subr.bf16.mxu0 0
        %1342 = vmatpush1.bf16.msra.mxu0 0
        %1343 = vmatprep.subr.bf16.mxu0 0
        %1344 = vmatpush1.bf16.msra.mxu0 0
        %1345 = vmatprep.subr.bf16.mxu0 0
        %1346 = vmatpush1.bf16.msra.mxu0 0
        %1347 = vmatprep.subr.bf16.mxu0 0
        %1348 = vmatpush1.bf16.msra.mxu0 0
        %1349 = vmatprep.subr.bf16.mxu0 0
        %1350 = vmatpush1.bf16.msra.mxu0 0
        %1351 = vmatprep.subr.bf16.mxu0 0
        %1352 = vmatpush1.bf16.msra.mxu0 0
        %1353 = vmatprep.subr.bf16.mxu0 0
        %1354 = vmatpush1.bf16.msra.mxu0 0
        %1355 = vmatprep.subr.bf16.mxu0 0
        %1356 = vmatpush1.bf16.msra.mxu0 0
        %1357 = vmatprep.subr.bf16.mxu0 0
        %1358 = vmatpush1.bf16.msra.mxu0 0
        %1359 = vmatprep.mubr.bf16.mxu0 0
        %1360 = vmatmul.mubr.bf16.gmra.mrb[0].mxu0 %v1304
        %v1361 = vpop.f32.mrb[0].mxu0
        %v1362 = vadd.f32 %v555, %v1361
        %v1363 = vpop.f32.mrb[0].mxu0
        %v1364 = vpop.f32.mrb[0].mxu0
        %v1365 = vadd.f32 %v555, %v1364
        %v1366 = vpop.f32.mrb[0].mxu0
        %1367 = vmatprep.mubr.bf16.mxu0 0
        %1368 = vmatmul.mubr.bf16.gmra.mrb[0].mxu0 %v1307
        %v1369 = vpop.f32.mrb[0].mxu0
        %v1370 = vadd.f32 %v555, %v1369
        %v1371 = vpop.f32.mrb[0].mxu0
        %v1372 = vpop.f32.mrb[0].mxu0
        %v1373 = vadd.f32 %v555, %v1372
        %v1374 = vpop.f32.mrb[0].mxu0
        %1375 = vmatprep.mubr.bf16.mxu0 0
        %1376 = vmatmul.mubr.bf16.gmra.mrb[0].mxu0 %v1310
        %v1377 = vpop.f32.mrb[0].mxu0
        %v1378 = vadd.f32 %v555, %v1377
        %v1379 = vpop.f32.mrb[0].mxu0
        %v1380 = vpop.f32.mrb[0].mxu0
        %v1381 = vadd.f32 %v555, %v1380
        %v1382 = vpop.f32.mrb[0].mxu0
        %1383 = vmatprep.mubr.bf16.mxu0 0
        %1384 = vmatmul.mubr.bf16.gmra.mrb[0].mxu0 %v1313
        %v1385 = vpop.f32.mrb[0].mxu0
        %v1386 = vadd.f32 %v555, %v1385
        %v1387 = vpop.f32.mrb[0].mxu0
        %v1388 = vpop.f32.mrb[0].mxu0
        %v1389 = vadd.f32 %v555, %v1388
        %v1390 = vpop.f32.mrb[0].mxu0
        %1391 = vmatprep.mubr.bf16.mxu0 0
        %1392 = vmatmul.mubr.bf16.gmra.mrb[0].mxu0 %v1316
        %v1393 = vpop.f32.mrb[0].mxu0
        %v1394 = vadd.f32 %v555, %v1393
        %v1395 = vpop.f32.mrb[0].mxu0
        %v1396 = vpop.f32.mrb[0].mxu0
        %v1397 = vadd.f32 %v555, %v1396
        %v1398 = vpop.f32.mrb[0].mxu0
        %1399 = vmatprep.mubr.bf16.mxu0 0
        %1400 = vmatmul.mubr.bf16.gmra.mrb[0].mxu0 %v1319
        %v1401 = vpop.f32.mrb[0].mxu0
        %v1402 = vadd.f32 %v555, %v1401
        %v1403 = vpop.f32.mrb[0].mxu0
        %v1404 = vpop.f32.mrb[0].mxu0
        %v1405 = vadd.f32 %v555, %v1404
        %v1406 = vpop.f32.mrb[0].mxu0
        %1407 = vmatprep.mubr.bf16.mxu0 0
        %1408 = vmatmul.mubr.bf16.gmra.mrb[0].mxu0 %v1322
        %v1409 = vpop.f32.mrb[0].mxu0
        %v1410 = vadd.f32 %v555, %v1409
        %v1411 = vpop.f32.mrb[0].mxu0
        %v1412 = vpop.f32.mrb[0].mxu0
        %v1413 = vadd.f32 %v555, %v1412
        %v1414 = vpop.f32.mrb[0].mxu0
        %1415 = vmatprep.mubr.bf16.mxu0 0
        %1416 = vmatmul.mubr.bf16.gmra.mrb[0].mxu0 %v1325
        %v1417 = vpop.f32.mrb[0].mxu0
        %v1418 = vadd.f32 %v555, %v1417
        %v1419 = vpop.f32.mrb[0].mxu0
        %v1420 = vpop.f32.mrb[0].mxu0
        %v1421 = vadd.f32 %v555, %v1420
        %v1422 = vpop.f32.mrb[0].mxu0
        %1423 = vdwg.mxu0
        %v1424 = vmax.f32 %v1362, 0.0
        %v1425 = vmax.f32 %v1365, 0.0
        %v1426 = vmax.f32 %v1370, 0.0
        %v1427 = vmax.f32 %v1373, 0.0
        %v1428 = vmax.f32 %v1378, 0.0
        %v1429 = vmax.f32 %v1381, 0.0
        %v1430 = vmax.f32 %v1386, 0.0
        %v1431 = vmax.f32 %v1389, 0.0
        %v1432 = vmax.f32 %v1394, 0.0
        %v1433 = vmax.f32 %v1397, 0.0
        %v1434 = vmax.f32 %v1402, 0.0
        %v1435 = vmax.f32 %v1405, 0.0
        %v1436 = vmax.f32 %v1410, 0.0
        %v1437 = vmax.f32 %v1413, 0.0
        %v1438 = vmax.f32 %v1418, 0.0
        %v1439 = vmax.f32 %v1421, 0.0
        %v1440 = vpack.c.bf16 %v1425, %v1424
        %v1441 = vpack.c.bf16 %v1427, %v1426
        %v1442 = vpack.c.bf16 %v1429, %v1428
        %v1443 = vpack.c.bf16 %v1431, %v1430
        %v1444 = vpack.c.bf16 %v1433, %v1432
        %v1445 = vpack.c.bf16 %v1435, %v1434
        %v1446 = vpack.c.bf16 %v1437, %v1436
        %v1447 = vpack.c.bf16 %v1439, %v1438
        %v1449 = vsel %vm382, %v1440, 0
        %v1452 = vsel %vm382, %v1441, 0
        %v1455 = vsel %vm382, %v1442, 0
        %v1458 = vsel %vm382, %v1443, 0
        %v1461 = vsel %vm382, %v1444, 0
        %v1464 = vsel %vm382, %v1445, 0
        %v1467 = vsel %vm382, %v1446, 0
        %v1470 = vsel %vm382, %v1447, 0
        %1472 = vmatprep.subr.bf16.mxu0 0
        %1473 = vmatpush1.bf16.msra.mxu0 %v892
        %1474 = vmatprep.subr.bf16.mxu0 0
        %1475 = vmatpush1.bf16.msra.mxu0 %v893
        %1476 = vmatprep.subr.bf16.mxu0 0
        %1477 = vmatpush1.bf16.msra.mxu0 0
        %1478 = vmatprep.subr.bf16.mxu0 0
        %1479 = vmatpush1.bf16.msra.mxu0 0
        %1480 = vmatprep.subr.bf16.mxu0 0
        %1481 = vmatpush1.bf16.msra.mxu0 0
        %1482 = vmatprep.subr.bf16.mxu0 0
        %1483 = vmatpush1.bf16.msra.mxu0 0
        %1484 = vmatprep.subr.bf16.mxu0 0
        %1485 = vmatpush1.bf16.msra.mxu0 0
        %1486 = vmatprep.subr.bf16.mxu0 0
        %1487 = vmatpush1.bf16.msra.mxu0 0
        %1488 = vmatprep.subr.bf16.mxu0 0
        %1489 = vmatpush1.bf16.msra.mxu0 0
        %1490 = vmatprep.subr.bf16.mxu0 0
        %1491 = vmatpush1.bf16.msra.mxu0 0
        %1492 = vmatprep.subr.bf16.mxu0 0
        %1493 = vmatpush1.bf16.msra.mxu0 0
        %1494 = vmatprep.subr.bf16.mxu0 0
        %1495 = vmatpush1.bf16.msra.mxu0 0
        %1496 = vmatprep.subr.bf16.mxu0 0
        %1497 = vmatpush1.bf16.msra.mxu0 0
        %1498 = vmatprep.subr.bf16.mxu0 0
        %1499 = vmatpush1.bf16.msra.mxu0 0
        %1500 = vmatprep.subr.bf16.mxu0 0
        %1501 = vmatpush1.bf16.msra.mxu0 0
        %1502 = vmatprep.subr.bf16.mxu0 0
        %1503 = vmatpush1.bf16.msra.mxu0 0
        %1504 = vmatprep.mubr.bf16.mxu0 0
        %1505 = vmatmul.mubr.bf16.gmra.mrb[0].mxu0 %v1449
        %v1506 = vpop.f32.mrb[0].mxu0
        %v1507 = vadd.f32 %v560, %v1506
        %v1508 = vpop.f32.mrb[0].mxu0
        %v1509 = vpop.f32.mrb[0].mxu0
        %v1510 = vadd.f32 %v560, %v1509
        %v1511 = vpop.f32.mrb[0].mxu0
        %1512 = vmatprep.mubr.bf16.mxu0 0
        %1513 = vmatmul.mubr.bf16.gmra.mrb[0].mxu0 %v1452
        %v1514 = vpop.f32.mrb[0].mxu0
        %v1515 = vadd.f32 %v560, %v1514
        %v1516 = vpop.f32.mrb[0].mxu0
        %v1517 = vpop.f32.mrb[0].mxu0
        %v1518 = vadd.f32 %v560, %v1517
        %v1519 = vpop.f32.mrb[0].mxu0
        %1520 = vmatprep.mubr.bf16.mxu0 0
        %1521 = vmatmul.mubr.bf16.gmra.mrb[0].mxu0 %v1455
        %v1522 = vpop.f32.mrb[0].mxu0
        %v1523 = vadd.f32 %v560, %v1522
        %v1524 = vpop.f32.mrb[0].mxu0
        %v1525 = vpop.f32.mrb[0].mxu0
        %v1526 = vadd.f32 %v560, %v1525
        %v1527 = vpop.f32.mrb[0].mxu0
        %1528 = vmatprep.mubr.bf16.mxu0 0
        %1529 = vmatmul.mubr.bf16.gmra.mrb[0].mxu0 %v1458
        %v1530 = vpop.f32.mrb[0].mxu0
        %v1531 = vadd.f32 %v560, %v1530
        %v1532 = vpop.f32.mrb[0].mxu0
        %v1533 = vpop.f32.mrb[0].mxu0
        %v1534 = vadd.f32 %v560, %v1533
        %v1535 = vpop.f32.mrb[0].mxu0
        %1536 = vmatprep.mubr.bf16.mxu0 0
        %1537 = vmatmul.mubr.bf16.gmra.mrb[0].mxu0 %v1461
        %v1538 = vpop.f32.mrb[0].mxu0
        %v1539 = vadd.f32 %v560, %v1538
        %v1540 = vpop.f32.mrb[0].mxu0
        %v1541 = vpop.f32.mrb[0].mxu0
        %v1542 = vadd.f32 %v560, %v1541
        %v1543 = vpop.f32.mrb[0].mxu0
        %1544 = vmatprep.mubr.bf16.mxu0 0
        %1545 = vmatmul.mubr.bf16.gmra.mrb[0].mxu0 %v1464
        %v1546 = vpop.f32.mrb[0].mxu0
        %v1547 = vadd.f32 %v560, %v1546
        %v1548 = vpop.f32.mrb[0].mxu0
        %v1549 = vpop.f32.mrb[0].mxu0
        %v1550 = vadd.f32 %v560, %v1549
        %v1551 = vpop.f32.mrb[0].mxu0
        %1552 = vmatprep.mubr.bf16.mxu0 0
        %1553 = vmatmul.mubr.bf16.gmra.mrb[0].mxu0 %v1467
        %v1554 = vpop.f32.mrb[0].mxu0
        %v1555 = vadd.f32 %v560, %v1554
        %v1556 = vpop.f32.mrb[0].mxu0
        %v1557 = vpop.f32.mrb[0].mxu0
        %v1558 = vadd.f32 %v560, %v1557
        %v1559 = vpop.f32.mrb[0].mxu0
        %1560 = vmatprep.mubr.bf16.mxu0 0
        %1561 = vmatmul.mubr.bf16.gmra.mrb[0].mxu0 %v1470
        %v1562 = vpop.f32.mrb[0].mxu0
        %v1563 = vadd.f32 %v560, %v1562
        %v1564 = vpop.f32.mrb[0].mxu0
        %v1565 = vpop.f32.mrb[0].mxu0
        %v1566 = vadd.f32 %v560, %v1565
        %v1567 = vpop.f32.mrb[0].mxu0
        %1568 = vdwg.mxu0
        %v1569 = vmax.f32 %v1507, 0.0
        %v1570 = vmax.f32 %v1510, 0.0
        %v1571 = vmax.f32 %v1515, 0.0
        %v1572 = vmax.f32 %v1518, 0.0
        %v1573 = vmax.f32 %v1523, 0.0
        %v1574 = vmax.f32 %v1526, 0.0
        %v1575 = vmax.f32 %v1531, 0.0
        %v1576 = vmax.f32 %v1534, 0.0
        %v1577 = vmax.f32 %v1539, 0.0
        %v1578 = vmax.f32 %v1542, 0.0
        %v1579 = vmax.f32 %v1547, 0.0
        %v1580 = vmax.f32 %v1550, 0.0
        %v1581 = vmax.f32 %v1555, 0.0
        %v1582 = vmax.f32 %v1558, 0.0
        %v1583 = vmax.f32 %v1563, 0.0
        %v1584 = vmax.f32 %v1566, 0.0
        %v1585 = vpack.c.bf16 %v1570, %v1569
        %v1586 = vpack.c.bf16 %v1572, %v1571
        %v1587 = vpack.c.bf16 %v1574, %v1573
        %v1588 = vpack.c.bf16 %v1576, %v1575
        %v1589 = vpack.c.bf16 %v1578, %v1577
        %v1590 = vpack.c.bf16 %v1580, %v1579
        %v1591 = vpack.c.bf16 %v1582, %v1581
        %v1592 = vpack.c.bf16 %v1584, %v1583
        %v1594 = vsel %vm382, %v1585, 0
        %v1597 = vsel %vm382, %v1586, 0
        %v1600 = vsel %vm382, %v1587, 0
        %v1603 = vsel %vm382, %v1588, 0
        %v1606 = vsel %vm382, %v1589, 0
        %v1609 = vsel %vm382, %v1590, 0
        %v1612 = vsel %vm382, %v1591, 0
        %v1615 = vsel %vm382, %v1592, 0
        %1617 = vmatprep.subr.bf16.mxu0 0
        %1618 = vmatpush1.bf16.msra.mxu0 %v1049
        %1619 = vmatprep.subr.bf16.mxu0 0
        %1620 = vmatpush1.bf16.msra.mxu0 %v1050
        %1621 = vmatprep.subr.bf16.mxu0 0
        %1622 = vmatpush1.bf16.msra.mxu0 0
        %1623 = vmatprep.subr.bf16.mxu0 0
        %1624 = vmatpush1.bf16.msra.mxu0 0
        %1625 = vmatprep.subr.bf16.mxu0 0
        %1626 = vmatpush1.bf16.msra.mxu0 0
        %1627 = vmatprep.subr.bf16.mxu0 0
        %1628 = vmatpush1.bf16.msra.mxu0 0
        %1629 = vmatprep.subr.bf16.mxu0 0
        %1630 = vmatpush1.bf16.msra.mxu0 0
        %1631 = vmatprep.subr.bf16.mxu0 0
        %1632 = vmatpush1.bf16.msra.mxu0 0
        %1633 = vmatprep.subr.bf16.mxu0 0
        %1634 = vmatpush1.bf16.msra.mxu0 0
        %1635 = vmatprep.subr.bf16.mxu0 0
        %1636 = vmatpush1.bf16.msra.mxu0 0
        %1637 = vmatprep.subr.bf16.mxu0 0
        %1638 = vmatpush1.bf16.msra.mxu0 0
        %1639 = vmatprep.subr.bf16.mxu0 0
        %1640 = vmatpush1.bf16.msra.mxu0 0
        %1641 = vmatprep.subr.bf16.mxu0 0
        %1642 = vmatpush1.bf16.msra.mxu0 0
        %1643 = vmatprep.subr.bf16.mxu0 0
        %1644 = vmatpush1.bf16.msra.mxu0 0
        %1645 = vmatprep.subr.bf16.mxu0 0
        %1646 = vmatpush1.bf16.msra.mxu0 0
        %1647 = vmatprep.subr.bf16.mxu0 0
        %1648 = vmatpush1.bf16.msra.mxu0 0
        %1649 = vmatprep.mubr.bf16.mxu0 0
        %1650 = vmatmul.mubr.bf16.gmra.mrb[0].mxu0 %v1594
        %v1651 = vpop.f32.mrb[0].mxu0
        %v1652 = vadd.f32 %v565, %v1651
        %v1653 = vpop.f32.mrb[0].mxu0
        %v1654 = vpop.f32.mrb[0].mxu0
        %v1655 = vadd.f32 %v565, %v1654
        %v1656 = vpop.f32.mrb[0].mxu0
        %1657 = vmatprep.mubr.bf16.mxu0 0
        %1658 = vmatmul.mubr.bf16.gmra.mrb[0].mxu0 %v1597
        %v1659 = vpop.f32.mrb[0].mxu0
        %v1660 = vadd.f32 %v565, %v1659
        %v1661 = vpop.f32.mrb[0].mxu0
        %v1662 = vpop.f32.mrb[0].mxu0
        %v1663 = vadd.f32 %v565, %v1662
        %v1664 = vpop.f32.mrb[0].mxu0
        %1665 = vmatprep.mubr.bf16.mxu0 0
        %1666 = vmatmul.mubr.bf16.gmra.mrb[0].mxu0 %v1600
        %v1667 = vpop.f32.mrb[0].mxu0
        %v1668 = vadd.f32 %v565, %v1667
        %v1669 = vpop.f32.mrb[0].mxu0
        %v1670 = vpop.f32.mrb[0].mxu0
        %v1671 = vadd.f32 %v565, %v1670
        %v1672 = vpop.f32.mrb[0].mxu0
        %1673 = vmatprep.mubr.bf16.mxu0 0
        %1674 = vmatmul.mubr.bf16.gmra.mrb[0].mxu0 %v1603
        %v1675 = vpop.f32.mrb[0].mxu0
        %v1676 = vadd.f32 %v565, %v1675
        %v1677 = vpop.f32.mrb[0].mxu0
        %v1678 = vpop.f32.mrb[0].mxu0
        %v1679 = vadd.f32 %v565, %v1678
        %v1680 = vpop.f32.mrb[0].mxu0
        %1681 = vmatprep.mubr.bf16.mxu0 0
        %1682 = vmatmul.mubr.bf16.gmra.mrb[0].mxu0 %v1606
        %v1683 = vpop.f32.mrb[0].mxu0
        %v1684 = vadd.f32 %v565, %v1683
        %v1685 = vpop.f32.mrb[0].mxu0
        %v1686 = vpop.f32.mrb[0].mxu0
        %v1687 = vadd.f32 %v565, %v1686
        %v1688 = vpop.f32.mrb[0].mxu0
        %1689 = vmatprep.mubr.bf16.mxu0 0
        %1690 = vmatmul.mubr.bf16.gmra.mrb[0].mxu0 %v1609
        %v1691 = vpop.f32.mrb[0].mxu0
        %v1692 = vadd.f32 %v565, %v1691
        %v1693 = vpop.f32.mrb[0].mxu0
        %v1694 = vpop.f32.mrb[0].mxu0
        %v1695 = vadd.f32 %v565, %v1694
        %v1696 = vpop.f32.mrb[0].mxu0
        %1697 = vmatprep.mubr.bf16.mxu0 0
        %1698 = vmatmul.mubr.bf16.gmra.mrb[0].mxu0 %v1612
        %v1699 = vpop.f32.mrb[0].mxu0
        %v1700 = vadd.f32 %v565, %v1699
        %v1701 = vpop.f32.mrb[0].mxu0
        %v1702 = vpop.f32.mrb[0].mxu0
        %v1703 = vadd.f32 %v565, %v1702
        %v1704 = vpop.f32.mrb[0].mxu0
        %1705 = vmatprep.mubr.bf16.mxu0 0
        %1706 = vmatmul.mubr.bf16.gmra.mrb[0].mxu0 %v1615
        %v1707 = vpop.f32.mrb[0].mxu0
        %v1708 = vadd.f32 %v565, %v1707
        %v1709 = vpop.f32.mrb[0].mxu0
        %v1710 = vpop.f32.mrb[0].mxu0
        %v1711 = vadd.f32 %v565, %v1710
        %v1712 = vpop.f32.mrb[0].mxu0
        %1713 = vdwg.mxu0
        %v1714 = vmax.f32 %v1652, 0.0
        %v1715 = vmax.f32 %v1655, 0.0
        %v1716 = vmax.f32 %v1660, 0.0
        %v1717 = vmax.f32 %v1663, 0.0
        %v1718 = vmax.f32 %v1668, 0.0
        %v1719 = vmax.f32 %v1671, 0.0
        %v1720 = vmax.f32 %v1676, 0.0
        %v1721 = vmax.f32 %v1679, 0.0
        %v1722 = vmax.f32 %v1684, 0.0
        %v1723 = vmax.f32 %v1687, 0.0
        %v1724 = vmax.f32 %v1692, 0.0
        %v1725 = vmax.f32 %v1695, 0.0
        %v1726 = vmax.f32 %v1700, 0.0
        %v1727 = vmax.f32 %v1703, 0.0
        %v1728 = vmax.f32 %v1708, 0.0
        %v1729 = vmax.f32 %v1711, 0.0
        %v1730 = vadd.f32 %v1714, %v504
        %v1731 = vadd.f32 %v1715, %v505
        %v1732 = vadd.f32 %v1716, %v506
        %v1733 = vadd.f32 %v1717, %v507
        %v1734 = vadd.f32 %v1718, %v508
        %v1735 = vadd.f32 %v1719, %v509
        %v1736 = vadd.f32 %v1720, %v510
        %v1737 = vadd.f32 %v1721, %v511
        %v1738 = vadd.f32 %v1722, %v512
        %v1739 = vadd.f32 %v1723, %v513
        %v1740 = vadd.f32 %v1724, %v514
        %v1741 = vadd.f32 %v1725, %v515
        %v1742 = vadd.f32 %v1726, %v516
        %v1743 = vadd.f32 %v1727, %v517
        %v1744 = vadd.f32 %v1728, %v518
        %v1745 = vadd.f32 %v1729, %v519
        %s1746 = scalar_lea.vmem [#allocation2], 64
        %v1747 = vld [vmem:[%s1746] sm:$0xf]
        %v1748 = vld [vmem:[%s1746 + $0x4] sm:$0xf]
        %v1749 = vld [vmem:[%s1746 + $0x8] sm:$0xf]
        %v1750 = vld [vmem:[%s1746 + $0xc] sm:$0xf]
        %s1751 = scalar_lea.vmem [#allocation2], 80
        %v1752 = vld [vmem:[%s1751] sm:$0xf]
        %v1753 = vld [vmem:[%s1751 + $0x4] sm:$0xf]
        %v1754 = vld [vmem:[%s1751 + $0x8] sm:$0xf]
        %v1755 = vld [vmem:[%s1751 + $0xc] sm:$0xf]
        %s1756 = scalar_lea.vmem [#allocation2], 96
        %v1757 = vld [vmem:[%s1756] sm:$0xf]
        %v1758 = vld [vmem:[%s1756 + $0x4] sm:$0xf]
        %v1759 = vld [vmem:[%s1756 + $0x8] sm:$0xf]
        %v1760 = vld [vmem:[%s1756 + $0xc] sm:$0xf]
        %v1761 = vld [vmem:[%s5 + $0x4] sm:$0x1]
        %v1762 = vlaneseq
        %v1763 = vshrl.u32 %v1762, 7
        %v1764 = vsub.s32 0, %v1763
        %v1765 = vrot.slane %v1761, %v1764
        %v1766 = vld [vmem:[%s5 + $0x5] sm:$0x1]
        %v1767 = vlaneseq
        %v1768 = vshrl.u32 %v1767, 7
        %v1769 = vsub.s32 0, %v1768
        %v1770 = vrot.slane %v1766, %v1769
        %v1771 = vld [vmem:[%s5 + $0x6] sm:$0x1]
        %v1772 = vlaneseq
        %v1773 = vshrl.u32 %v1772, 7
        %v1774 = vsub.s32 0, %v1773
        %v1775 = vrot.slane %v1771, %v1774
        %v1776 = vpack.c.bf16 %v1731, %v1730
        %v1777 = vpack.c.bf16 %v1733, %v1732
        %v1778 = vpack.c.bf16 %v1735, %v1734
        %v1779 = vpack.c.bf16 %v1737, %v1736
        %v1780 = vpack.c.bf16 %v1739, %v1738
        %v1781 = vpack.c.bf16 %v1741, %v1740
        %v1782 = vpack.c.bf16 %v1743, %v1742
        %v1783 = vpack.c.bf16 %v1745, %v1744
        %1784 = vmatprep.subr.bf16.mxu0 0
        %1785 = vmatpush1.bf16.msra.mxu0 %v1776
        %1786 = vmatprep.subr.bf16.mxu0 0
        %1787 = vmatpush1.bf16.msra.mxu0 %v1777
        %1788 = vmatprep.subr.bf16.mxu0 0
        %1789 = vmatpush1.bf16.msra.mxu0 %v1778
        %1790 = vmatprep.subr.bf16.mxu0 0
        %1791 = vmatpush1.bf16.msra.mxu0 %v1779
        %1792 = vmatprep.subr.bf16.mxu0 0
        %1793 = vmatpush1.bf16.msra.mxu0 %v1780
        %1794 = vmatprep.subr.bf16.mxu0 0
        %1795 = vmatpush1.bf16.msra.mxu0 %v1781
        %1796 = vmatprep.subr.bf16.mxu0 0
        %1797 = vmatpush1.bf16.msra.mxu0 %v1782
        %1798 = vmatprep.subr.bf16.mxu0 0
        %1799 = vmatpush1.bf16.msra.mxu0 %v1783
        %1800 = vmatprep.subr.bf16.mxu0 0
        %1801 = vmatpush1.bf16.msra.mxu0 0
        %1802 = vmatprep.subr.bf16.mxu0 0
        %1803 = vmatpush1.bf16.msra.mxu0 0
        %1804 = vmatprep.subr.bf16.mxu0 0
        %1805 = vmatpush1.bf16.msra.mxu0 0
        %1806 = vmatprep.subr.bf16.mxu0 0
        %1807 = vmatpush1.bf16.msra.mxu0 0
        %1808 = vmatprep.subr.bf16.mxu0 0
        %1809 = vmatpush1.bf16.msra.mxu0 0
        %1810 = vmatprep.subr.bf16.mxu0 0
        %1811 = vmatpush1.bf16.msra.mxu0 0
        %1812 = vmatprep.subr.bf16.mxu0 0
        %1813 = vmatpush1.bf16.msra.mxu0 0
        %1814 = vmatprep.subr.bf16.mxu0 0
        %1815 = vmatpush1.bf16.msra.mxu0 0
        %1816 = vmatprep.mubr.bf16.mxu0 0
        %1817 = vmatmul.mubr.bf16.gmra.mrb[0].mxu0 %v606
        %v1818 = vpop.f32.mrb[0].mxu0
        %v1819 = vadd.f32 %v1730, %v1818
        %v1820 = vpop.f32.mrb[0].mxu0
        %v1821 = vpop.f32.mrb[0].mxu0
        %v1822 = vadd.f32 %v1731, %v1821
        %v1823 = vpop.f32.mrb[0].mxu0
        %1824 = vmatprep.mubr.bf16.mxu0 0
        %1825 = vmatmul.mubr.bf16.gmra.mrb[0].mxu0 %v607
        %v1826 = vpop.f32.mrb[0].mxu0
        %v1827 = vadd.f32 %v1732, %v1826
        %v1828 = vpop.f32.mrb[0].mxu0
        %v1829 = vpop.f32.mrb[0].mxu0
        %v1830 = vadd.f32 %v1733, %v1829
        %v1831 = vpop.f32.mrb[0].mxu0
        %1832 = vmatprep.mubr.bf16.mxu0 0
        %1833 = vmatmul.mubr.bf16.gmra.mrb[0].mxu0 %v608
        %v1834 = vpop.f32.mrb[0].mxu0
        %v1835 = vadd.f32 %v1734, %v1834
        %v1836 = vpop.f32.mrb[0].mxu0
        %v1837 = vpop.f32.mrb[0].mxu0
        %v1838 = vadd.f32 %v1735, %v1837
        %v1839 = vpop.f32.mrb[0].mxu0
        %1840 = vmatprep.mubr.bf16.mxu0 0
        %1841 = vmatmul.mubr.bf16.gmra.mrb[0].mxu0 %v609
        %v1842 = vpop.f32.mrb[0].mxu0
        %v1843 = vadd.f32 %v1736, %v1842
        %v1844 = vpop.f32.mrb[0].mxu0
        %v1845 = vpop.f32.mrb[0].mxu0
        %v1846 = vadd.f32 %v1737, %v1845
        %v1847 = vpop.f32.mrb[0].mxu0
        %1848 = vmatprep.mubr.bf16.mxu0 0
        %1849 = vmatmul.mubr.bf16.gmra.mrb[0].mxu0 %v610
        %v1850 = vpop.f32.mrb[0].mxu0
        %v1851 = vadd.f32 %v1738, %v1850
        %v1852 = vpop.f32.mrb[0].mxu0
        %v1853 = vpop.f32.mrb[0].mxu0
        %v1854 = vadd.f32 %v1739, %v1853
        %v1855 = vpop.f32.mrb[0].mxu0
        %1856 = vmatprep.mubr.bf16.mxu0 0
        %1857 = vmatmul.mubr.bf16.gmra.mrb[0].mxu0 %v611
        %v1858 = vpop.f32.mrb[0].mxu0
        %v1859 = vadd.f32 %v1740, %v1858
        %v1860 = vpop.f32.mrb[0].mxu0
        %v1861 = vpop.f32.mrb[0].mxu0
        %v1862 = vadd.f32 %v1741, %v1861
        %v1863 = vpop.f32.mrb[0].mxu0
        %1864 = vmatprep.mubr.bf16.mxu0 0
        %1865 = vmatmul.mubr.bf16.gmra.mrb[0].mxu0 %v612
        %v1866 = vpop.f32.mrb[0].mxu0
        %v1867 = vadd.f32 %v1742, %v1866
        %v1868 = vpop.f32.mrb[0].mxu0
        %v1869 = vpop.f32.mrb[0].mxu0
        %v1870 = vadd.f32 %v1743, %v1869
        %v1871 = vpop.f32.mrb[0].mxu0
        %1872 = vmatprep.mubr.bf16.mxu0 0
        %1873 = vmatmul.mubr.bf16.gmra.mrb[0].mxu0 %v613
        %v1874 = vpop.f32.mrb[0].mxu0
        %v1875 = vadd.f32 %v1744, %v1874
        %v1876 = vpop.f32.mrb[0].mxu0
        %v1877 = vpop.f32.mrb[0].mxu0
        %v1878 = vadd.f32 %v1745, %v1877
        %v1879 = vpop.f32.mrb[0].mxu0
        %1880 = vdwg.mxu0
        %v1881 = vpack.c.bf16 %v1822, %v1819
        %v1882 = vpack.c.bf16 %v1830, %v1827
        %v1883 = vpack.c.bf16 %v1838, %v1835
        %v1884 = vpack.c.bf16 %v1846, %v1843
        %v1885 = vpack.c.bf16 %v1854, %v1851
        %v1886 = vpack.c.bf16 %v1862, %v1859
        %v1887 = vpack.c.bf16 %v1870, %v1867
        %v1888 = vpack.c.bf16 %v1878, %v1875
        %v1893 = vunpack.c.l.b16 %v1747
        %v1894 = vunpack.c.l.b16 %v1748
        %v1895 = vunpack.c.l.b16 %v1749
        %v1896 = vunpack.c.l.b16 %v1750
        %v1897 = vpack.c.b16 %v1894, %v1893
        %v1898 = vpack.c.b16 %v1896, %v1895
        %v1902 = vsel %vm382, %v1881, 0
        %v1905 = vsel %vm382, %v1882, 0
        %v1908 = vsel %vm382, %v1883, 0
        %v1911 = vsel %vm382, %v1884, 0
        %v1914 = vsel %vm382, %v1885, 0
        %v1917 = vsel %vm382, %v1886, 0
        %v1920 = vsel %vm382, %v1887, 0
        %v1923 = vsel %vm382, %v1888, 0
        %1925 = vmatprep.subr.bf16.mxu0 0
        %1926 = vmatpush1.bf16.msra.mxu0 %v1897
        %1927 = vmatprep.subr.bf16.mxu0 0
        %1928 = vmatpush1.bf16.msra.mxu0 %v1898
        %1929 = vmatprep.subr.bf16.mxu0 0
        %1930 = vmatpush1.bf16.msra.mxu0 0
        %1931 = vmatprep.subr.bf16.mxu0 0
        %1932 = vmatpush1.bf16.msra.mxu0 0
        %1933 = vmatprep.subr.bf16.mxu0 0
        %1934 = vmatpush1.bf16.msra.mxu0 0
        %1935 = vmatprep.subr.bf16.mxu0 0
        %1936 = vmatpush1.bf16.msra.mxu0 0
        %1937 = vmatprep.subr.bf16.mxu0 0
        %1938 = vmatpush1.bf16.msra.mxu0 0
        %1939 = vmatprep.subr.bf16.mxu0 0
        %1940 = vmatpush1.bf16.msra.mxu0 0
        %1941 = vmatprep.subr.bf16.mxu0 0
        %1942 = vmatpush1.bf16.msra.mxu0 0
        %1943 = vmatprep.subr.bf16.mxu0 0
        %1944 = vmatpush1.bf16.msra.mxu0 0
        %1945 = vmatprep.subr.bf16.mxu0 0
        %1946 = vmatpush1.bf16.msra.mxu0 0
        %1947 = vmatprep.subr.bf16.mxu0 0
        %1948 = vmatpush1.bf16.msra.mxu0 0
        %1949 = vmatprep.subr.bf16.mxu0 0
        %1950 = vmatpush1.bf16.msra.mxu0 0
        %1951 = vmatprep.subr.bf16.mxu0 0
        %1952 = vmatpush1.bf16.msra.mxu0 0
        %1953 = vmatprep.subr.bf16.mxu0 0
        %1954 = vmatpush1.bf16.msra.mxu0 0
        %1955 = vmatprep.subr.bf16.mxu0 0
        %1956 = vmatpush1.bf16.msra.mxu0 0
        %1957 = vmatprep.mubr.bf16.mxu0 0
        %1958 = vmatmul.mubr.bf16.gmra.mrb[0].mxu0 %v1902
        %v1959 = vpop.f32.mrb[0].mxu0
        %v1960 = vadd.f32 %v1765, %v1959
        %v1961 = vpop.f32.mrb[0].mxu0
        %v1962 = vpop.f32.mrb[0].mxu0
        %v1963 = vadd.f32 %v1765, %v1962
        %v1964 = vpop.f32.mrb[0].mxu0
        %1965 = vmatprep.mubr.bf16.mxu0 0
        %1966 = vmatmul.mubr.bf16.gmra.mrb[0].mxu0 %v1905
        %v1967 = vpop.f32.mrb[0].mxu0
        %v1968 = vadd.f32 %v1765, %v1967
        %v1969 = vpop.f32.mrb[0].mxu0
        %v1970 = vpop.f32.mrb[0].mxu0
        %v1971 = vadd.f32 %v1765, %v1970
        %v1972 = vpop.f32.mrb[0].mxu0
        %1973 = vmatprep.mubr.bf16.mxu0 0
        %1974 = vmatmul.mubr.bf16.gmra.mrb[0].mxu0 %v1908
        %v1975 = vpop.f32.mrb[0].mxu0
        %v1976 = vadd.f32 %v1765, %v1975
        %v1977 = vpop.f32.mrb[0].mxu0
        %v1978 = vpop.f32.mrb[0].mxu0
        %v1979 = vadd.f32 %v1765, %v1978
        %v1980 = vpop.f32.mrb[0].mxu0
        %1981 = vmatprep.mubr.bf16.mxu0 0
        %1982 = vmatmul.mubr.bf16.gmra.mrb[0].mxu0 %v1911
        %v1983 = vpop.f32.mrb[0].mxu0
        %v1984 = vadd.f32 %v1765, %v1983
        %v1985 = vpop.f32.mrb[0].mxu0
        %v1986 = vpop.f32.mrb[0].mxu0
        %v1987 = vadd.f32 %v1765, %v1986
        %v1988 = vpop.f32.mrb[0].mxu0
        %1989 = vmatprep.mubr.bf16.mxu0 0
        %1990 = vmatmul.mubr.bf16.gmra.mrb[0].mxu0 %v1914
        %v1991 = vpop.f32.mrb[0].mxu0
        %v1992 = vadd.f32 %v1765, %v1991
        %v1993 = vpop.f32.mrb[0].mxu0
        %v1994 = vpop.f32.mrb[0].mxu0
        %v1995 = vadd.f32 %v1765, %v1994
        %v1996 = vpop.f32.mrb[0].mxu0
        %1997 = vmatprep.mubr.bf16.mxu0 0
        %1998 = vmatmul.mubr.bf16.gmra.mrb[0].mxu0 %v1917
        %v1999 = vpop.f32.mrb[0].mxu0
        %v2000 = vadd.f32 %v1765, %v1999
        %v2001 = vpop.f32.mrb[0].mxu0
        %v2002 = vpop.f32.mrb[0].mxu0
        %v2003 = vadd.f32 %v1765, %v2002
        %v2004 = vpop.f32.mrb[0].mxu0
        %2005 = vmatprep.mubr.bf16.mxu0 0
        %2006 = vmatmul.mubr.bf16.gmra.mrb[0].mxu0 %v1920
        %v2007 = vpop.f32.mrb[0].mxu0
        %v2008 = vadd.f32 %v1765, %v2007
        %v2009 = vpop.f32.mrb[0].mxu0
        %v2010 = vpop.f32.mrb[0].mxu0
        %v2011 = vadd.f32 %v1765, %v2010
        %v2012 = vpop.f32.mrb[0].mxu0
        %2013 = vmatprep.mubr.bf16.mxu0 0
        %2014 = vmatmul.mubr.bf16.gmra.mrb[0].mxu0 %v1923
        %v2015 = vpop.f32.mrb[0].mxu0
        %v2016 = vadd.f32 %v1765, %v2015
        %v2017 = vpop.f32.mrb[0].mxu0
        %v2018 = vpop.f32.mrb[0].mxu0
        %v2019 = vadd.f32 %v1765, %v2018
        %v2020 = vpop.f32.mrb[0].mxu0
        %2021 = vdwg.mxu0
        %v2022 = vmax.f32 %v1960, 0.0
        %v2023 = vmax.f32 %v1963, 0.0
        %v2024 = vmax.f32 %v1968, 0.0
        %v2025 = vmax.f32 %v1971, 0.0
        %v2026 = vmax.f32 %v1976, 0.0
        %v2027 = vmax.f32 %v1979, 0.0
        %v2028 = vmax.f32 %v1984, 0.0
        %v2029 = vmax.f32 %v1987, 0.0
        %v2030 = vmax.f32 %v1992, 0.0
        %v2031 = vmax.f32 %v1995, 0.0
        %v2032 = vmax.f32 %v2000, 0.0
        %v2033 = vmax.f32 %v2003, 0.0
        %v2034 = vmax.f32 %v2008, 0.0
        %v2035 = vmax.f32 %v2011, 0.0
        %v2036 = vmax.f32 %v2016, 0.0
        %v2037 = vmax.f32 %v2019, 0.0
        %v2038 = vpack.c.bf16 %v2023, %v2022
        %v2039 = vpack.c.bf16 %v2025, %v2024
        %v2040 = vpack.c.bf16 %v2027, %v2026
        %v2041 = vpack.c.bf16 %v2029, %v2028
        %v2042 = vpack.c.bf16 %v2031, %v2030
        %v2043 = vpack.c.bf16 %v2033, %v2032
        %v2044 = vpack.c.bf16 %v2035, %v2034
        %v2045 = vpack.c.bf16 %v2037, %v2036
        %v2050 = vunpack.c.l.b16 %v1752
        %v2051 = vunpack.c.l.b16 %v1753
        %v2052 = vunpack.c.l.b16 %v1754
        %v2053 = vunpack.c.l.b16 %v1755
        %v2054 = vpack.c.b16 %v2051, %v2050
        %v2055 = vpack.c.b16 %v2053, %v2052
        %v2059 = vsel %vm382, %v2038, 0
        %v2062 = vsel %vm382, %v2039, 0
        %v2065 = vsel %vm382, %v2040, 0
        %v2068 = vsel %vm382, %v2041, 0
        %v2071 = vsel %vm382, %v2042, 0
        %v2074 = vsel %vm382, %v2043, 0
        %v2077 = vsel %vm382, %v2044, 0
        %v2080 = vsel %vm382, %v2045, 0
        %2082 = vmatprep.subr.bf16.mxu0 0
        %2083 = vmatpush1.bf16.msra.mxu0 %v2054
        %2084 = vmatprep.subr.bf16.mxu0 0
        %2085 = vmatpush1.bf16.msra.mxu0 %v2055
        %2086 = vmatprep.subr.bf16.mxu0 0
        %2087 = vmatpush1.bf16.msra.mxu0 0
        %2088 = vmatprep.subr.bf16.mxu0 0
        %2089 = vmatpush1.bf16.msra.mxu0 0
        %2090 = vmatprep.subr.bf16.mxu0 0
        %2091 = vmatpush1.bf16.msra.mxu0 0
        %2092 = vmatprep.subr.bf16.mxu0 0
        %2093 = vmatpush1.bf16.msra.mxu0 0
        %2094 = vmatprep.subr.bf16.mxu0 0
        %2095 = vmatpush1.bf16.msra.mxu0 0
        %2096 = vmatprep.subr.bf16.mxu0 0
        %2097 = vmatpush1.bf16.msra.mxu0 0
        %2098 = vmatprep.subr.bf16.mxu0 0
        %2099 = vmatpush1.bf16.msra.mxu0 0
        %2100 = vmatprep.subr.bf16.mxu0 0
        %2101 = vmatpush1.bf16.msra.mxu0 0
        %2102 = vmatprep.subr.bf16.mxu0 0
        %2103 = vmatpush1.bf16.msra.mxu0 0
        %2104 = vmatprep.subr.bf16.mxu0 0
        %2105 = vmatpush1.bf16.msra.mxu0 0
        %2106 = vmatprep.subr.bf16.mxu0 0
        %2107 = vmatpush1.bf16.msra.mxu0 0
        %2108 = vmatprep.subr.bf16.mxu0 0
        %2109 = vmatpush1.bf16.msra.mxu0 0
        %2110 = vmatprep.subr.bf16.mxu0 0
        %2111 = vmatpush1.bf16.msra.mxu0 0
        %2112 = vmatprep.subr.bf16.mxu0 0
        %2113 = vmatpush1.bf16.msra.mxu0 0
        %2114 = vmatprep.mubr.bf16.mxu0 0
        %2115 = vmatmul.mubr.bf16.gmra.mrb[0].mxu0 %v2059
        %v2116 = vpop.f32.mrb[0].mxu0
        %v2117 = vadd.f32 %v1770, %v2116
        %v2118 = vpop.f32.mrb[0].mxu0
        %v2119 = vpop.f32.mrb[0].mxu0
        %v2120 = vadd.f32 %v1770, %v2119
        %v2121 = vpop.f32.mrb[0].mxu0
        %2122 = vmatprep.mubr.bf16.mxu0 0
        %2123 = vmatmul.mubr.bf16.gmra.mrb[0].mxu0 %v2062
        %v2124 = vpop.f32.mrb[0].mxu0
        %v2125 = vadd.f32 %v1770, %v2124
        %v2126 = vpop.f32.mrb[0].mxu0
        %v2127 = vpop.f32.mrb[0].mxu0
        %v2128 = vadd.f32 %v1770, %v2127
        %v2129 = vpop.f32.mrb[0].mxu0
        %2130 = vmatprep.mubr.bf16.mxu0 0
        %2131 = vmatmul.mubr.bf16.gmra.mrb[0].mxu0 %v2065
        %v2132 = vpop.f32.mrb[0].mxu0
        %v2133 = vadd.f32 %v1770, %v2132
        %v2134 = vpop.f32.mrb[0].mxu0
        %v2135 = vpop.f32.mrb[0].mxu0
        %v2136 = vadd.f32 %v1770, %v2135
        %v2137 = vpop.f32.mrb[0].mxu0
        %2138 = vmatprep.mubr.bf16.mxu0 0
        %2139 = vmatmul.mubr.bf16.gmra.mrb[0].mxu0 %v2068
        %v2140 = vpop.f32.mrb[0].mxu0
        %v2141 = vadd.f32 %v1770, %v2140
        %v2142 = vpop.f32.mrb[0].mxu0
        %v2143 = vpop.f32.mrb[0].mxu0
        %v2144 = vadd.f32 %v1770, %v2143
        %v2145 = vpop.f32.mrb[0].mxu0
        %2146 = vmatprep.mubr.bf16.mxu0 0
        %2147 = vmatmul.mubr.bf16.gmra.mrb[0].mxu0 %v2071
        %v2148 = vpop.f32.mrb[0].mxu0
        %v2149 = vadd.f32 %v1770, %v2148
        %v2150 = vpop.f32.mrb[0].mxu0
        %v2151 = vpop.f32.mrb[0].mxu0
        %v2152 = vadd.f32 %v1770, %v2151
        %v2153 = vpop.f32.mrb[0].mxu0
        %2154 = vmatprep.mubr.bf16.mxu0 0
        %2155 = vmatmul.mubr.bf16.gmra.mrb[0].mxu0 %v2074
        %v2156 = vpop.f32.mrb[0].mxu0
        %v2157 = vadd.f32 %v1770, %v2156
        %v2158 = vpop.f32.mrb[0].mxu0
        %v2159 = vpop.f32.mrb[0].mxu0
        %v2160 = vadd.f32 %v1770, %v2159
        %v2161 = vpop.f32.mrb[0].mxu0
        %2162 = vmatprep.mubr.bf16.mxu0 0
        %2163 = vmatmul.mubr.bf16.gmra.mrb[0].mxu0 %v2077
        %v2164 = vpop.f32.mrb[0].mxu0
        %v2165 = vadd.f32 %v1770, %v2164
        %v2166 = vpop.f32.mrb[0].mxu0
        %v2167 = vpop.f32.mrb[0].mxu0
        %v2168 = vadd.f32 %v1770, %v2167
        %v2169 = vpop.f32.mrb[0].mxu0
        %2170 = vmatprep.mubr.bf16.mxu0 0
        %2171 = vmatmul.mubr.bf16.gmra.mrb[0].mxu0 %v2080
        %v2172 = vpop.f32.mrb[0].mxu0
        %v2173 = vadd.f32 %v1770, %v2172
        %v2174 = vpop.f32.mrb[0].mxu0
        %v2175 = vpop.f32.mrb[0].mxu0
        %v2176 = vadd.f32 %v1770, %v2175
        %v2177 = vpop.f32.mrb[0].mxu0
        %2178 = vdwg.mxu0
        %v2179 = vmax.f32 %v2117, 0.0
        %v2180 = vmax.f32 %v2120, 0.0
        %v2181 = vmax.f32 %v2125, 0.0
        %v2182 = vmax.f32 %v2128, 0.0
        %v2183 = vmax.f32 %v2133, 0.0
        %v2184 = vmax.f32 %v2136, 0.0
        %v2185 = vmax.f32 %v2141, 0.0
        %v2186 = vmax.f32 %v2144, 0.0
        %v2187 = vmax.f32 %v2149, 0.0
        %v2188 = vmax.f32 %v2152, 0.0
        %v2189 = vmax.f32 %v2157, 0.0
        %v2190 = vmax.f32 %v2160, 0.0
        %v2191 = vmax.f32 %v2165, 0.0
        %v2192 = vmax.f32 %v2168, 0.0
        %v2193 = vmax.f32 %v2173, 0.0
        %v2194 = vmax.f32 %v2176, 0.0
        %v2195 = vpack.c.bf16 %v2180, %v2179
        %v2196 = vpack.c.bf16 %v2182, %v2181
        %v2197 = vpack.c.bf16 %v2184, %v2183
        %v2198 = vpack.c.bf16 %v2186, %v2185
        %v2199 = vpack.c.bf16 %v2188, %v2187
        %v2200 = vpack.c.bf16 %v2190, %v2189
        %v2201 = vpack.c.bf16 %v2192, %v2191
        %v2202 = vpack.c.bf16 %v2194, %v2193
        %v2207 = vunpack.c.l.b16 %v1757
        %v2208 = vunpack.c.l.b16 %v1758
        %v2209 = vunpack.c.l.b16 %v1759
        %v2210 = vunpack.c.l.b16 %v1760
        %v2211 = vpack.c.b16 %v2208, %v2207
        %v2212 = vpack.c.b16 %v2210, %v2209
        %v2216 = vsel %vm382, %v2195, 0
        %v2219 = vsel %vm382, %v2196, 0
        %v2222 = vsel %vm382, %v2197, 0
        %v2225 = vsel %vm382, %v2198, 0
        %v2228 = vsel %vm382, %v2199, 0
        %v2231 = vsel %vm382, %v2200, 0
        %v2234 = vsel %vm382, %v2201, 0
        %v2237 = vsel %vm382, %v2202, 0
        %2239 = vmatprep.subr.bf16.mxu0 0
        %2240 = vmatpush1.bf16.msra.mxu0 %v2211
        %2241 = vmatprep.subr.bf16.mxu0 0
        %2242 = vmatpush1.bf16.msra.mxu0 %v2212
        %2243 = vmatprep.subr.bf16.mxu0 0
        %2244 = vmatpush1.bf16.msra.mxu0 0
        %2245 = vmatprep.subr.bf16.mxu0 0
        %2246 = vmatpush1.bf16.msra.mxu0 0
        %2247 = vmatprep.subr.bf16.mxu0 0
        %2248 = vmatpush1.bf16.msra.mxu0 0
        %2249 = vmatprep.subr.bf16.mxu0 0
        %2250 = vmatpush1.bf16.msra.mxu0 0
        %2251 = vmatprep.subr.bf16.mxu0 0
        %2252 = vmatpush1.bf16.msra.mxu0 0
        %2253 = vmatprep.subr.bf16.mxu0 0
        %2254 = vmatpush1.bf16.msra.mxu0 0
        %2255 = vmatprep.subr.bf16.mxu0 0
        %2256 = vmatpush1.bf16.msra.mxu0 0
        %2257 = vmatprep.subr.bf16.mxu0 0
        %2258 = vmatpush1.bf16.msra.mxu0 0
        %2259 = vmatprep.subr.bf16.mxu0 0
        %2260 = vmatpush1.bf16.msra.mxu0 0
        %2261 = vmatprep.subr.bf16.mxu0 0
        %2262 = vmatpush1.bf16.msra.mxu0 0
        %2263 = vmatprep.subr.bf16.mxu0 0
        %2264 = vmatpush1.bf16.msra.mxu0 0
        %2265 = vmatprep.subr.bf16.mxu0 0
        %2266 = vmatpush1.bf16.msra.mxu0 0
        %2267 = vmatprep.subr.bf16.mxu0 0
        %2268 = vmatpush1.bf16.msra.mxu0 0
        %2269 = vmatprep.subr.bf16.mxu0 0
        %2270 = vmatpush1.bf16.msra.mxu0 0
        %2271 = vmatprep.mubr.bf16.mxu0 0
        %2272 = vmatmul.mubr.bf16.gmra.mrb[0].mxu0 %v2216
        %v2273 = vpop.f32.mrb[0].mxu0
        %v2274 = vadd.f32 %v1775, %v2273
        %v2275 = vpop.f32.mrb[0].mxu0
        %v2276 = vpop.f32.mrb[0].mxu0
        %v2277 = vadd.f32 %v1775, %v2276
        %v2278 = vpop.f32.mrb[0].mxu0
        %2279 = vmatprep.mubr.bf16.mxu0 0
        %2280 = vmatmul.mubr.bf16.gmra.mrb[0].mxu0 %v2219
        %v2281 = vpop.f32.mrb[0].mxu0
        %v2282 = vadd.f32 %v1775, %v2281
        %v2283 = vpop.f32.mrb[0].mxu0
        %v2284 = vpop.f32.mrb[0].mxu0
        %v2285 = vadd.f32 %v1775, %v2284
        %v2286 = vpop.f32.mrb[0].mxu0
        %2287 = vmatprep.mubr.bf16.mxu0 0
        %2288 = vmatmul.mubr.bf16.gmra.mrb[0].mxu0 %v2222
        %v2289 = vpop.f32.mrb[0].mxu0
        %v2290 = vadd.f32 %v1775, %v2289
        %v2291 = vpop.f32.mrb[0].mxu0
        %v2292 = vpop.f32.mrb[0].mxu0
        %v2293 = vadd.f32 %v1775, %v2292
        %v2294 = vpop.f32.mrb[0].mxu0
        %2295 = vmatprep.mubr.bf16.mxu0 0
        %2296 = vmatmul.mubr.bf16.gmra.mrb[0].mxu0 %v2225
        %v2297 = vpop.f32.mrb[0].mxu0
        %v2298 = vadd.f32 %v1775, %v2297
        %v2299 = vpop.f32.mrb[0].mxu0
        %v2300 = vpop.f32.mrb[0].mxu0
        %v2301 = vadd.f32 %v1775, %v2300
        %v2302 = vpop.f32.mrb[0].mxu0
        %2303 = vmatprep.mubr.bf16.mxu0 0
        %2304 = vmatmul.mubr.bf16.gmra.mrb[0].mxu0 %v2228
        %v2305 = vpop.f32.mrb[0].mxu0
        %v2306 = vadd.f32 %v1775, %v2305
        %v2307 = vpop.f32.mrb[0].mxu0
        %v2308 = vpop.f32.mrb[0].mxu0
        %v2309 = vadd.f32 %v1775, %v2308
        %v2310 = vpop.f32.mrb[0].mxu0
        %2311 = vmatprep.mubr.bf16.mxu0 0
        %2312 = vmatmul.mubr.bf16.gmra.mrb[0].mxu0 %v2231
        %v2313 = vpop.f32.mrb[0].mxu0
        %v2314 = vadd.f32 %v1775, %v2313
        %v2315 = vpop.f32.mrb[0].mxu0
        %v2316 = vpop.f32.mrb[0].mxu0
        %v2317 = vadd.f32 %v1775, %v2316
        %v2318 = vpop.f32.mrb[0].mxu0
        %2319 = vmatprep.mubr.bf16.mxu0 0
        %2320 = vmatmul.mubr.bf16.gmra.mrb[0].mxu0 %v2234
        %v2321 = vpop.f32.mrb[0].mxu0
        %v2322 = vadd.f32 %v1775, %v2321
        %v2323 = vpop.f32.mrb[0].mxu0
        %v2324 = vpop.f32.mrb[0].mxu0
        %v2325 = vadd.f32 %v1775, %v2324
        %v2326 = vpop.f32.mrb[0].mxu0
        %2327 = vmatprep.mubr.bf16.mxu0 0
        %2328 = vmatmul.mubr.bf16.gmra.mrb[0].mxu0 %v2237
        %v2329 = vpop.f32.mrb[0].mxu0
        %v2330 = vadd.f32 %v1775, %v2329
        %v2331 = vpop.f32.mrb[0].mxu0
        %v2332 = vpop.f32.mrb[0].mxu0
        %v2333 = vadd.f32 %v1775, %v2332
        %v2334 = vpop.f32.mrb[0].mxu0
        %2335 = vdwg.mxu0
        %v2336 = vmax.f32 %v2274, 0.0
        %v2337 = vmax.f32 %v2277, 0.0
        %v2338 = vmax.f32 %v2282, 0.0
        %v2339 = vmax.f32 %v2285, 0.0
        %v2340 = vmax.f32 %v2290, 0.0
        %v2341 = vmax.f32 %v2293, 0.0
        %v2342 = vmax.f32 %v2298, 0.0
        %v2343 = vmax.f32 %v2301, 0.0
        %v2344 = vmax.f32 %v2306, 0.0
        %v2345 = vmax.f32 %v2309, 0.0
        %v2346 = vmax.f32 %v2314, 0.0
        %v2347 = vmax.f32 %v2317, 0.0
        %v2348 = vmax.f32 %v2322, 0.0
        %v2349 = vmax.f32 %v2325, 0.0
        %v2350 = vmax.f32 %v2330, 0.0
        %v2351 = vmax.f32 %v2333, 0.0
        %v2352 = vpack.c.bf16 %v2337, %v2336
        %v2353 = vpack.c.bf16 %v2339, %v2338
        %v2354 = vpack.c.bf16 %v2341, %v2340
        %v2355 = vpack.c.bf16 %v2343, %v2342
        %v2356 = vpack.c.bf16 %v2345, %v2344
        %v2357 = vpack.c.bf16 %v2347, %v2346
        %v2358 = vpack.c.bf16 %v2349, %v2348
        %v2359 = vpack.c.bf16 %v2351, %v2350
        %2360 = vmatprep.subr.bf16.mxu0 0
        %2361 = vmatpush1.bf16.msra.mxu0 %v2352
        %2362 = vmatprep.subr.bf16.mxu0 0
        %2363 = vmatpush1.bf16.msra.mxu0 %v2353
        %2364 = vmatprep.subr.bf16.mxu0 0
        %2365 = vmatpush1.bf16.msra.mxu0 %v2354
        %2366 = vmatprep.subr.bf16.mxu0 0
        %2367 = vmatpush1.bf16.msra.mxu0 %v2355
        %2368 = vmatprep.subr.bf16.mxu0 0
        %2369 = vmatpush1.bf16.msra.mxu0 %v2356
        %2370 = vmatprep.subr.bf16.mxu0 0
        %2371 = vmatpush1.bf16.msra.mxu0 %v2357
        %2372 = vmatprep.subr.bf16.mxu0 0
        %2373 = vmatpush1.bf16.msra.mxu0 %v2358
        %2374 = vmatprep.subr.bf16.mxu0 0
        %2375 = vmatpush1.bf16.msra.mxu0 %v2359
        %2376 = vmatprep.subr.bf16.mxu0 0
        %2377 = vmatpush1.bf16.msra.mxu0 0
        %2378 = vmatprep.subr.bf16.mxu0 0
        %2379 = vmatpush1.bf16.msra.mxu0 0
        %2380 = vmatprep.subr.bf16.mxu0 0
        %2381 = vmatpush1.bf16.msra.mxu0 0
        %2382 = vmatprep.subr.bf16.mxu0 0
        %2383 = vmatpush1.bf16.msra.mxu0 0
        %2384 = vmatprep.subr.bf16.mxu0 0
        %2385 = vmatpush1.bf16.msra.mxu0 0
        %2386 = vmatprep.subr.bf16.mxu0 0
        %2387 = vmatpush1.bf16.msra.mxu0 0
        %2388 = vmatprep.subr.bf16.mxu0 0
        %2389 = vmatpush1.bf16.msra.mxu0 0
        %2390 = vmatprep.subr.bf16.mxu0 0
        %2391 = vmatpush1.bf16.msra.mxu0 0
        %2392 = vmatprep.mubr.bf16.mxu0 0
        %2393 = vmatmul.mubr.bf16.gmra.mrb[0].mxu0 %v606
        %v2394 = vpop.f32.mrb[0].mxu0
        %v2395 = vadd.f32 %v2336, %v2394
        %v2396 = vpop.f32.mrb[0].mxu0
        %v2397 = vpop.f32.mrb[0].mxu0
        %v2398 = vadd.f32 %v2337, %v2397
        %v2399 = vpop.f32.mrb[0].mxu0
        %2400 = vmatprep.mubr.bf16.mxu0 0
        %2401 = vmatmul.mubr.bf16.gmra.mrb[0].mxu0 %v607
        %v2402 = vpop.f32.mrb[0].mxu0
        %v2403 = vadd.f32 %v2338, %v2402
        %v2404 = vpop.f32.mrb[0].mxu0
        %v2405 = vpop.f32.mrb[0].mxu0
        %v2406 = vadd.f32 %v2339, %v2405
        %v2407 = vpop.f32.mrb[0].mxu0
        %2408 = vmatprep.mubr.bf16.mxu0 0
        %2409 = vmatmul.mubr.bf16.gmra.mrb[0].mxu0 %v608
        %v2410 = vpop.f32.mrb[0].mxu0
        %v2411 = vadd.f32 %v2340, %v2410
        %v2412 = vpop.f32.mrb[0].mxu0
        %v2413 = vpop.f32.mrb[0].mxu0
        %v2414 = vadd.f32 %v2341, %v2413
        %v2415 = vpop.f32.mrb[0].mxu0
        %2416 = vmatprep.mubr.bf16.mxu0 0
        %2417 = vmatmul.mubr.bf16.gmra.mrb[0].mxu0 %v609
        %v2418 = vpop.f32.mrb[0].mxu0
        %v2419 = vadd.f32 %v2342, %v2418
        %v2420 = vpop.f32.mrb[0].mxu0
        %v2421 = vpop.f32.mrb[0].mxu0
        %v2422 = vadd.f32 %v2343, %v2421
        %v2423 = vpop.f32.mrb[0].mxu0
        %2424 = vmatprep.mubr.bf16.mxu0 0
        %2425 = vmatmul.mubr.bf16.gmra.mrb[0].mxu0 %v610
        %v2426 = vpop.f32.mrb[0].mxu0
        %v2427 = vadd.f32 %v2344, %v2426
        %v2428 = vpop.f32.mrb[0].mxu0
        %v2429 = vpop.f32.mrb[0].mxu0
        %v2430 = vadd.f32 %v2345, %v2429
        %v2431 = vpop.f32.mrb[0].mxu0
        %2432 = vmatprep.mubr.bf16.mxu0 0
        %2433 = vmatmul.mubr.bf16.gmra.mrb[0].mxu0 %v611
        %v2434 = vpop.f32.mrb[0].mxu0
        %v2435 = vadd.f32 %v2346, %v2434
        %v2436 = vpop.f32.mrb[0].mxu0
        %v2437 = vpop.f32.mrb[0].mxu0
        %v2438 = vadd.f32 %v2347, %v2437
        %v2439 = vpop.f32.mrb[0].mxu0
        %2440 = vmatprep.mubr.bf16.mxu0 0
        %2441 = vmatmul.mubr.bf16.gmra.mrb[0].mxu0 %v612
        %v2442 = vpop.f32.mrb[0].mxu0
        %v2443 = vadd.f32 %v2348, %v2442
        %v2444 = vpop.f32.mrb[0].mxu0
        %v2445 = vpop.f32.mrb[0].mxu0
        %v2446 = vadd.f32 %v2349, %v2445
        %v2447 = vpop.f32.mrb[0].mxu0
        %2448 = vmatprep.mubr.bf16.mxu0 0
        %2449 = vmatmul.mubr.bf16.gmra.mrb[0].mxu0 %v613
        %v2450 = vpop.f32.mrb[0].mxu0
        %v2451 = vadd.f32 %v2350, %v2450
        %v2452 = vpop.f32.mrb[0].mxu0
        %v2453 = vpop.f32.mrb[0].mxu0
        %v2454 = vadd.f32 %v2351, %v2453
        %v2455 = vpop.f32.mrb[0].mxu0
        %2456 = vdwg.mxu0
        %v2457 = vpack.c.bf16 %v2398, %v2395
        %v2458 = vpack.c.bf16 %v2406, %v2403
        %v2459 = vpack.c.bf16 %v2414, %v2411
        %v2460 = vpack.c.bf16 %v2422, %v2419
        %v2461 = vpack.c.bf16 %v2430, %v2427
        %v2462 = vpack.c.bf16 %v2438, %v2435
        %v2463 = vpack.c.bf16 %v2446, %v2443
        %v2464 = vpack.c.bf16 %v2454, %v2451
        %v2466 = vsel %vm382, %v2457, 0
        %v2469 = vsel %vm382, %v2458, 0
        %v2472 = vsel %vm382, %v2459, 0
        %v2475 = vsel %vm382, %v2460, 0
        %v2478 = vsel %vm382, %v2461, 0
        %v2481 = vsel %vm382, %v2462, 0
        %v2484 = vsel %vm382, %v2463, 0
        %v2487 = vsel %vm382, %v2464, 0
        %2489 = vmatprep.subr.bf16.mxu0 0
        %2490 = vmatpush1.bf16.msra.mxu0 %v1897
        %2491 = vmatprep.subr.bf16.mxu0 0
        %2492 = vmatpush1.bf16.msra.mxu0 %v1898
        %2493 = vmatprep.subr.bf16.mxu0 0
        %2494 = vmatpush1.bf16.msra.mxu0 0
        %2495 = vmatprep.subr.bf16.mxu0 0
        %2496 = vmatpush1.bf16.msra.mxu0 0
        %2497 = vmatprep.subr.bf16.mxu0 0
        %2498 = vmatpush1.bf16.msra.mxu0 0
        %2499 = vmatprep.subr.bf16.mxu0 0
        %2500 = vmatpush1.bf16.msra.mxu0 0
        %2501 = vmatprep.subr.bf16.mxu0 0
        %2502 = vmatpush1.bf16.msra.mxu0 0
        %2503 = vmatprep.subr.bf16.mxu0 0
        %2504 = vmatpush1.bf16.msra.mxu0 0
        %2505 = vmatprep.subr.bf16.mxu0 0
        %2506 = vmatpush1.bf16.msra.mxu0 0
        %2507 = vmatprep.subr.bf16.mxu0 0
        %2508 = vmatpush1.bf16.msra.mxu0 0
        %2509 = vmatprep.subr.bf16.mxu0 0
        %2510 = vmatpush1.bf16.msra.mxu0 0
        %2511 = vmatprep.subr.bf16.mxu0 0
        %2512 = vmatpush1.bf16.msra.mxu0 0
        %2513 = vmatprep.subr.bf16.mxu0 0
        %2514 = vmatpush1.bf16.msra.mxu0 0
        %2515 = vmatprep.subr.bf16.mxu0 0
        %2516 = vmatpush1.bf16.msra.mxu0 0
        %2517 = vmatprep.subr.bf16.mxu0 0
        %2518 = vmatpush1.bf16.msra.mxu0 0
        %2519 = vmatprep.subr.bf16.mxu0 0
        %2520 = vmatpush1.bf16.msra.mxu0 0
        %2521 = vmatprep.mubr.bf16.mxu0 0
        %2522 = vmatmul.mubr.bf16.gmra.mrb[0].mxu0 %v2466
        %v2523 = vpop.f32.mrb[0].mxu0
        %v2524 = vadd.f32 %v1765, %v2523
        %v2525 = vpop.f32.mrb[0].mxu0
        %v2526 = vpop.f32.mrb[0].mxu0
        %v2527 = vadd.f32 %v1765, %v2526
        %v2528 = vpop.f32.mrb[0].mxu0
        %2529 = vmatprep.mubr.bf16.mxu0 0
        %2530 = vmatmul.mubr.bf16.gmra.mrb[0].mxu0 %v2469
        %v2531 = vpop.f32.mrb[0].mxu0
        %v2532 = vadd.f32 %v1765, %v2531
        %v2533 = vpop.f32.mrb[0].mxu0
        %v2534 = vpop.f32.mrb[0].mxu0
        %v2535 = vadd.f32 %v1765, %v2534
        %v2536 = vpop.f32.mrb[0].mxu0
        %2537 = vmatprep.mubr.bf16.mxu0 0
        %2538 = vmatmul.mubr.bf16.gmra.mrb[0].mxu0 %v2472
        %v2539 = vpop.f32.mrb[0].mxu0
        %v2540 = vadd.f32 %v1765, %v2539
        %v2541 = vpop.f32.mrb[0].mxu0
        %v2542 = vpop.f32.mrb[0].mxu0
        %v2543 = vadd.f32 %v1765, %v2542
        %v2544 = vpop.f32.mrb[0].mxu0
        %2545 = vmatprep.mubr.bf16.mxu0 0
        %2546 = vmatmul.mubr.bf16.gmra.mrb[0].mxu0 %v2475
        %v2547 = vpop.f32.mrb[0].mxu0
        %v2548 = vadd.f32 %v1765, %v2547
        %v2549 = vpop.f32.mrb[0].mxu0
        %v2550 = vpop.f32.mrb[0].mxu0
        %v2551 = vadd.f32 %v1765, %v2550
        %v2552 = vpop.f32.mrb[0].mxu0
        %2553 = vmatprep.mubr.bf16.mxu0 0
        %2554 = vmatmul.mubr.bf16.gmra.mrb[0].mxu0 %v2478
        %v2555 = vpop.f32.mrb[0].mxu0
        %v2556 = vadd.f32 %v1765, %v2555
        %v2557 = vpop.f32.mrb[0].mxu0
        %v2558 = vpop.f32.mrb[0].mxu0
        %v2559 = vadd.f32 %v1765, %v2558
        %v2560 = vpop.f32.mrb[0].mxu0
        %2561 = vmatprep.mubr.bf16.mxu0 0
        %2562 = vmatmul.mubr.bf16.gmra.mrb[0].mxu0 %v2481
        %v2563 = vpop.f32.mrb[0].mxu0
        %v2564 = vadd.f32 %v1765, %v2563
        %v2565 = vpop.f32.mrb[0].mxu0
        %v2566 = vpop.f32.mrb[0].mxu0
        %v2567 = vadd.f32 %v1765, %v2566
        %v2568 = vpop.f32.mrb[0].mxu0
        %2569 = vmatprep.mubr.bf16.mxu0 0
        %2570 = vmatmul.mubr.bf16.gmra.mrb[0].mxu0 %v2484
        %v2571 = vpop.f32.mrb[0].mxu0
        %v2572 = vadd.f32 %v1765, %v2571
        %v2573 = vpop.f32.mrb[0].mxu0
        %v2574 = vpop.f32.mrb[0].mxu0
        %v2575 = vadd.f32 %v1765, %v2574
        %v2576 = vpop.f32.mrb[0].mxu0
        %2577 = vmatprep.mubr.bf16.mxu0 0
        %2578 = vmatmul.mubr.bf16.gmra.mrb[0].mxu0 %v2487
        %v2579 = vpop.f32.mrb[0].mxu0
        %v2580 = vadd.f32 %v1765, %v2579
        %v2581 = vpop.f32.mrb[0].mxu0
        %v2582 = vpop.f32.mrb[0].mxu0
        %v2583 = vadd.f32 %v1765, %v2582
        %v2584 = vpop.f32.mrb[0].mxu0
        %2585 = vdwg.mxu0
        %v2586 = vmax.f32 %v2524, 0.0
        %v2587 = vmax.f32 %v2527, 0.0
        %v2588 = vmax.f32 %v2532, 0.0
        %v2589 = vmax.f32 %v2535, 0.0
        %v2590 = vmax.f32 %v2540, 0.0
        %v2591 = vmax.f32 %v2543, 0.0
        %v2592 = vmax.f32 %v2548, 0.0
        %v2593 = vmax.f32 %v2551, 0.0
        %v2594 = vmax.f32 %v2556, 0.0
        %v2595 = vmax.f32 %v2559, 0.0
        %v2596 = vmax.f32 %v2564, 0.0
        %v2597 = vmax.f32 %v2567, 0.0
        %v2598 = vmax.f32 %v2572, 0.0
        %v2599 = vmax.f32 %v2575, 0.0
        %v2600 = vmax.f32 %v2580, 0.0
        %v2601 = vmax.f32 %v2583, 0.0
        %v2602 = vpack.c.bf16 %v2587, %v2586
        %v2603 = vpack.c.bf16 %v2589, %v2588
        %v2604 = vpack.c.bf16 %v2591, %v2590
        %v2605 = vpack.c.bf16 %v2593, %v2592
        %v2606 = vpack.c.bf16 %v2595, %v2594
        %v2607 = vpack.c.bf16 %v2597, %v2596
        %v2608 = vpack.c.bf16 %v2599, %v2598
        %v2609 = vpack.c.bf16 %v2601, %v2600
        %v2611 = vsel %vm382, %v2602, 0
        %v2614 = vsel %vm382, %v2603, 0
        %v2617 = vsel %vm382, %v2604, 0
        %v2620 = vsel %vm382, %v2605, 0
        %v2623 = vsel %vm382, %v2606, 0
        %v2626 = vsel %vm382, %v2607, 0
        %v2629 = vsel %vm382, %v2608, 0
        %v2632 = vsel %vm382, %v2609, 0
        %2634 = vmatprep.subr.bf16.mxu0 0
        %2635 = vmatpush1.bf16.msra.mxu0 %v2054
        %2636 = vmatprep.subr.bf16.mxu0 0
        %2637 = vmatpush1.bf16.msra.mxu0 %v2055
        %2638 = vmatprep.subr.bf16.mxu0 0
        %2639 = vmatpush1.bf16.msra.mxu0 0
        %2640 = vmatprep.subr.bf16.mxu0 0
        %2641 = vmatpush1.bf16.msra.mxu0 0
        %2642 = vmatprep.subr.bf16.mxu0 0
        %2643 = vmatpush1.bf16.msra.mxu0 0
        %2644 = vmatprep.subr.bf16.mxu0 0
        %2645 = vmatpush1.bf16.msra.mxu0 0
        %2646 = vmatprep.subr.bf16.mxu0 0
        %2647 = vmatpush1.bf16.msra.mxu0 0
        %2648 = vmatprep.subr.bf16.mxu0 0
        %2649 = vmatpush1.bf16.msra.mxu0 0
        %2650 = vmatprep.subr.bf16.mxu0 0
        %2651 = vmatpush1.bf16.msra.mxu0 0
        %2652 = vmatprep.subr.bf16.mxu0 0
        %2653 = vmatpush1.bf16.msra.mxu0 0
        %2654 = vmatprep.subr.bf16.mxu0 0
        %2655 = vmatpush1.bf16.msra.mxu0 0
        %2656 = vmatprep.subr.bf16.mxu0 0
        %2657 = vmatpush1.bf16.msra.mxu0 0
        %2658 = vmatprep.subr.bf16.mxu0 0
        %2659 = vmatpush1.bf16.msra.mxu0 0
        %2660 = vmatprep.subr.bf16.mxu0 0
        %2661 = vmatpush1.bf16.msra.mxu0 0
        %2662 = vmatprep.subr.bf16.mxu0 0
        %2663 = vmatpush1.bf16.msra.mxu0 0
        %2664 = vmatprep.subr.bf16.mxu0 0
        %2665 = vmatpush1.bf16.msra.mxu0 0
        %2666 = vmatprep.mubr.bf16.mxu0 0
        %2667 = vmatmul.mubr.bf16.gmra.mrb[0].mxu0 %v2611
        %v2668 = vpop.f32.mrb[0].mxu0
        %v2669 = vadd.f32 %v1770, %v2668
        %v2670 = vpop.f32.mrb[0].mxu0
        %v2671 = vpop.f32.mrb[0].mxu0
        %v2672 = vadd.f32 %v1770, %v2671
        %v2673 = vpop.f32.mrb[0].mxu0
        %2674 = vmatprep.mubr.bf16.mxu0 0
        %2675 = vmatmul.mubr.bf16.gmra.mrb[0].mxu0 %v2614
        %v2676 = vpop.f32.mrb[0].mxu0
        %v2677 = vadd.f32 %v1770, %v2676
        %v2678 = vpop.f32.mrb[0].mxu0
        %v2679 = vpop.f32.mrb[0].mxu0
        %v2680 = vadd.f32 %v1770, %v2679
        %v2681 = vpop.f32.mrb[0].mxu0
        %2682 = vmatprep.mubr.bf16.mxu0 0
        %2683 = vmatmul.mubr.bf16.gmra.mrb[0].mxu0 %v2617
        %v2684 = vpop.f32.mrb[0].mxu0
        %v2685 = vadd.f32 %v1770, %v2684
        %v2686 = vpop.f32.mrb[0].mxu0
        %v2687 = vpop.f32.mrb[0].mxu0
        %v2688 = vadd.f32 %v1770, %v2687
        %v2689 = vpop.f32.mrb[0].mxu0
        %2690 = vmatprep.mubr.bf16.mxu0 0
        %2691 = vmatmul.mubr.bf16.gmra.mrb[0].mxu0 %v2620
        %v2692 = vpop.f32.mrb[0].mxu0
        %v2693 = vadd.f32 %v1770, %v2692
        %v2694 = vpop.f32.mrb[0].mxu0
        %v2695 = vpop.f32.mrb[0].mxu0
        %v2696 = vadd.f32 %v1770, %v2695
        %v2697 = vpop.f32.mrb[0].mxu0
        %2698 = vmatprep.mubr.bf16.mxu0 0
        %2699 = vmatmul.mubr.bf16.gmra.mrb[0].mxu0 %v2623
        %v2700 = vpop.f32.mrb[0].mxu0
        %v2701 = vadd.f32 %v1770, %v2700
        %v2702 = vpop.f32.mrb[0].mxu0
        %v2703 = vpop.f32.mrb[0].mxu0
        %v2704 = vadd.f32 %v1770, %v2703
        %v2705 = vpop.f32.mrb[0].mxu0
        %2706 = vmatprep.mubr.bf16.mxu0 0
        %2707 = vmatmul.mubr.bf16.gmra.mrb[0].mxu0 %v2626
        %v2708 = vpop.f32.mrb[0].mxu0
        %v2709 = vadd.f32 %v1770, %v2708
        %v2710 = vpop.f32.mrb[0].mxu0
        %v2711 = vpop.f32.mrb[0].mxu0
        %v2712 = vadd.f32 %v1770, %v2711
        %v2713 = vpop.f32.mrb[0].mxu0
        %2714 = vmatprep.mubr.bf16.mxu0 0
        %2715 = vmatmul.mubr.bf16.gmra.mrb[0].mxu0 %v2629
        %v2716 = vpop.f32.mrb[0].mxu0
        %v2717 = vadd.f32 %v1770, %v2716
        %v2718 = vpop.f32.mrb[0].mxu0
        %v2719 = vpop.f32.mrb[0].mxu0
        %v2720 = vadd.f32 %v1770, %v2719
        %v2721 = vpop.f32.mrb[0].mxu0
        %2722 = vmatprep.mubr.bf16.mxu0 0
        %2723 = vmatmul.mubr.bf16.gmra.mrb[0].mxu0 %v2632
        %v2724 = vpop.f32.mrb[0].mxu0
        %v2725 = vadd.f32 %v1770, %v2724
        %v2726 = vpop.f32.mrb[0].mxu0
        %v2727 = vpop.f32.mrb[0].mxu0
        %v2728 = vadd.f32 %v1770, %v2727
        %v2729 = vpop.f32.mrb[0].mxu0
        %2730 = vdwg.mxu0
        %v2731 = vmax.f32 %v2669, 0.0
        %v2732 = vmax.f32 %v2672, 0.0
        %v2733 = vmax.f32 %v2677, 0.0
        %v2734 = vmax.f32 %v2680, 0.0
        %v2735 = vmax.f32 %v2685, 0.0
        %v2736 = vmax.f32 %v2688, 0.0
        %v2737 = vmax.f32 %v2693, 0.0
        %v2738 = vmax.f32 %v2696, 0.0
        %v2739 = vmax.f32 %v2701, 0.0
        %v2740 = vmax.f32 %v2704, 0.0
        %v2741 = vmax.f32 %v2709, 0.0
        %v2742 = vmax.f32 %v2712, 0.0
        %v2743 = vmax.f32 %v2717, 0.0
        %v2744 = vmax.f32 %v2720, 0.0
        %v2745 = vmax.f32 %v2725, 0.0
        %v2746 = vmax.f32 %v2728, 0.0
        %v2747 = vpack.c.bf16 %v2732, %v2731
        %v2748 = vpack.c.bf16 %v2734, %v2733
        %v2749 = vpack.c.bf16 %v2736, %v2735
        %v2750 = vpack.c.bf16 %v2738, %v2737
        %v2751 = vpack.c.bf16 %v2740, %v2739
        %v2752 = vpack.c.bf16 %v2742, %v2741
        %v2753 = vpack.c.bf16 %v2744, %v2743
        %v2754 = vpack.c.bf16 %v2746, %v2745
        %v2756 = vsel %vm382, %v2747, 0
        %v2759 = vsel %vm382, %v2748, 0
        %v2762 = vsel %vm382, %v2749, 0
        %v2765 = vsel %vm382, %v2750, 0
        %v2768 = vsel %vm382, %v2751, 0
        %v2771 = vsel %vm382, %v2752, 0
        %v2774 = vsel %vm382, %v2753, 0
        %v2777 = vsel %vm382, %v2754, 0
        %2779 = vmatprep.subr.bf16.mxu0 0
        %2780 = vmatpush1.bf16.msra.mxu0 %v2211
        %2781 = vmatprep.subr.bf16.mxu0 0
        %2782 = vmatpush1.bf16.msra.mxu0 %v2212
        %2783 = vmatprep.subr.bf16.mxu0 0
        %2784 = vmatpush1.bf16.msra.mxu0 0
        %2785 = vmatprep.subr.bf16.mxu0 0
        %2786 = vmatpush1.bf16.msra.mxu0 0
        %2787 = vmatprep.subr.bf16.mxu0 0
        %2788 = vmatpush1.bf16.msra.mxu0 0
        %2789 = vmatprep.subr.bf16.mxu0 0
        %2790 = vmatpush1.bf16.msra.mxu0 0
        %2791 = vmatprep.subr.bf16.mxu0 0
        %2792 = vmatpush1.bf16.msra.mxu0 0
        %2793 = vmatprep.subr.bf16.mxu0 0
        %2794 = vmatpush1.bf16.msra.mxu0 0
        %2795 = vmatprep.subr.bf16.mxu0 0
        %2796 = vmatpush1.bf16.msra.mxu0 0
        %2797 = vmatprep.subr.bf16.mxu0 0
        %2798 = vmatpush1.bf16.msra.mxu0 0
        %2799 = vmatprep.subr.bf16.mxu0 0
        %2800 = vmatpush1.bf16.msra.mxu0 0
        %2801 = vmatprep.subr.bf16.mxu0 0
        %2802 = vmatpush1.bf16.msra.mxu0 0
        %2803 = vmatprep.subr.bf16.mxu0 0
        %2804 = vmatpush1.bf16.msra.mxu0 0
        %2805 = vmatprep.subr.bf16.mxu0 0
        %2806 = vmatpush1.bf16.msra.mxu0 0
        %2807 = vmatprep.subr.bf16.mxu0 0
        %2808 = vmatpush1.bf16.msra.mxu0 0
        %2809 = vmatprep.subr.bf16.mxu0 0
        %2810 = vmatpush1.bf16.msra.mxu0 0
        %2811 = vmatprep.mubr.bf16.mxu0 0
        %2812 = vmatmul.mubr.bf16.gmra.mrb[0].mxu0 %v2756
        %v2813 = vpop.f32.mrb[0].mxu0
        %v2814 = vadd.f32 %v1775, %v2813
        %v2815 = vpop.f32.mrb[0].mxu0
        %v2816 = vpop.f32.mrb[0].mxu0
        %v2817 = vadd.f32 %v1775, %v2816
        %v2818 = vpop.f32.mrb[0].mxu0
        %2819 = vmatprep.mubr.bf16.mxu0 0
        %2820 = vmatmul.mubr.bf16.gmra.mrb[0].mxu0 %v2759
        %v2821 = vpop.f32.mrb[0].mxu0
        %v2822 = vadd.f32 %v1775, %v2821
        %v2823 = vpop.f32.mrb[0].mxu0
        %v2824 = vpop.f32.mrb[0].mxu0
        %v2825 = vadd.f32 %v1775, %v2824
        %v2826 = vpop.f32.mrb[0].mxu0
        %2827 = vmatprep.mubr.bf16.mxu0 0
        %2828 = vmatmul.mubr.bf16.gmra.mrb[0].mxu0 %v2762
        %v2829 = vpop.f32.mrb[0].mxu0
        %v2830 = vadd.f32 %v1775, %v2829
        %v2831 = vpop.f32.mrb[0].mxu0
        %v2832 = vpop.f32.mrb[0].mxu0
        %v2833 = vadd.f32 %v1775, %v2832
        %v2834 = vpop.f32.mrb[0].mxu0
        %2835 = vmatprep.mubr.bf16.mxu0 0
        %2836 = vmatmul.mubr.bf16.gmra.mrb[0].mxu0 %v2765
        %v2837 = vpop.f32.mrb[0].mxu0
        %v2838 = vadd.f32 %v1775, %v2837
        %v2839 = vpop.f32.mrb[0].mxu0
        %v2840 = vpop.f32.mrb[0].mxu0
        %v2841 = vadd.f32 %v1775, %v2840
        %v2842 = vpop.f32.mrb[0].mxu0
        %2843 = vmatprep.mubr.bf16.mxu0 0
        %2844 = vmatmul.mubr.bf16.gmra.mrb[0].mxu0 %v2768
        %v2845 = vpop.f32.mrb[0].mxu0
        %v2846 = vadd.f32 %v1775, %v2845
        %v2847 = vpop.f32.mrb[0].mxu0
        %v2848 = vpop.f32.mrb[0].mxu0
        %v2849 = vadd.f32 %v1775, %v2848
        %v2850 = vpop.f32.mrb[0].mxu0
        %2851 = vmatprep.mubr.bf16.mxu0 0
        %2852 = vmatmul.mubr.bf16.gmra.mrb[0].mxu0 %v2771
        %v2853 = vpop.f32.mrb[0].mxu0
        %v2854 = vadd.f32 %v1775, %v2853
        %v2855 = vpop.f32.mrb[0].mxu0
        %v2856 = vpop.f32.mrb[0].mxu0
        %v2857 = vadd.f32 %v1775, %v2856
        %v2858 = vpop.f32.mrb[0].mxu0
        %2859 = vmatprep.mubr.bf16.mxu0 0
        %2860 = vmatmul.mubr.bf16.gmra.mrb[0].mxu0 %v2774
        %v2861 = vpop.f32.mrb[0].mxu0
        %v2862 = vadd.f32 %v1775, %v2861
        %v2863 = vpop.f32.mrb[0].mxu0
        %v2864 = vpop.f32.mrb[0].mxu0
        %v2865 = vadd.f32 %v1775, %v2864
        %v2866 = vpop.f32.mrb[0].mxu0
        %2867 = vmatprep.mubr.bf16.mxu0 0
        %2868 = vmatmul.mubr.bf16.gmra.mrb[0].mxu0 %v2777
        %v2869 = vpop.f32.mrb[0].mxu0
        %v2870 = vadd.f32 %v1775, %v2869
        %v2871 = vpop.f32.mrb[0].mxu0
        %v2872 = vpop.f32.mrb[0].mxu0
        %v2873 = vadd.f32 %v1775, %v2872
        %v2874 = vpop.f32.mrb[0].mxu0
        %2875 = vdwg.mxu0
        %v2876 = vmax.f32 %v2814, 0.0
        %v2877 = vmax.f32 %v2817, 0.0
        %v2878 = vmax.f32 %v2822, 0.0
        %v2879 = vmax.f32 %v2825, 0.0
        %v2880 = vmax.f32 %v2830, 0.0
        %v2881 = vmax.f32 %v2833, 0.0
        %v2882 = vmax.f32 %v2838, 0.0
        %v2883 = vmax.f32 %v2841, 0.0
        %v2884 = vmax.f32 %v2846, 0.0
        %v2885 = vmax.f32 %v2849, 0.0
        %v2886 = vmax.f32 %v2854, 0.0
        %v2887 = vmax.f32 %v2857, 0.0
        %v2888 = vmax.f32 %v2862, 0.0
        %v2889 = vmax.f32 %v2865, 0.0
        %v2890 = vmax.f32 %v2870, 0.0
        %v2891 = vmax.f32 %v2873, 0.0
        %v2892 = vadd.f32 %v2876, %v1730
        %v2893 = vadd.f32 %v2877, %v1731
        %v2894 = vadd.f32 %v2878, %v1732
        %v2895 = vadd.f32 %v2879, %v1733
        %v2896 = vadd.f32 %v2880, %v1734
        %v2897 = vadd.f32 %v2881, %v1735
        %v2898 = vadd.f32 %v2882, %v1736
        %v2899 = vadd.f32 %v2883, %v1737
        %v2900 = vadd.f32 %v2884, %v1738
        %v2901 = vadd.f32 %v2885, %v1739
        %v2902 = vadd.f32 %v2886, %v1740
        %v2903 = vadd.f32 %v2887, %v1741
        %v2904 = vadd.f32 %v2888, %v1742
        %v2905 = vadd.f32 %v2889, %v1743
        %v2906 = vadd.f32 %v2890, %v1744
        %v2907 = vadd.f32 %v2891, %v1745
        %v2908 = vld [vmem:[%s303] sm:$0xf]
        %v2909 = vpack.c.bf16 %v2893, %v2892
        %v2910 = vpack.c.bf16 %v2895, %v2894
        %v2911 = vpack.c.bf16 %v2897, %v2896
        %v2912 = vpack.c.bf16 %v2899, %v2898
        %v2913 = vpack.c.bf16 %v2901, %v2900
        %v2914 = vpack.c.bf16 %v2903, %v2902
        %v2915 = vpack.c.bf16 %v2905, %v2904
        %v2916 = vpack.c.bf16 %v2907, %v2906
        %2917 = vmatprep.subr.bf16.mxu0 0
        %2918 = vmatpush1.bf16.msra.mxu0 %v2909
        %2919 = vmatprep.subr.bf16.mxu0 0
        %2920 = vmatpush1.bf16.msra.mxu0 %v2910
        %2921 = vmatprep.subr.bf16.mxu0 0
        %2922 = vmatpush1.bf16.msra.mxu0 %v2911
        %2923 = vmatprep.subr.bf16.mxu0 0
        %2924 = vmatpush1.bf16.msra.mxu0 %v2912
        %2925 = vmatprep.subr.bf16.mxu0 0
        %2926 = vmatpush1.bf16.msra.mxu0 %v2913
        %2927 = vmatprep.subr.bf16.mxu0 0
        %2928 = vmatpush1.bf16.msra.mxu0 %v2914
        %2929 = vmatprep.subr.bf16.mxu0 0
        %2930 = vmatpush1.bf16.msra.mxu0 %v2915
        %2931 = vmatprep.subr.bf16.mxu0 0
        %2932 = vmatpush1.bf16.msra.mxu0 %v2916
        %2933 = vmatprep.subr.bf16.mxu0 0
        %2934 = vmatpush1.bf16.msra.mxu0 0
        %2935 = vmatprep.subr.bf16.mxu0 0
        %2936 = vmatpush1.bf16.msra.mxu0 0
        %2937 = vmatprep.subr.bf16.mxu0 0
        %2938 = vmatpush1.bf16.msra.mxu0 0
        %2939 = vmatprep.subr.bf16.mxu0 0
        %2940 = vmatpush1.bf16.msra.mxu0 0
        %2941 = vmatprep.subr.bf16.mxu0 0
        %2942 = vmatpush1.bf16.msra.mxu0 0
        %2943 = vmatprep.subr.bf16.mxu0 0
        %2944 = vmatpush1.bf16.msra.mxu0 0
        %2945 = vmatprep.subr.bf16.mxu0 0
        %2946 = vmatpush1.bf16.msra.mxu0 0
        %2947 = vmatprep.subr.bf16.mxu0 0
        %2948 = vmatpush1.bf16.msra.mxu0 0
        %2949 = vmatprep.mubr.bf16.mxu0 0
        %2950 = vmatmul.mubr.bf16.gmra.mrb[0].mxu0 %v2908
        %v2951 = vpop.f32.mrb[0].mxu0
        %v2952 = vadd.f32 0.0, %v2951
        %v2953 = vpop.f32.mrb[0].mxu0
        %v2954 = vpop.f32.mrb[0].mxu0
        %v2955 = vpop.f32.mrb[0].mxu0
        %2956 = vdwg.mxu0
        %v2957 = vpack.c.bf16 %v2952, %v2952
        %v2958 = vld [vmem:[%s4] sm:$0xf]
        %v2959 = vld [vmem:[%s4 + $0x4] sm:$0xf]
        %v2960 = vld [vmem:[%s4 + $0x8] sm:$0xf]
        %v2961 = vld [vmem:[%s4 + $0xc] sm:$0xf]
        %v2962 = vld [vmem:[%s5 + $0x7] sm:$0x1]
        %v2963 = vlaneseq
        %v2964 = vshrl.u32 %v2963, 7
        %v2965 = vsub.s32 0, %v2964
        %v2966 = vrot.slane %v2962, %v2965
        %v2971 = vunpack.c.l.b16 %v2958
        %v2972 = vunpack.c.l.b16 %v2959
        %v2973 = vunpack.c.l.b16 %v2960
        %v2974 = vunpack.c.l.b16 %v2961
        %v2975 = vpack.c.b16 %v2972, %v2971
        %v2976 = vpack.c.b16 %v2974, %v2973
        %v2980 = vsel %vm382, %v2957, 0
        %2982 = vmatprep.subr.bf16.mxu0 0
        %2983 = vmatpush1.bf16.msra.mxu0 %v2975
        %2984 = vmatprep.subr.bf16.mxu0 0
        %2985 = vmatpush1.bf16.msra.mxu0 %v2976
        %2986 = vmatprep.subr.bf16.mxu0 0
        %2987 = vmatpush1.bf16.msra.mxu0 0
        %2988 = vmatprep.subr.bf16.mxu0 0
        %2989 = vmatpush1.bf16.msra.mxu0 0
        %2990 = vmatprep.subr.bf16.mxu0 0
        %2991 = vmatpush1.bf16.msra.mxu0 0
        %2992 = vmatprep.subr.bf16.mxu0 0
        %2993 = vmatpush1.bf16.msra.mxu0 0
        %2994 = vmatprep.subr.bf16.mxu0 0
        %2995 = vmatpush1.bf16.msra.mxu0 0
        %2996 = vmatprep.subr.bf16.mxu0 0
        %2997 = vmatpush1.bf16.msra.mxu0 0
        %2998 = vmatprep.subr.bf16.mxu0 0
        %2999 = vmatpush1.bf16.msra.mxu0 0
        %3000 = vmatprep.subr.bf16.mxu0 0
        %3001 = vmatpush1.bf16.msra.mxu0 0
        %3002 = vmatprep.subr.bf16.mxu0 0
        %3003 = vmatpush1.bf16.msra.mxu0 0
        %3004 = vmatprep.subr.bf16.mxu0 0
        %3005 = vmatpush1.bf16.msra.mxu0 0
        %3006 = vmatprep.subr.bf16.mxu0 0
        %3007 = vmatpush1.bf16.msra.mxu0 0
        %3008 = vmatprep.subr.bf16.mxu0 0
        %3009 = vmatpush1.bf16.msra.mxu0 0
        %3010 = vmatprep.subr.bf16.mxu0 0
        %3011 = vmatpush1.bf16.msra.mxu0 0
        %3012 = vmatprep.subr.bf16.mxu0 0
        %3013 = vmatpush1.bf16.msra.mxu0 0
        %3014 = vmatprep.mubr.bf16.mxu0 0
        %3015 = vmatmul.mubr.bf16.gmra.mrb[0].mxu0 %v2980
        %v3016 = vpop.f32.mrb[0].mxu0
        %v3017 = vadd.f32 %v2966, %v3016
        %v3018 = vpop.f32.mrb[0].mxu0
        %v3019 = vpop.f32.mrb[0].mxu0
        %v3020 = vpop.f32.mrb[0].mxu0
        %3021 = vdwg.mxu0
        %3022 = vst [vmem:[%s288] sm:$0xff] %v3017
        %s3023 = sand.u32 %s170, 1
        %s3024 = scalar_lea.sflag [#allocation4], %s3023
        %s3025 = sand.u32 %s170, 1
        %s3026 = smul.addr %s3025, 8
        %s3027 = scalar_lea.vmem [#allocation5], %s3026
        // Predicated region
        $region49: #{tpu_custom_call.1} parent=43 // pred_check
          %p3028 = pneg %p180
        $region50: #{tpu_custom_call.1} parent=43 // pred_check_branch
          %3030 = sbr.rel (%p3028) target = $region52
        $region51: #{tpu_custom_call.1} parent=43 // pred_region
          %s3032 = ssub.s32 128, 128
          %3033 = vsyncadd %s3024, %s3032
          %s3034 = smul.addr %s21, 128
          %s3035 = scalar_lea.hbm %s6, %s3034
          %s3037 = sshll.u32 %s3027, 4
          %s3038 = int_to_ptr.vmem [resolvable:$true] %s3037
          %3040 = dma.vmem_to_hbm [thread:$0]  %s3038, 128, %s3035, %s3024
        $region52: #{tpu_custom_call.1} parent=43 // pred_fallthru
          _
      $region44: #{tpu_custom_call.1} parent=5 // pred_fallthru
        _
      %p3041 = scmp.le.s32.totalorder 2, %s16
      // Predicated region
      $region53: #{tpu_custom_call.1} parent=5 // pred_check
        %p3042 = pneg %p3041
      $region54: #{tpu_custom_call.1} parent=5 // pred_check_branch
        %3044 = sbr.rel (%p3042) target = $region56
      $region55: #{tpu_custom_call.1} parent=5 // pred_region
        %s3045 = ssub.s32 %s16, 2
        // Predicated region
        $region57: #{tpu_custom_call.1} parent=55 // pred_check
          %p3046 = pneg %p186
        $region58: #{tpu_custom_call.1} parent=55 // pred_check_branch
          %3048 = sbr.rel (%p3046) target = $region60
        $region59: #{tpu_custom_call.1} parent=55 // pred_region
          %s3049 = sand.u32 %s171, 1
          %s3050 = scalar_lea.sflag [#allocation4], %s3049
          %s3051 = sand.u32 %s171, 1
          %s3052 = smul.addr %s3051, 8
          %s3053 = scalar_lea.vmem [#allocation5], %s3052
          %3054 = dma.done %s3050, 128
        $region60: #{tpu_custom_call.1} parent=55 // pred_fallthru
          _
      $region56: #{tpu_custom_call.1} parent=5 // pred_fallthru
        _
    $region6: #{tpu_custom_call.1} parent=1 // loop_footer
      %s20 = sadd.s32 1, %s16
    $region7: #{tpu_custom_call.1} parent=1 // loop_footer_branch
      %15 = sbr.rel target = $region3
    $region8: #{tpu_custom_call.1} parent=1 // loop_exit
      _
    %3055 = vsyncpa [#allocation3], 1
    %s3056 = scalar_lea.sflag [#allocation3], 1
    %3057 = vsyncpa %s3056, 1
    %3058 = vsyncpa [#allocation4], 1
    %s3059 = scalar_lea.sflag [#allocation4], 1
    %3060 = vsyncpa %s3059, 1

</llo_original>
